<compile_context>
chip_gen: v7x
topology: tpu7x:2x2x1
jax: 0.10.0
libtpu: 0.0.40
codegen_flags: <defaults>
</compile_context>

<pallas_src>
import numpy as np
import jax
import jax.numpy as jnp
from jax import lax
from jax.experimental import pallas as pl
from jax.experimental.pallas import tpu as pltpu

N_BATCH = 2
H = W = 32
CIN = 3
COUT = 32
KH = KW = 3
HC = WC = 30            # conv output spatial (valid 3x3 on 32)
HP = WP = 15            # pooled spatial
P = HP * WP             # 225 pooled positions
K = KH * KW * CIN       # 27 = im2col patch length
KPAD = 32               # K padded to a sublane multiple
PPAD = 256              # P padded to a lane multiple
HIDDEN = 128
FLAT = COUT * P         # 7200
NQ = 4                  # 2x2 max-pool quadrants


# ---------------------------------------------------------------------------
# One-time host-side preparation (hoisted out of the per-call forward path).
# ---------------------------------------------------------------------------
def build_patch_indices():
    """Gather indices: patches[q, k, p] = x_flat[idx[q, k, p]].

    q = 2x2 pool quadrant (qi*2+qj), k = kh*9 + kw*3 + cin, p = ph*15 + pw.
    Entries in the k >= 27 / p >= 225 pad region point at 0; they are
    neutralized by the zero-padded weight columns/rows, so their value never
    affects the result.
    """
    idx = np.zeros((NQ, KPAD, PPAD), dtype=np.int32)
    kh, kw, ci = np.meshgrid(np.arange(KH), np.arange(KW), np.arange(CIN),
                             indexing="ij")
    kh, kw, ci = kh.reshape(-1), kw.reshape(-1), ci.reshape(-1)     # (27,)
    ph, pw = np.meshgrid(np.arange(HP), np.arange(WP), indexing="ij")
    ph, pw = ph.reshape(-1), pw.reshape(-1)                         # (225,)
    for qi in range(2):
        for qj in range(2):
            ih = 2 * ph[None, :] + qi + kh[:, None]                 # (27, 225)
            iw = 2 * pw[None, :] + qj + kw[:, None]
            idx[qi * 2 + qj, :K, :P] = ci[:, None] * (H * W) + ih * W + iw
    return idx


PATCH_IDX = build_patch_indices()


def prepare_params(wc, bc, w1, b1, w2, b2):
    """One-time weight relayout (NOT inside the jit'd forward).

    - conv weight (COUT, CIN, KH, KW) -> (COUT, KPAD) with k = kh*9+kw*3+cin,
      zero-padded along k, bf16.
    - fc1 weight (HIDDEN, 7200) with PyTorch flatten index c*225+p
      -> (COUT, PPAD, HIDDEN), zero-padded along p, bf16.
    """
    wc_t = jnp.transpose(wc, (0, 2, 3, 1)).reshape(COUT, K)
    wc_t = jnp.pad(wc_t, ((0, 0), (0, KPAD - K))).astype(jnp.bfloat16)
    bc_c = bc.reshape(COUT, 1).astype(jnp.float32)
    w1_r = jnp.transpose(w1.reshape(HIDDEN, COUT, P), (1, 2, 0))    # (32,225,128)
    w1_r = jnp.pad(w1_r, ((0, 0), (0, PPAD - P), (0, 0))).astype(jnp.bfloat16)
    b1_r = b1.reshape(1, HIDDEN).astype(jnp.float32)
    w2_r = w2.reshape(1, HIDDEN).astype(jnp.float32)
    b2_r = b2.reshape(1, 1).astype(jnp.float32)
    return wc_t, bc_c, w1_r, b1_r, w2_r, b2_r


# ---------------------------------------------------------------------------
# Fused kernel: conv1 + bias + ReLU + 2x2 maxpool + fc1 + ReLU + fc2 + sigmoid,
# one batch sample per grid step.  pooled activations never leave VMEM/vregs.
# ---------------------------------------------------------------------------
def fused_kernel(p_ref, wc_ref, bc_ref, w1_ref, b1_ref, w2_ref, b2_ref, o_ref):
    w = wc_ref[...]                                          # (32, 32) bf16

    # conv1 as an im2col matmul per pool quadrant; running max == 2x2 maxpool.
    m = jnp.dot(w, p_ref[0, 0], preferred_element_type=jnp.float32)   # (32,256)
    for q in range(1, NQ):
        m = jnp.maximum(
            m, jnp.dot(w, p_ref[0, q], preferred_element_type=jnp.float32))
    # Bias once after the max (same bias in every quadrant); ReLU commutes with
    # max, so relu-then-pool == pool-then-relu.
    pooled = jnp.maximum(m + bc_ref[...], 0.0)               # (32, 256) f32
    pooled_bf = pooled.astype(jnp.bfloat16)

    # fc1: hidden[h] = sum_c sum_p pooled[c, p] * w1[c, p, h].
    # Unrolled over the 32 output channels so every op stays a plain 2-D MXU
    # matmul (no in-kernel flatten / relayout).  Pad lanes p >= 225 hit
    # zero-padded weight rows, so they contribute nothing.
    hid = jnp.zeros((1, HIDDEN), jnp.float32)
    for c in range(COUT):
        hid = hid + jnp.dot(pooled_bf[c:c + 1, :], w1_ref[c],
                            preferred_element_type=jnp.float32)
    hid = jnp.maximum(hid + b1_ref[...], 0.0)                # (1, 128)

    # fc2 (128 -> 1) as a VPU multiply + lane reduction (skip width-1 matmul).
    z = jnp.sum(hid * w2_ref[...], axis=-1, keepdims=True) + b2_ref[0, 0]
    o_ref[0] = 1.0 / (1.0 + jnp.exp(-z))                     # sigmoid, (1, 1)


def fused_net(patches, wc_t, bc_c, w1_r, b1_r, w2_r, b2_r):
    n = patches.shape[0]
    out = pl.pallas_call(
        fused_kernel,
        out_shape=jax.ShapeDtypeStruct((n, 1, 1), jnp.float32),
        grid_spec=pltpu.PrefetchScalarGridSpec(
            num_scalar_prefetch=0,
            grid=(n,),
            in_specs=[
                # one concatenated patch tensor -> one DMA stream per step
                pl.BlockSpec((1, NQ, KPAD, PPAD), lambda i: (i, 0, 0, 0)),
                pl.BlockSpec((COUT, KPAD), lambda i: (0, 0)),
                pl.BlockSpec((COUT, 1), lambda i: (0, 0)),
                # grid-invariant fc1 weight: fetched once, stays in VMEM
                pl.BlockSpec((COUT, PPAD, HIDDEN), lambda i: (0, 0, 0)),
                pl.BlockSpec((1, HIDDEN), lambda i: (0, 0)),
                pl.BlockSpec((1, HIDDEN), lambda i: (0, 0)),
                # scalar fc2 bias lives in SMEM (no padded VMEM tile / DMA)
                pl.BlockSpec(memory_space=pltpu.MemorySpace.SMEM),
            ],
            out_specs=pl.BlockSpec((1, 1, 1), lambda i: (i, 0, 0)),
        ),
        compiler_params=pltpu.CompilerParams(
            dimension_semantics=("parallel",)),   # one sample per TC on v7x
    )(patches, wc_t, bc_c, w1_r, b1_r, w2_r, b2_r)
    return out.reshape(n, 1)


@jax.jit
def net_forward(x_nchw, wc_t, bc_c, w1_r, b1_r, w2_r, b2_r):
    n = x_nchw.shape[0]
    # Single-gather im2col: (N, 3*32*32) -> (N, 4, KPAD, PPAD), cast to bf16.
    x_flat = x_nchw.reshape(n, CIN * H * W)
    patches = jnp.take(x_flat, PATCH_IDX, axis=1).astype(jnp.bfloat16)
    return fused_net(patches, wc_t, bc_c, w1_r, b1_r, w2_r, b2_r)


# ---------------------------------------------------------------------------
# Pure-JAX reference with exact PyTorch (NCHW) semantics.
# ---------------------------------------------------------------------------
def reference(x, wc, bc, w1, b1, w2, b2):
    conv = lax.conv_general_dilated(
        x, wc, window_strides=(1, 1), padding="VALID",
        dimension_numbers=("NCHW", "OIHW", "NCHW"))
    conv = jnp.maximum(conv + bc[None, :, None, None], 0.0)      # (N,32,30,30)
    pooled = conv.reshape(x.shape[0], COUT, HP, 2, WP, 2).max(axis=(3, 5))
    flat = pooled.reshape(x.shape[0], FLAT)                      # NCHW flatten
    h = jnp.maximum(flat @ w1.T + b1, 0.0)
    return jax.nn.sigmoid(h @ w2.T + b2)


if __name__ == "__main__":
    key = jax.random.PRNGKey(0)
    kx, k1, k2, k3, k4, k5, k6 = jax.random.split(key, 7)
    # Input shape is forced to (N, 3, 32, 32) by the hard-coded view(-1, 7200).
    x = jax.random.normal(kx, (N_BATCH, CIN, H, W), jnp.float32)
    wc = jax.random.normal(k1, (COUT, CIN, KH, KW), jnp.float32) * 0.1
    bc = jax.random.normal(k2, (COUT,), jnp.float32) * 0.1
    w1 = jax.random.normal(k3, (HIDDEN, FLAT), jnp.float32) * (1.0 / FLAT ** 0.5)
    b1 = jax.random.normal(k4, (HIDDEN,), jnp.float32) * 0.1
    w2 = jax.random.normal(k5, (1, HIDDEN), jnp.float32) * (1.0 / HIDDEN ** 0.5)
    b2 = jax.random.normal(k6, (1,), jnp.float32) * 0.1

    # One-time weight relayout, done OUTSIDE the per-call forward path.
    params = prepare_params(wc, bc, w1, b1, w2, b2)

    out = jax.block_until_ready(net_forward(x, *params))
    ref = jax.block_until_ready(reference(x, wc, bc, w1, b1, w2, b2))

    err = float(jnp.max(jnp.abs(out - ref)))
    assert out.shape == (N_BATCH, 1)
    assert err < 1e-2, f"max abs err {err}"
    print("KERNEL_OK")
</pallas_src>

<mosaic_0001>
module attributes {stable_mosaic.version = 11 : i64} {
  func.func @fused_kernel(%arg0: i32, %arg1: memref<1x4x32x256xbf16, #tpu.memory_space<vmem>>, %arg2: memref<32x32xbf16, #tpu.memory_space<vmem>>, %arg3: memref<32x1xf32, #tpu.memory_space<vmem>>, %arg4: memref<32x256x128xbf16, #tpu.memory_space<vmem>>, %arg5: memref<1x128xf32, #tpu.memory_space<vmem>>, %arg6: memref<1x128xf32, #tpu.memory_space<vmem>>, %arg7: memref<1x1xf32, #tpu.memory_space<smem>>, %arg8: memref<1x1x1xf32, #tpu.memory_space<vmem>>) attributes {dimension_semantics = [#tpu.dimension_semantics<parallel>], iteration_bounds = array<i64: 2>, scalar_prefetch = 0 : i64, scratch_operands = 0 : i64, tpu.core_type = #tpu.core_type<tc>, window_params = [{transform_indices = @transform_0, window_bounds = array<i64: 1, 4, 32, 256>}, {pipeline_mode = #tpu.pipeline_mode<synchronous>, transform_indices = @transform_1, window_bounds = array<i64: 32, 32>}, {pipeline_mode = #tpu.pipeline_mode<synchronous>, transform_indices = @transform_2, window_bounds = array<i64: 32, 1>}, {pipeline_mode = #tpu.pipeline_mode<synchronous>, transform_indices = @transform_3, window_bounds = array<i64: 32, 256, 128>}, {pipeline_mode = #tpu.pipeline_mode<synchronous>, transform_indices = @transform_4, window_bounds = array<i64: 1, 128>}, {pipeline_mode = #tpu.pipeline_mode<synchronous>, transform_indices = @transform_5, window_bounds = array<i64: 1, 128>}, {transform_indices = @transform_6, window_bounds = array<i64: 1, 1>}, {transform_indices = @transform_7, window_bounds = array<i64: 1, 1, 1>}]} {
    %c0 = arith.constant 0 : index
    %c0_0 = arith.constant 0 : index
    %0 = vector.load %arg2[%c0, %c0_0] : memref<32x32xbf16, #tpu.memory_space<vmem>>, vector<32x32xbf16>
    %c0_1 = arith.constant 0 : index
    %c0_2 = arith.constant 0 : index
    %c0_3 = arith.constant 0 : index
    %c0_4 = arith.constant 0 : index
    %1 = vector.load %arg1[%c0_1, %c0_2, %c0_3, %c0_4] : memref<1x4x32x256xbf16, #tpu.memory_space<vmem>>, vector<1x1x32x256xbf16>
    %2 = vector.shape_cast %1 : vector<1x1x32x256xbf16> to vector<32x256xbf16>
    %cst = arith.constant dense<0.000000e+00> : vector<32x256xf32>
    %3 = tpu.matmul %0, %2, %cst {dimension_numbers = #tpu.dot_dimension_numbers<[1], [0], [0], [1], [0, 0, 1, 1], [], []>} : vector<32x32xbf16>, vector<32x256xbf16>, vector<32x256xf32> -> vector<32x256xf32>
    %c0_5 = arith.constant 0 : index
    %c1 = arith.constant 1 : index
    %c0_6 = arith.constant 0 : index
    %c0_7 = arith.constant 0 : index
    %4 = vector.load %arg1[%c0_5, %c1, %c0_6, %c0_7] : memref<1x4x32x256xbf16, #tpu.memory_space<vmem>>, vector<1x1x32x256xbf16>
    %5 = vector.shape_cast %4 : vector<1x1x32x256xbf16> to vector<32x256xbf16>
    %cst_8 = arith.constant dense<0.000000e+00> : vector<32x256xf32>
    %6 = tpu.matmul %0, %5, %cst_8 {dimension_numbers = #tpu.dot_dimension_numbers<[1], [0], [0], [1], [0, 0, 1, 1], [], []>} : vector<32x32xbf16>, vector<32x256xbf16>, vector<32x256xf32> -> vector<32x256xf32>
    %7 = arith.maximumf %3, %6 : vector<32x256xf32>
    %c0_9 = arith.constant 0 : index
    %c2 = arith.constant 2 : index
    %c0_10 = arith.constant 0 : index
    %c0_11 = arith.constant 0 : index
    %8 = vector.load %arg1[%c0_9, %c2, %c0_10, %c0_11] : memref<1x4x32x256xbf16, #tpu.memory_space<vmem>>, vector<1x1x32x256xbf16>
    %9 = vector.shape_cast %8 : vector<1x1x32x256xbf16> to vector<32x256xbf16>
    %cst_12 = arith.constant dense<0.000000e+00> : vector<32x256xf32>
    %10 = tpu.matmul %0, %9, %cst_12 {dimension_numbers = #tpu.dot_dimension_numbers<[1], [0], [0], [1], [0, 0, 1, 1], [], []>} : vector<32x32xbf16>, vector<32x256xbf16>, vector<32x256xf32> -> vector<32x256xf32>
    %11 = arith.maximumf %7, %10 : vector<32x256xf32>
    %c0_13 = arith.constant 0 : index
    %c3 = arith.constant 3 : index
    %c0_14 = arith.constant 0 : index
    %c0_15 = arith.constant 0 : index
    %12 = vector.load %arg1[%c0_13, %c3, %c0_14, %c0_15] : memref<1x4x32x256xbf16, #tpu.memory_space<vmem>>, vector<1x1x32x256xbf16>
    %13 = vector.shape_cast %12 : vector<1x1x32x256xbf16> to vector<32x256xbf16>
    %cst_16 = arith.constant dense<0.000000e+00> : vector<32x256xf32>
    %14 = tpu.matmul %0, %13, %cst_16 {dimension_numbers = #tpu.dot_dimension_numbers<[1], [0], [0], [1], [0, 0, 1, 1], [], []>} : vector<32x32xbf16>, vector<32x256xbf16>, vector<32x256xf32> -> vector<32x256xf32>
    %15 = arith.maximumf %11, %14 : vector<32x256xf32>
    %c0_17 = arith.constant 0 : index
    %c0_18 = arith.constant 0 : index
    %16 = vector.load %arg3[%c0_17, %c0_18] : memref<32x1xf32, #tpu.memory_space<vmem>>, vector<32x1xf32>
    %17 = vector.broadcast %16 : vector<32x1xf32> to vector<32x256xf32>
    %18 = arith.addf %15, %17 : vector<32x256xf32>
    %cst_19 = arith.constant 0.000000e+00 : f32
    %19 = vector.broadcast %cst_19 : f32 to vector<32x256xf32>
    %20 = arith.maximumf %18, %19 : vector<32x256xf32>
    %21 = arith.truncf %20 : vector<32x256xf32> to vector<32x256xbf16>
    %cst_20 = arith.constant 0.000000e+00 : f32
    %22 = vector.broadcast %cst_20 : f32 to vector<1x128xf32>
    %23 = vector.extract_strided_slice %21 {offsets = [0, 0], sizes = [1, 256], strides = [1, 1]} : vector<32x256xbf16> to vector<1x256xbf16>
    %c0_21 = arith.constant 0 : index
    %c0_22 = arith.constant 0 : index
    %c0_23 = arith.constant 0 : index
    %24 = vector.load %arg4[%c0_21, %c0_22, %c0_23] : memref<32x256x128xbf16, #tpu.memory_space<vmem>>, vector<1x256x128xbf16>
    %25 = vector.shape_cast %24 : vector<1x256x128xbf16> to vector<256x128xbf16>
    %cst_24 = arith.constant dense<0.000000e+00> : vector<1x128xf32>
    %26 = tpu.matmul %23, %25, %cst_24 {dimension_numbers = #tpu.dot_dimension_numbers<[1], [0], [0], [1], [0, 0, 1, 1], [], []>} : vector<1x256xbf16>, vector<256x128xbf16>, vector<1x128xf32> -> vector<1x128xf32>
    %27 = arith.addf %22, %26 : vector<1x128xf32>
    %28 = vector.extract_strided_slice %21 {offsets = [1, 0], sizes = [1, 256], strides = [1, 1]} : vector<32x256xbf16> to vector<1x256xbf16>
    %c1_25 = arith.constant 1 : index
    %c0_26 = arith.constant 0 : index
    %c0_27 = arith.constant 0 : index
    %29 = vector.load %arg4[%c1_25, %c0_26, %c0_27] : memref<32x256x128xbf16, #tpu.memory_space<vmem>>, vector<1x256x128xbf16>
    %30 = vector.shape_cast %29 : vector<1x256x128xbf16> to vector<256x128xbf16>
    %cst_28 = arith.constant dense<0.000000e+00> : vector<1x128xf32>
    %31 = tpu.matmul %28, %30, %cst_28 {dimension_numbers = #tpu.dot_dimension_numbers<[1], [0], [0], [1], [0, 0, 1, 1], [], []>} : vector<1x256xbf16>, vector<256x128xbf16>, vector<1x128xf32> -> vector<1x128xf32>
    %32 = arith.addf %27, %31 : vector<1x128xf32>
    %33 = vector.extract_strided_slice %21 {offsets = [2, 0], sizes = [1, 256], strides = [1, 1]} : vector<32x256xbf16> to vector<1x256xbf16>
    %c2_29 = arith.constant 2 : index
    %c0_30 = arith.constant 0 : index
    %c0_31 = arith.constant 0 : index
    %34 = vector.load %arg4[%c2_29, %c0_30, %c0_31] : memref<32x256x128xbf16, #tpu.memory_space<vmem>>, vector<1x256x128xbf16>
    %35 = vector.shape_cast %34 : vector<1x256x128xbf16> to vector<256x128xbf16>
    %cst_32 = arith.constant dense<0.000000e+00> : vector<1x128xf32>
    %36 = tpu.matmul %33, %35, %cst_32 {dimension_numbers = #tpu.dot_dimension_numbers<[1], [0], [0], [1], [0, 0, 1, 1], [], []>} : vector<1x256xbf16>, vector<256x128xbf16>, vector<1x128xf32> -> vector<1x128xf32>
    %37 = arith.addf %32, %36 : vector<1x128xf32>
    %38 = vector.extract_strided_slice %21 {offsets = [3, 0], sizes = [1, 256], strides = [1, 1]} : vector<32x256xbf16> to vector<1x256xbf16>
    %c3_33 = arith.constant 3 : index
    %c0_34 = arith.constant 0 : index
    %c0_35 = arith.constant 0 : index
    %39 = vector.load %arg4[%c3_33, %c0_34, %c0_35] : memref<32x256x128xbf16, #tpu.memory_space<vmem>>, vector<1x256x128xbf16>
    %40 = vector.shape_cast %39 : vector<1x256x128xbf16> to vector<256x128xbf16>
    %cst_36 = arith.constant dense<0.000000e+00> : vector<1x128xf32>
    %41 = tpu.matmul %38, %40, %cst_36 {dimension_numbers = #tpu.dot_dimension_numbers<[1], [0], [0], [1], [0, 0, 1, 1], [], []>} : vector<1x256xbf16>, vector<256x128xbf16>, vector<1x128xf32> -> vector<1x128xf32>
    %42 = arith.addf %37, %41 : vector<1x128xf32>
    %43 = vector.extract_strided_slice %21 {offsets = [4, 0], sizes = [1, 256], strides = [1, 1]} : vector<32x256xbf16> to vector<1x256xbf16>
    %c4 = arith.constant 4 : index
    %c0_37 = arith.constant 0 : index
    %c0_38 = arith.constant 0 : index
    %44 = vector.load %arg4[%c4, %c0_37, %c0_38] : memref<32x256x128xbf16, #tpu.memory_space<vmem>>, vector<1x256x128xbf16>
    %45 = vector.shape_cast %44 : vector<1x256x128xbf16> to vector<256x128xbf16>
    %cst_39 = arith.constant dense<0.000000e+00> : vector<1x128xf32>
    %46 = tpu.matmul %43, %45, %cst_39 {dimension_numbers = #tpu.dot_dimension_numbers<[1], [0], [0], [1], [0, 0, 1, 1], [], []>} : vector<1x256xbf16>, vector<256x128xbf16>, vector<1x128xf32> -> vector<1x128xf32>
    %47 = arith.addf %42, %46 : vector<1x128xf32>
    %48 = vector.extract_strided_slice %21 {offsets = [5, 0], sizes = [1, 256], strides = [1, 1]} : vector<32x256xbf16> to vector<1x256xbf16>
    %c5 = arith.constant 5 : index
    %c0_40 = arith.constant 0 : index
    %c0_41 = arith.constant 0 : index
    %49 = vector.load %arg4[%c5, %c0_40, %c0_41] : memref<32x256x128xbf16, #tpu.memory_space<vmem>>, vector<1x256x128xbf16>
    %50 = vector.shape_cast %49 : vector<1x256x128xbf16> to vector<256x128xbf16>
    %cst_42 = arith.constant dense<0.000000e+00> : vector<1x128xf32>
    %51 = tpu.matmul %48, %50, %cst_42 {dimension_numbers = #tpu.dot_dimension_numbers<[1], [0], [0], [1], [0, 0, 1, 1], [], []>} : vector<1x256xbf16>, vector<256x128xbf16>, vector<1x128xf32> -> vector<1x128xf32>
    %52 = arith.addf %47, %51 : vector<1x128xf32>
    %53 = vector.extract_strided_slice %21 {offsets = [6, 0], sizes = [1, 256], strides = [1, 1]} : vector<32x256xbf16> to vector<1x256xbf16>
    %c6 = arith.constant 6 : index
    %c0_43 = arith.constant 0 : index
    %c0_44 = arith.constant 0 : index
    %54 = vector.load %arg4[%c6, %c0_43, %c0_44] : memref<32x256x128xbf16, #tpu.memory_space<vmem>>, vector<1x256x128xbf16>
    %55 = vector.shape_cast %54 : vector<1x256x128xbf16> to vector<256x128xbf16>
    %cst_45 = arith.constant dense<0.000000e+00> : vector<1x128xf32>
    %56 = tpu.matmul %53, %55, %cst_45 {dimension_numbers = #tpu.dot_dimension_numbers<[1], [0], [0], [1], [0, 0, 1, 1], [], []>} : vector<1x256xbf16>, vector<256x128xbf16>, vector<1x128xf32> -> vector<1x128xf32>
    %57 = arith.addf %52, %56 : vector<1x128xf32>
    %58 = vector.extract_strided_slice %21 {offsets = [7, 0], sizes = [1, 256], strides = [1, 1]} : vector<32x256xbf16> to vector<1x256xbf16>
    %c7 = arith.constant 7 : index
    %c0_46 = arith.constant 0 : index
    %c0_47 = arith.constant 0 : index
    %59 = vector.load %arg4[%c7, %c0_46, %c0_47] : memref<32x256x128xbf16, #tpu.memory_space<vmem>>, vector<1x256x128xbf16>
    %60 = vector.shape_cast %59 : vector<1x256x128xbf16> to vector<256x128xbf16>
    %cst_48 = arith.constant dense<0.000000e+00> : vector<1x128xf32>
    %61 = tpu.matmul %58, %60, %cst_48 {dimension_numbers = #tpu.dot_dimension_numbers<[1], [0], [0], [1], [0, 0, 1, 1], [], []>} : vector<1x256xbf16>, vector<256x128xbf16>, vector<1x128xf32> -> vector<1x128xf32>
    %62 = arith.addf %57, %61 : vector<1x128xf32>
    %63 = vector.extract_strided_slice %21 {offsets = [8, 0], sizes = [1, 256], strides = [1, 1]} : vector<32x256xbf16> to vector<1x256xbf16>
    %c8 = arith.constant 8 : index
    %c0_49 = arith.constant 0 : index
    %c0_50 = arith.constant 0 : index
    %64 = vector.load %arg4[%c8, %c0_49, %c0_50] : memref<32x256x128xbf16, #tpu.memory_space<vmem>>, vector<1x256x128xbf16>
    %65 = vector.shape_cast %64 : vector<1x256x128xbf16> to vector<256x128xbf16>
    %cst_51 = arith.constant dense<0.000000e+00> : vector<1x128xf32>
    %66 = tpu.matmul %63, %65, %cst_51 {dimension_numbers = #tpu.dot_dimension_numbers<[1], [0], [0], [1], [0, 0, 1, 1], [], []>} : vector<1x256xbf16>, vector<256x128xbf16>, vector<1x128xf32> -> vector<1x128xf32>
    %67 = arith.addf %62, %66 : vector<1x128xf32>
    %68 = vector.extract_strided_slice %21 {offsets = [9, 0], sizes = [1, 256], strides = [1, 1]} : vector<32x256xbf16> to vector<1x256xbf16>
    %c9 = arith.constant 9 : index
    %c0_52 = arith.constant 0 : index
    %c0_53 = arith.constant 0 : index
    %69 = vector.load %arg4[%c9, %c0_52, %c0_53] : memref<32x256x128xbf16, #tpu.memory_space<vmem>>, vector<1x256x128xbf16>
    %70 = vector.shape_cast %69 : vector<1x256x128xbf16> to vector<256x128xbf16>
    %cst_54 = arith.constant dense<0.000000e+00> : vector<1x128xf32>
    %71 = tpu.matmul %68, %70, %cst_54 {dimension_numbers = #tpu.dot_dimension_numbers<[1], [0], [0], [1], [0, 0, 1, 1], [], []>} : vector<1x256xbf16>, vector<256x128xbf16>, vector<1x128xf32> -> vector<1x128xf32>
    %72 = arith.addf %67, %71 : vector<1x128xf32>
    %73 = vector.extract_strided_slice %21 {offsets = [10, 0], sizes = [1, 256], strides = [1, 1]} : vector<32x256xbf16> to vector<1x256xbf16>
    %c10 = arith.constant 10 : index
    %c0_55 = arith.constant 0 : index
    %c0_56 = arith.constant 0 : index
    %74 = vector.load %arg4[%c10, %c0_55, %c0_56] : memref<32x256x128xbf16, #tpu.memory_space<vmem>>, vector<1x256x128xbf16>
    %75 = vector.shape_cast %74 : vector<1x256x128xbf16> to vector<256x128xbf16>
    %cst_57 = arith.constant dense<0.000000e+00> : vector<1x128xf32>
    %76 = tpu.matmul %73, %75, %cst_57 {dimension_numbers = #tpu.dot_dimension_numbers<[1], [0], [0], [1], [0, 0, 1, 1], [], []>} : vector<1x256xbf16>, vector<256x128xbf16>, vector<1x128xf32> -> vector<1x128xf32>
    %77 = arith.addf %72, %76 : vector<1x128xf32>
    %78 = vector.extract_strided_slice %21 {offsets = [11, 0], sizes = [1, 256], strides = [1, 1]} : vector<32x256xbf16> to vector<1x256xbf16>
    %c11 = arith.constant 11 : index
    %c0_58 = arith.constant 0 : index
    %c0_59 = arith.constant 0 : index
    %79 = vector.load %arg4[%c11, %c0_58, %c0_59] : memref<32x256x128xbf16, #tpu.memory_space<vmem>>, vector<1x256x128xbf16>
    %80 = vector.shape_cast %79 : vector<1x256x128xbf16> to vector<256x128xbf16>
    %cst_60 = arith.constant dense<0.000000e+00> : vector<1x128xf32>
    %81 = tpu.matmul %78, %80, %cst_60 {dimension_numbers = #tpu.dot_dimension_numbers<[1], [0], [0], [1], [0, 0, 1, 1], [], []>} : vector<1x256xbf16>, vector<256x128xbf16>, vector<1x128xf32> -> vector<1x128xf32>
    %82 = arith.addf %77, %81 : vector<1x128xf32>
    %83 = vector.extract_strided_slice %21 {offsets = [12, 0], sizes = [1, 256], strides = [1, 1]} : vector<32x256xbf16> to vector<1x256xbf16>
    %c12 = arith.constant 12 : index
    %c0_61 = arith.constant 0 : index
    %c0_62 = arith.constant 0 : index
    %84 = vector.load %arg4[%c12, %c0_61, %c0_62] : memref<32x256x128xbf16, #tpu.memory_space<vmem>>, vector<1x256x128xbf16>
    %85 = vector.shape_cast %84 : vector<1x256x128xbf16> to vector<256x128xbf16>
    %cst_63 = arith.constant dense<0.000000e+00> : vector<1x128xf32>
    %86 = tpu.matmul %83, %85, %cst_63 {dimension_numbers = #tpu.dot_dimension_numbers<[1], [0], [0], [1], [0, 0, 1, 1], [], []>} : vector<1x256xbf16>, vector<256x128xbf16>, vector<1x128xf32> -> vector<1x128xf32>
    %87 = arith.addf %82, %86 : vector<1x128xf32>
    %88 = vector.extract_strided_slice %21 {offsets = [13, 0], sizes = [1, 256], strides = [1, 1]} : vector<32x256xbf16> to vector<1x256xbf16>
    %c13 = arith.constant 13 : index
    %c0_64 = arith.constant 0 : index
    %c0_65 = arith.constant 0 : index
    %89 = vector.load %arg4[%c13, %c0_64, %c0_65] : memref<32x256x128xbf16, #tpu.memory_space<vmem>>, vector<1x256x128xbf16>
    %90 = vector.shape_cast %89 : vector<1x256x128xbf16> to vector<256x128xbf16>
    %cst_66 = arith.constant dense<0.000000e+00> : vector<1x128xf32>
    %91 = tpu.matmul %88, %90, %cst_66 {dimension_numbers = #tpu.dot_dimension_numbers<[1], [0], [0], [1], [0, 0, 1, 1], [], []>} : vector<1x256xbf16>, vector<256x128xbf16>, vector<1x128xf32> -> vector<1x128xf32>
    %92 = arith.addf %87, %91 : vector<1x128xf32>
    %93 = vector.extract_strided_slice %21 {offsets = [14, 0], sizes = [1, 256], strides = [1, 1]} : vector<32x256xbf16> to vector<1x256xbf16>
    %c14 = arith.constant 14 : index
    %c0_67 = arith.constant 0 : index
    %c0_68 = arith.constant 0 : index
    %94 = vector.load %arg4[%c14, %c0_67, %c0_68] : memref<32x256x128xbf16, #tpu.memory_space<vmem>>, vector<1x256x128xbf16>
    %95 = vector.shape_cast %94 : vector<1x256x128xbf16> to vector<256x128xbf16>
    %cst_69 = arith.constant dense<0.000000e+00> : vector<1x128xf32>
    %96 = tpu.matmul %93, %95, %cst_69 {dimension_numbers = #tpu.dot_dimension_numbers<[1], [0], [0], [1], [0, 0, 1, 1], [], []>} : vector<1x256xbf16>, vector<256x128xbf16>, vector<1x128xf32> -> vector<1x128xf32>
    %97 = arith.addf %92, %96 : vector<1x128xf32>
    %98 = vector.extract_strided_slice %21 {offsets = [15, 0], sizes = [1, 256], strides = [1, 1]} : vector<32x256xbf16> to vector<1x256xbf16>
    %c15 = arith.constant 15 : index
    %c0_70 = arith.constant 0 : index
    %c0_71 = arith.constant 0 : index
    %99 = vector.load %arg4[%c15, %c0_70, %c0_71] : memref<32x256x128xbf16, #tpu.memory_space<vmem>>, vector<1x256x128xbf16>
    %100 = vector.shape_cast %99 : vector<1x256x128xbf16> to vector<256x128xbf16>
    %cst_72 = arith.constant dense<0.000000e+00> : vector<1x128xf32>
    %101 = tpu.matmul %98, %100, %cst_72 {dimension_numbers = #tpu.dot_dimension_numbers<[1], [0], [0], [1], [0, 0, 1, 1], [], []>} : vector<1x256xbf16>, vector<256x128xbf16>, vector<1x128xf32> -> vector<1x128xf32>
    %102 = arith.addf %97, %101 : vector<1x128xf32>
    %103 = vector.extract_strided_slice %21 {offsets = [16, 0], sizes = [1, 256], strides = [1, 1]} : vector<32x256xbf16> to vector<1x256xbf16>
    %c16 = arith.constant 16 : index
    %c0_73 = arith.constant 0 : index
    %c0_74 = arith.constant 0 : index
    %104 = vector.load %arg4[%c16, %c0_73, %c0_74] : memref<32x256x128xbf16, #tpu.memory_space<vmem>>, vector<1x256x128xbf16>
    %105 = vector.shape_cast %104 : vector<1x256x128xbf16> to vector<256x128xbf16>
    %cst_75 = arith.constant dense<0.000000e+00> : vector<1x128xf32>
    %106 = tpu.matmul %103, %105, %cst_75 {dimension_numbers = #tpu.dot_dimension_numbers<[1], [0], [0], [1], [0, 0, 1, 1], [], []>} : vector<1x256xbf16>, vector<256x128xbf16>, vector<1x128xf32> -> vector<1x128xf32>
    %107 = arith.addf %102, %106 : vector<1x128xf32>
    %108 = vector.extract_strided_slice %21 {offsets = [17, 0], sizes = [1, 256], strides = [1, 1]} : vector<32x256xbf16> to vector<1x256xbf16>
    %c17 = arith.constant 17 : index
    %c0_76 = arith.constant 0 : index
    %c0_77 = arith.constant 0 : index
    %109 = vector.load %arg4[%c17, %c0_76, %c0_77] : memref<32x256x128xbf16, #tpu.memory_space<vmem>>, vector<1x256x128xbf16>
    %110 = vector.shape_cast %109 : vector<1x256x128xbf16> to vector<256x128xbf16>
    %cst_78 = arith.constant dense<0.000000e+00> : vector<1x128xf32>
    %111 = tpu.matmul %108, %110, %cst_78 {dimension_numbers = #tpu.dot_dimension_numbers<[1], [0], [0], [1], [0, 0, 1, 1], [], []>} : vector<1x256xbf16>, vector<256x128xbf16>, vector<1x128xf32> -> vector<1x128xf32>
    %112 = arith.addf %107, %111 : vector<1x128xf32>
    %113 = vector.extract_strided_slice %21 {offsets = [18, 0], sizes = [1, 256], strides = [1, 1]} : vector<32x256xbf16> to vector<1x256xbf16>
    %c18 = arith.constant 18 : index
    %c0_79 = arith.constant 0 : index
    %c0_80 = arith.constant 0 : index
    %114 = vector.load %arg4[%c18, %c0_79, %c0_80] : memref<32x256x128xbf16, #tpu.memory_space<vmem>>, vector<1x256x128xbf16>
    %115 = vector.shape_cast %114 : vector<1x256x128xbf16> to vector<256x128xbf16>
    %cst_81 = arith.constant dense<0.000000e+00> : vector<1x128xf32>
    %116 = tpu.matmul %113, %115, %cst_81 {dimension_numbers = #tpu.dot_dimension_numbers<[1], [0], [0], [1], [0, 0, 1, 1], [], []>} : vector<1x256xbf16>, vector<256x128xbf16>, vector<1x128xf32> -> vector<1x128xf32>
    %117 = arith.addf %112, %116 : vector<1x128xf32>
    %118 = vector.extract_strided_slice %21 {offsets = [19, 0], sizes = [1, 256], strides = [1, 1]} : vector<32x256xbf16> to vector<1x256xbf16>
    %c19 = arith.constant 19 : index
    %c0_82 = arith.constant 0 : index
    %c0_83 = arith.constant 0 : index
    %119 = vector.load %arg4[%c19, %c0_82, %c0_83] : memref<32x256x128xbf16, #tpu.memory_space<vmem>>, vector<1x256x128xbf16>
    %120 = vector.shape_cast %119 : vector<1x256x128xbf16> to vector<256x128xbf16>
    %cst_84 = arith.constant dense<0.000000e+00> : vector<1x128xf32>
    %121 = tpu.matmul %118, %120, %cst_84 {dimension_numbers = #tpu.dot_dimension_numbers<[1], [0], [0], [1], [0, 0, 1, 1], [], []>} : vector<1x256xbf16>, vector<256x128xbf16>, vector<1x128xf32> -> vector<1x128xf32>
    %122 = arith.addf %117, %121 : vector<1x128xf32>
    %123 = vector.extract_strided_slice %21 {offsets = [20, 0], sizes = [1, 256], strides = [1, 1]} : vector<32x256xbf16> to vector<1x256xbf16>
    %c20 = arith.constant 20 : index
    %c0_85 = arith.constant 0 : index
    %c0_86 = arith.constant 0 : index
    %124 = vector.load %arg4[%c20, %c0_85, %c0_86] : memref<32x256x128xbf16, #tpu.memory_space<vmem>>, vector<1x256x128xbf16>
    %125 = vector.shape_cast %124 : vector<1x256x128xbf16> to vector<256x128xbf16>
    %cst_87 = arith.constant dense<0.000000e+00> : vector<1x128xf32>
    %126 = tpu.matmul %123, %125, %cst_87 {dimension_numbers = #tpu.dot_dimension_numbers<[1], [0], [0], [1], [0, 0, 1, 1], [], []>} : vector<1x256xbf16>, vector<256x128xbf16>, vector<1x128xf32> -> vector<1x128xf32>
    %127 = arith.addf %122, %126 : vector<1x128xf32>
    %128 = vector.extract_strided_slice %21 {offsets = [21, 0], sizes = [1, 256], strides = [1, 1]} : vector<32x256xbf16> to vector<1x256xbf16>
    %c21 = arith.constant 21 : index
    %c0_88 = arith.constant 0 : index
    %c0_89 = arith.constant 0 : index
    %129 = vector.load %arg4[%c21, %c0_88, %c0_89] : memref<32x256x128xbf16, #tpu.memory_space<vmem>>, vector<1x256x128xbf16>
    %130 = vector.shape_cast %129 : vector<1x256x128xbf16> to vector<256x128xbf16>
    %cst_90 = arith.constant dense<0.000000e+00> : vector<1x128xf32>
    %131 = tpu.matmul %128, %130, %cst_90 {dimension_numbers = #tpu.dot_dimension_numbers<[1], [0], [0], [1], [0, 0, 1, 1], [], []>} : vector<1x256xbf16>, vector<256x128xbf16>, vector<1x128xf32> -> vector<1x128xf32>
    %132 = arith.addf %127, %131 : vector<1x128xf32>
    %133 = vector.extract_strided_slice %21 {offsets = [22, 0], sizes = [1, 256], strides = [1, 1]} : vector<32x256xbf16> to vector<1x256xbf16>
    %c22 = arith.constant 22 : index
    %c0_91 = arith.constant 0 : index
    %c0_92 = arith.constant 0 : index
    %134 = vector.load %arg4[%c22, %c0_91, %c0_92] : memref<32x256x128xbf16, #tpu.memory_space<vmem>>, vector<1x256x128xbf16>
    %135 = vector.shape_cast %134 : vector<1x256x128xbf16> to vector<256x128xbf16>
    %cst_93 = arith.constant dense<0.000000e+00> : vector<1x128xf32>
    %136 = tpu.matmul %133, %135, %cst_93 {dimension_numbers = #tpu.dot_dimension_numbers<[1], [0], [0], [1], [0, 0, 1, 1], [], []>} : vector<1x256xbf16>, vector<256x128xbf16>, vector<1x128xf32> -> vector<1x128xf32>
    %137 = arith.addf %132, %136 : vector<1x128xf32>
    %138 = vector.extract_strided_slice %21 {offsets = [23, 0], sizes = [1, 256], strides = [1, 1]} : vector<32x256xbf16> to vector<1x256xbf16>
    %c23 = arith.constant 23 : index
    %c0_94 = arith.constant 0 : index
    %c0_95 = arith.constant 0 : index
    %139 = vector.load %arg4[%c23, %c0_94, %c0_95] : memref<32x256x128xbf16, #tpu.memory_space<vmem>>, vector<1x256x128xbf16>
    %140 = vector.shape_cast %139 : vector<1x256x128xbf16> to vector<256x128xbf16>
    %cst_96 = arith.constant dense<0.000000e+00> : vector<1x128xf32>
    %141 = tpu.matmul %138, %140, %cst_96 {dimension_numbers = #tpu.dot_dimension_numbers<[1], [0], [0], [1], [0, 0, 1, 1], [], []>} : vector<1x256xbf16>, vector<256x128xbf16>, vector<1x128xf32> -> vector<1x128xf32>
    %142 = arith.addf %137, %141 : vector<1x128xf32>
    %143 = vector.extract_strided_slice %21 {offsets = [24, 0], sizes = [1, 256], strides = [1, 1]} : vector<32x256xbf16> to vector<1x256xbf16>
    %c24 = arith.constant 24 : index
    %c0_97 = arith.constant 0 : index
    %c0_98 = arith.constant 0 : index
    %144 = vector.load %arg4[%c24, %c0_97, %c0_98] : memref<32x256x128xbf16, #tpu.memory_space<vmem>>, vector<1x256x128xbf16>
    %145 = vector.shape_cast %144 : vector<1x256x128xbf16> to vector<256x128xbf16>
    %cst_99 = arith.constant dense<0.000000e+00> : vector<1x128xf32>
    %146 = tpu.matmul %143, %145, %cst_99 {dimension_numbers = #tpu.dot_dimension_numbers<[1], [0], [0], [1], [0, 0, 1, 1], [], []>} : vector<1x256xbf16>, vector<256x128xbf16>, vector<1x128xf32> -> vector<1x128xf32>
    %147 = arith.addf %142, %146 : vector<1x128xf32>
    %148 = vector.extract_strided_slice %21 {offsets = [25, 0], sizes = [1, 256], strides = [1, 1]} : vector<32x256xbf16> to vector<1x256xbf16>
    %c25 = arith.constant 25 : index
    %c0_100 = arith.constant 0 : index
    %c0_101 = arith.constant 0 : index
    %149 = vector.load %arg4[%c25, %c0_100, %c0_101] : memref<32x256x128xbf16, #tpu.memory_space<vmem>>, vector<1x256x128xbf16>
    %150 = vector.shape_cast %149 : vector<1x256x128xbf16> to vector<256x128xbf16>
    %cst_102 = arith.constant dense<0.000000e+00> : vector<1x128xf32>
    %151 = tpu.matmul %148, %150, %cst_102 {dimension_numbers = #tpu.dot_dimension_numbers<[1], [0], [0], [1], [0, 0, 1, 1], [], []>} : vector<1x256xbf16>, vector<256x128xbf16>, vector<1x128xf32> -> vector<1x128xf32>
    %152 = arith.addf %147, %151 : vector<1x128xf32>
    %153 = vector.extract_strided_slice %21 {offsets = [26, 0], sizes = [1, 256], strides = [1, 1]} : vector<32x256xbf16> to vector<1x256xbf16>
    %c26 = arith.constant 26 : index
    %c0_103 = arith.constant 0 : index
    %c0_104 = arith.constant 0 : index
    %154 = vector.load %arg4[%c26, %c0_103, %c0_104] : memref<32x256x128xbf16, #tpu.memory_space<vmem>>, vector<1x256x128xbf16>
    %155 = vector.shape_cast %154 : vector<1x256x128xbf16> to vector<256x128xbf16>
    %cst_105 = arith.constant dense<0.000000e+00> : vector<1x128xf32>
    %156 = tpu.matmul %153, %155, %cst_105 {dimension_numbers = #tpu.dot_dimension_numbers<[1], [0], [0], [1], [0, 0, 1, 1], [], []>} : vector<1x256xbf16>, vector<256x128xbf16>, vector<1x128xf32> -> vector<1x128xf32>
    %157 = arith.addf %152, %156 : vector<1x128xf32>
    %158 = vector.extract_strided_slice %21 {offsets = [27, 0], sizes = [1, 256], strides = [1, 1]} : vector<32x256xbf16> to vector<1x256xbf16>
    %c27 = arith.constant 27 : index
    %c0_106 = arith.constant 0 : index
    %c0_107 = arith.constant 0 : index
    %159 = vector.load %arg4[%c27, %c0_106, %c0_107] : memref<32x256x128xbf16, #tpu.memory_space<vmem>>, vector<1x256x128xbf16>
    %160 = vector.shape_cast %159 : vector<1x256x128xbf16> to vector<256x128xbf16>
    %cst_108 = arith.constant dense<0.000000e+00> : vector<1x128xf32>
    %161 = tpu.matmul %158, %160, %cst_108 {dimension_numbers = #tpu.dot_dimension_numbers<[1], [0], [0], [1], [0, 0, 1, 1], [], []>} : vector<1x256xbf16>, vector<256x128xbf16>, vector<1x128xf32> -> vector<1x128xf32>
    %162 = arith.addf %157, %161 : vector<1x128xf32>
    %163 = vector.extract_strided_slice %21 {offsets = [28, 0], sizes = [1, 256], strides = [1, 1]} : vector<32x256xbf16> to vector<1x256xbf16>
    %c28 = arith.constant 28 : index
    %c0_109 = arith.constant 0 : index
    %c0_110 = arith.constant 0 : index
    %164 = vector.load %arg4[%c28, %c0_109, %c0_110] : memref<32x256x128xbf16, #tpu.memory_space<vmem>>, vector<1x256x128xbf16>
    %165 = vector.shape_cast %164 : vector<1x256x128xbf16> to vector<256x128xbf16>
    %cst_111 = arith.constant dense<0.000000e+00> : vector<1x128xf32>
    %166 = tpu.matmul %163, %165, %cst_111 {dimension_numbers = #tpu.dot_dimension_numbers<[1], [0], [0], [1], [0, 0, 1, 1], [], []>} : vector<1x256xbf16>, vector<256x128xbf16>, vector<1x128xf32> -> vector<1x128xf32>
    %167 = arith.addf %162, %166 : vector<1x128xf32>
    %168 = vector.extract_strided_slice %21 {offsets = [29, 0], sizes = [1, 256], strides = [1, 1]} : vector<32x256xbf16> to vector<1x256xbf16>
    %c29 = arith.constant 29 : index
    %c0_112 = arith.constant 0 : index
    %c0_113 = arith.constant 0 : index
    %169 = vector.load %arg4[%c29, %c0_112, %c0_113] : memref<32x256x128xbf16, #tpu.memory_space<vmem>>, vector<1x256x128xbf16>
    %170 = vector.shape_cast %169 : vector<1x256x128xbf16> to vector<256x128xbf16>
    %cst_114 = arith.constant dense<0.000000e+00> : vector<1x128xf32>
    %171 = tpu.matmul %168, %170, %cst_114 {dimension_numbers = #tpu.dot_dimension_numbers<[1], [0], [0], [1], [0, 0, 1, 1], [], []>} : vector<1x256xbf16>, vector<256x128xbf16>, vector<1x128xf32> -> vector<1x128xf32>
    %172 = arith.addf %167, %171 : vector<1x128xf32>
    %173 = vector.extract_strided_slice %21 {offsets = [30, 0], sizes = [1, 256], strides = [1, 1]} : vector<32x256xbf16> to vector<1x256xbf16>
    %c30 = arith.constant 30 : index
    %c0_115 = arith.constant 0 : index
    %c0_116 = arith.constant 0 : index
    %174 = vector.load %arg4[%c30, %c0_115, %c0_116] : memref<32x256x128xbf16, #tpu.memory_space<vmem>>, vector<1x256x128xbf16>
    %175 = vector.shape_cast %174 : vector<1x256x128xbf16> to vector<256x128xbf16>
    %cst_117 = arith.constant dense<0.000000e+00> : vector<1x128xf32>
    %176 = tpu.matmul %173, %175, %cst_117 {dimension_numbers = #tpu.dot_dimension_numbers<[1], [0], [0], [1], [0, 0, 1, 1], [], []>} : vector<1x256xbf16>, vector<256x128xbf16>, vector<1x128xf32> -> vector<1x128xf32>
    %177 = arith.addf %172, %176 : vector<1x128xf32>
    %178 = vector.extract_strided_slice %21 {offsets = [31, 0], sizes = [1, 256], strides = [1, 1]} : vector<32x256xbf16> to vector<1x256xbf16>
    %c31 = arith.constant 31 : index
    %c0_118 = arith.constant 0 : index
    %c0_119 = arith.constant 0 : index
    %179 = vector.load %arg4[%c31, %c0_118, %c0_119] : memref<32x256x128xbf16, #tpu.memory_space<vmem>>, vector<1x256x128xbf16>
    %180 = vector.shape_cast %179 : vector<1x256x128xbf16> to vector<256x128xbf16>
    %cst_120 = arith.constant dense<0.000000e+00> : vector<1x128xf32>
    %181 = tpu.matmul %178, %180, %cst_120 {dimension_numbers = #tpu.dot_dimension_numbers<[1], [0], [0], [1], [0, 0, 1, 1], [], []>} : vector<1x256xbf16>, vector<256x128xbf16>, vector<1x128xf32> -> vector<1x128xf32>
    %182 = arith.addf %177, %181 : vector<1x128xf32>
    %c0_121 = arith.constant 0 : index
    %c0_122 = arith.constant 0 : index
    %183 = vector.load %arg5[%c0_121, %c0_122] : memref<1x128xf32, #tpu.memory_space<vmem>>, vector<1x128xf32>
    %184 = arith.addf %182, %183 : vector<1x128xf32>
    %cst_123 = arith.constant 0.000000e+00 : f32
    %185 = vector.broadcast %cst_123 : f32 to vector<1x128xf32>
    %186 = arith.maximumf %184, %185 : vector<1x128xf32>
    %c0_124 = arith.constant 0 : index
    %c0_125 = arith.constant 0 : index
    %187 = vector.load %arg6[%c0_124, %c0_125] : memref<1x128xf32, #tpu.memory_space<vmem>>, vector<1x128xf32>
    %188 = arith.mulf %186, %187 : vector<1x128xf32>
    %cst_126 = arith.constant dense<0.000000e+00> : vector<1xf32>
    %189 = vector.multi_reduction <add>, %188, %cst_126 [1] : vector<1x128xf32> to vector<1xf32>
    %190 = vector.shape_cast %189 : vector<1xf32> to vector<1x1xf32>
    %c0_127 = arith.constant 0 : index
    %c0_128 = arith.constant 0 : index
    %191 = memref.load %arg7[%c0_127, %c0_128] : memref<1x1xf32, #tpu.memory_space<smem>>
    %192 = vector.broadcast %191 : f32 to vector<1x1xf32>
    %193 = arith.addf %190, %192 : vector<1x1xf32>
    %cst_129 = arith.constant 0.000000e+00 : f32
    %194 = vector.broadcast %cst_129 : f32 to vector<1x1xf32>
    %195 = arith.subf %194, %193 : vector<1x1xf32>
    %196 = math.exp %195 : vector<1x1xf32>
    %cst_130 = arith.constant 1.000000e+00 : f32
    %197 = vector.broadcast %cst_130 : f32 to vector<1x1xf32>
    %198 = arith.addf %197, %196 : vector<1x1xf32>
    %cst_131 = arith.constant 1.000000e+00 : f32
    %199 = vector.broadcast %cst_131 : f32 to vector<1x1xf32>
    %200 = arith.divf %199, %198 : vector<1x1xf32>
    %c0_132 = arith.constant 0 : index
    %c0_133 = arith.constant 0 : index
    %c0_134 = arith.constant 0 : index
    %201 = vector.load %arg8[%c0_132, %c0_133, %c0_134] : memref<1x1x1xf32, #tpu.memory_space<vmem>>, vector<1x1x1xf32>
    %202 = vector.shape_cast %201 : vector<1x1x1xf32> to vector<1x1xf32>
    %203 = vector.shape_cast %200 : vector<1x1xf32> to vector<1x1x1xf32>
    tpu.vector_store %arg8[%c0_132, %c0_133, %c0_134], %203 {strides = array<i32>} : memref<1x1x1xf32, #tpu.memory_space<vmem>>, vector<1x1x1xf32>,
    return
  }
  func.func @transform_0(%arg0: i32) -> (i32, i32, i32, i32) {
    %c0_i32 = arith.constant 0 : i32
    %c0_i32_0 = arith.constant 0 : i32
    %c0_i32_1 = arith.constant 0 : i32
    %c0_i32_2 = arith.constant 0 : i32
    return %arg0, %c0_i32, %c0_i32_0, %c0_i32_1 : i32, i32, i32, i32
  }
  func.func @transform_1(%arg0: i32) -> (i32, i32) {
    %c0_i32 = arith.constant 0 : i32
    %c0_i32_0 = arith.constant 0 : i32
    %c0_i32_1 = arith.constant 0 : i32
    return %c0_i32, %c0_i32_0 : i32, i32
  }
  func.func @transform_2(%arg0: i32) -> (i32, i32) {
    %c0_i32 = arith.constant 0 : i32
    %c0_i32_0 = arith.constant 0 : i32
    %c0_i32_1 = arith.constant 0 : i32
    return %c0_i32, %c0_i32_0 : i32, i32
  }
  func.func @transform_3(%arg0: i32) -> (i32, i32, i32) {
    %c0_i32 = arith.constant 0 : i32
    %c0_i32_0 = arith.constant 0 : i32
    %c0_i32_1 = arith.constant 0 : i32
    %c0_i32_2 = arith.constant 0 : i32
    return %c0_i32, %c0_i32_0, %c0_i32_1 : i32, i32, i32
  }
  func.func @transform_4(%arg0: i32) -> (i32, i32) {
    %c0_i32 = arith.constant 0 : i32
    %c0_i32_0 = arith.constant 0 : i32
    %c0_i32_1 = arith.constant 0 : i32
    return %c0_i32, %c0_i32_0 : i32, i32
  }
  func.func @transform_5(%arg0: i32) -> (i32, i32) {
    %c0_i32 = arith.constant 0 : i32
    %c0_i32_0 = arith.constant 0 : i32
    %c0_i32_1 = arith.constant 0 : i32
    return %c0_i32, %c0_i32_0 : i32, i32
  }
  func.func @transform_6(%arg0: i32) -> (i32, i32) {
    %c0_i32 = arith.constant 0 : i32
    %c0_i32_0 = arith.constant 0 : i32
    %c0_i32_1 = arith.constant 0 : i32
    return %c0_i32, %c0_i32_0 : i32, i32
  }
  func.func @transform_7(%arg0: i32) -> (i32, i32, i32) {
    %c0_i32 = arith.constant 0 : i32
    %c0_i32_0 = arith.constant 0 : i32
    %c0_i32_1 = arith.constant 0 : i32
    return %arg0, %c0_i32, %c0_i32_0 : i32, i32, i32
  }
}

</mosaic_0001>

<llo_original>
// kernel: net_forward.1
$region0: #{net_forward.1}
  #allocation0 [shape = 'u32[]', space=smem, size = 0x4, offset = 0x4, fixed_abs, tag = 'smem constant byte address 0x4 - core index']
  #allocation1 [shape = 'u32[144,128]{1,0:T(1,128)}', space=vmem, size = 0x12000, scoped, tag = 'internal scratch']
  #allocation2 [shape = 'f32[1,1]{1,0:T(1,128)S(6)}', space=smem, size = 0x200, scoped, tag = 'scoped memory for net_forward.1']
  %s0 = inlined_call_operand.vmem [shape: bf16[2,4,32,256], index: 0, kind: input, shape index: {}]
  %s1 = inlined_call_operand.vmem [shape: bf16[32,32], index: 1, kind: input, shape index: {}]
  %s2 = inlined_call_operand.vmem [shape: f32[32,1], index: 2, kind: input, shape index: {}]
  %s3 = inlined_call_operand.vmem [shape: bf16[32,256,128], index: 3, kind: input, shape index: {}]
  %s4 = inlined_call_operand.vmem [shape: f32[1,128], index: 4, kind: input, shape index: {}]
  %s5 = inlined_call_operand.vmem [shape: f32[1,128], index: 5, kind: input, shape index: {}]
  %s6 = inlined_call_operand.<no memory space> [shape: f32[1,1], index: 6, kind: input, shape index: {}]
  %s7 = inlined_call_operand.vmem [shape: f32[2,1,1], index: 7, kind: output, shape index: {}]
  %s8 = sld [smem:[#allocation0]]
  $region61: #{net_forward.1} parent=0
    _
  %s10 = ssub.s32 1, %s8
  %s11 = scalar_select 0, %s10, %s8
  %12 = sst [smem:[#allocation2]] %s6
  loop: start=0, step=1, limit=4
  $region2: #{net_forward.1} parent=0 // loop_pre_header
    _
  $region3: #{net_forward.1} parent=0 // loop_header
    %s14 = sphi 0, %s18
    %p15 = scmp.ge.s32.totalorder %s14, 4
    %s24 = sphi 0, %s26
    %s27 = sphi 0, %s24
    %s28 = sphi 0, %s27
    %s44 = sphi 0, %s28
    %s48 = sphi 0, %s48
    %s50 = sphi 0, %s48
    %s51 = sphi 0, %s50
    %s65 = sphi 0, %s51
    %s69 = sphi 0, %s69
    %s71 = sphi 0, %s69
    %s72 = sphi 0, %s71
    %s86 = sphi 0, %s72
    %s90 = sphi 0, %s90
    %s92 = sphi 0, %s90
    %s93 = sphi 0, %s92
    %s107 = sphi 0, %s93
    %s111 = sphi 0, %s111
    %s113 = sphi 0, %s111
    %s114 = sphi 0, %s113
    %s128 = sphi 0, %s114
    %s132 = sphi 0, %s132
    %s134 = sphi 0, %s132
    %s135 = sphi 0, %s134
    %s149 = sphi 0, %s135
    %s153 = sphi 0, %s153
    %s155 = sphi 0, %s153
    %s156 = sphi 0, %s155
    %s170 = sphi 0, %s156
    %s176 = sphi 0, %s178
    %s179 = sphi 0, %s176
    %s180 = sphi 0, %s179
    %s196 = sphi 0, %s180
  $region4: #{net_forward.1} parent=0 // loop_header_branch
    %17 = sbr.rel (%p15) target = $region8
  $region5: #{net_forward.1} parent=0 // loop_body
    %s19 = ssub.s32 %s14, 1
    %s20 = ssub.s32 %s14, 2
    %s21 = sadd.s32 %s14, 1
    %s22 = ssub.s32 %s14, %s21
    %p23 = scmp.eq.s32.totalorder %s22, 0
    %s25 = sadd.s32 %s24, 1
    %s26 = scalar_select %p23, %s24, %s25
    %p29 = pneg %p23
    %p30 = scmp.eq.s32.totalorder %s14, 1
    %p31 = por %p29, %p30
    %p32 = scmp.ne.s32.totalorder %s24, %s27
    %p33 = scmp.eq.s32.totalorder %s14, 0
    %p34 = por %p32, %p33
    %p35 = scmp.ne.s32.totalorder %s24, %s27
    %p36 = scmp.eq.s32.totalorder %s19, 1
    %p37 = por %p35, %p36
    %p38 = scmp.ne.s32.totalorder %s27, %s28
    %p39 = scmp.eq.s32.totalorder %s19, 0
    %p40 = por %p38, %p39
    %p41 = scmp.ne.s32.totalorder %s27, %s28
    %p42 = scmp.eq.s32.totalorder %s20, 1
    %p43 = por %p41, %p42
    %p45 = scmp.ne.s32.totalorder %s28, %s44
    %p46 = scmp.eq.s32.totalorder %s20, 0
    %p47 = por %p45, %p46
    %s49 = sadd.s32 %s48, 1
    %p52 = scmp.eq.s32.totalorder %s14, 1
    %p53 = scmp.ne.s32.totalorder %s48, %s50
    %p54 = scmp.eq.s32.totalorder %s14, 0
    %p55 = por %p53, %p54
    %p56 = scmp.ne.s32.totalorder %s48, %s50
    %p57 = scmp.eq.s32.totalorder %s19, 1
    %p58 = por %p56, %p57
    %p59 = scmp.ne.s32.totalorder %s50, %s51
    %p60 = scmp.eq.s32.totalorder %s19, 0
    %p61 = por %p59, %p60
    %p62 = scmp.ne.s32.totalorder %s50, %s51
    %p63 = scmp.eq.s32.totalorder %s20, 1
    %p64 = por %p62, %p63
    %p66 = scmp.ne.s32.totalorder %s51, %s65
    %p67 = scmp.eq.s32.totalorder %s20, 0
    %p68 = por %p66, %p67
    %s70 = sadd.s32 %s69, 1
    %p73 = scmp.eq.s32.totalorder %s14, 1
    %p74 = scmp.ne.s32.totalorder %s69, %s71
    %p75 = scmp.eq.s32.totalorder %s14, 0
    %p76 = por %p74, %p75
    %p77 = scmp.ne.s32.totalorder %s69, %s71
    %p78 = scmp.eq.s32.totalorder %s19, 1
    %p79 = por %p77, %p78
    %p80 = scmp.ne.s32.totalorder %s71, %s72
    %p81 = scmp.eq.s32.totalorder %s19, 0
    %p82 = por %p80, %p81
    %p83 = scmp.ne.s32.totalorder %s71, %s72
    %p84 = scmp.eq.s32.totalorder %s20, 1
    %p85 = por %p83, %p84
    %p87 = scmp.ne.s32.totalorder %s72, %s86
    %p88 = scmp.eq.s32.totalorder %s20, 0
    %p89 = por %p87, %p88
    %s91 = sadd.s32 %s90, 1
    %p94 = scmp.eq.s32.totalorder %s14, 1
    %p95 = scmp.ne.s32.totalorder %s90, %s92
    %p96 = scmp.eq.s32.totalorder %s14, 0
    %p97 = por %p95, %p96
    %p98 = scmp.ne.s32.totalorder %s90, %s92
    %p99 = scmp.eq.s32.totalorder %s19, 1
    %p100 = por %p98, %p99
    %p101 = scmp.ne.s32.totalorder %s92, %s93
    %p102 = scmp.eq.s32.totalorder %s19, 0
    %p103 = por %p101, %p102
    %p104 = scmp.ne.s32.totalorder %s92, %s93
    %p105 = scmp.eq.s32.totalorder %s20, 1
    %p106 = por %p104, %p105
    %p108 = scmp.ne.s32.totalorder %s93, %s107
    %p109 = scmp.eq.s32.totalorder %s20, 0
    %p110 = por %p108, %p109
    %s112 = sadd.s32 %s111, 1
    %p115 = scmp.eq.s32.totalorder %s14, 1
    %p116 = scmp.ne.s32.totalorder %s111, %s113
    %p117 = scmp.eq.s32.totalorder %s14, 0
    %p118 = por %p116, %p117
    %p119 = scmp.ne.s32.totalorder %s111, %s113
    %p120 = scmp.eq.s32.totalorder %s19, 1
    %p121 = por %p119, %p120
    %p122 = scmp.ne.s32.totalorder %s113, %s114
    %p123 = scmp.eq.s32.totalorder %s19, 0
    %p124 = por %p122, %p123
    %p125 = scmp.ne.s32.totalorder %s113, %s114
    %p126 = scmp.eq.s32.totalorder %s20, 1
    %p127 = por %p125, %p126
    %p129 = scmp.ne.s32.totalorder %s114, %s128
    %p130 = scmp.eq.s32.totalorder %s20, 0
    %p131 = por %p129, %p130
    %s133 = sadd.s32 %s132, 1
    %p136 = scmp.eq.s32.totalorder %s14, 1
    %p137 = scmp.ne.s32.totalorder %s132, %s134
    %p138 = scmp.eq.s32.totalorder %s14, 0
    %p139 = por %p137, %p138
    %p140 = scmp.ne.s32.totalorder %s132, %s134
    %p141 = scmp.eq.s32.totalorder %s19, 1
    %p142 = por %p140, %p141
    %p143 = scmp.ne.s32.totalorder %s134, %s135
    %p144 = scmp.eq.s32.totalorder %s19, 0
    %p145 = por %p143, %p144
    %p146 = scmp.ne.s32.totalorder %s134, %s135
    %p147 = scmp.eq.s32.totalorder %s20, 1
    %p148 = por %p146, %p147
    %p150 = scmp.ne.s32.totalorder %s135, %s149
    %p151 = scmp.eq.s32.totalorder %s20, 0
    %p152 = por %p150, %p151
    %s154 = sadd.s32 %s153, 1
    %p157 = scmp.eq.s32.totalorder %s14, 1
    %p158 = scmp.ne.s32.totalorder %s153, %s155
    %p159 = scmp.eq.s32.totalorder %s14, 0
    %p160 = por %p158, %p159
    %p161 = scmp.ne.s32.totalorder %s153, %s155
    %p162 = scmp.eq.s32.totalorder %s19, 1
    %p163 = por %p161, %p162
    %p164 = scmp.ne.s32.totalorder %s155, %s156
    %p165 = scmp.eq.s32.totalorder %s19, 0
    %p166 = por %p164, %p165
    %p167 = scmp.ne.s32.totalorder %s155, %s156
    %p168 = scmp.eq.s32.totalorder %s20, 1
    %p169 = por %p167, %p168
    %p171 = scmp.ne.s32.totalorder %s156, %s170
    %p172 = scmp.eq.s32.totalorder %s20, 0
    %p173 = por %p171, %p172
    %s174 = ssub.s32 %s14, %s21
    %p175 = scmp.eq.s32.totalorder %s174, 0
    %s177 = sadd.s32 %s176, 1
    %s178 = scalar_select %p175, %s176, %s177
    %p181 = pneg %p175
    %p182 = scmp.eq.s32.totalorder %s14, 1
    %p183 = por %p181, %p182
    %p184 = scmp.ne.s32.totalorder %s176, %s179
    %p185 = scmp.eq.s32.totalorder %s14, 0
    %p186 = por %p184, %p185
    %p187 = scmp.ne.s32.totalorder %s176, %s179
    %p188 = scmp.eq.s32.totalorder %s19, 1
    %p189 = por %p187, %p188
    %p190 = scmp.ne.s32.totalorder %s179, %s180
    %p191 = scmp.eq.s32.totalorder %s19, 0
    %p192 = por %p190, %p191
    %p193 = scmp.ne.s32.totalorder %s179, %s180
    %p194 = scmp.eq.s32.totalorder %s20, 1
    %p195 = por %p193, %p194
    %p197 = scmp.ne.s32.totalorder %s180, %s196
    %p198 = scmp.eq.s32.totalorder %s20, 0
    %p199 = por %p197, %p198
    %p200 = scmp.le.s32.totalorder 1, %s14
    %p201 = scmp.lt.s32.totalorder %s14, 3
    %p202 = pnand %p200, %p201
    %p203 = pneg %p202
    // Predicated region
    $region9: #{net_forward.1} parent=5 // pred_check
      _
    $region10: #{net_forward.1} parent=5 // pred_check_branch
      %205 = sbr.rel (%p202) target = $region12
    $region11: #{net_forward.1} parent=5 // pred_region
      %s206 = ssub.s32 %s14, 1
      // Predicated region
      $region13: #{net_forward.1} parent=11 // pred_check
        %p207 = pneg %p61
      $region14: #{net_forward.1} parent=11 // pred_check_branch
        %209 = sbr.rel (%p207) target = $region16
      $region15: #{net_forward.1} parent=11 // pred_region
        _
      $region16: #{net_forward.1} parent=11 // pred_fallthru
        _
      // Predicated region
      $region17: #{net_forward.1} parent=11 // pred_check
        %p210 = pneg %p82
      $region18: #{net_forward.1} parent=11 // pred_check_branch
        %212 = sbr.rel (%p210) target = $region20
      $region19: #{net_forward.1} parent=11 // pred_region
        _
      $region20: #{net_forward.1} parent=11 // pred_fallthru
        _
      // Predicated region
      $region21: #{net_forward.1} parent=11 // pred_check
        %p213 = pneg %p103
      $region22: #{net_forward.1} parent=11 // pred_check_branch
        %215 = sbr.rel (%p213) target = $region24
      $region23: #{net_forward.1} parent=11 // pred_region
        _
      $region24: #{net_forward.1} parent=11 // pred_fallthru
        _
      // Predicated region
      $region25: #{net_forward.1} parent=11 // pred_check
        %p216 = pneg %p124
      $region26: #{net_forward.1} parent=11 // pred_check_branch
        %218 = sbr.rel (%p216) target = $region28
      $region27: #{net_forward.1} parent=11 // pred_region
        _
      $region28: #{net_forward.1} parent=11 // pred_fallthru
        _
      // Predicated region
      $region29: #{net_forward.1} parent=11 // pred_check
        %p219 = pneg %p145
      $region30: #{net_forward.1} parent=11 // pred_check_branch
        %221 = sbr.rel (%p219) target = $region32
      $region31: #{net_forward.1} parent=11 // pred_region
        _
      $region32: #{net_forward.1} parent=11 // pred_fallthru
        _
      // Predicated region
      $region33: #{net_forward.1} parent=11 // pred_check
        %p222 = pneg %p166
      $region34: #{net_forward.1} parent=11 // pred_check_branch
        %224 = sbr.rel (%p222) target = $region36
      $region35: #{net_forward.1} parent=11 // pred_region
        _
      $region36: #{net_forward.1} parent=11 // pred_fallthru
        _
    $region12: #{net_forward.1} parent=5 // pred_fallthru
      _
    %p225 = scmp.lt.s32.totalorder %s14, 2
    // Predicated region
    $region37: #{net_forward.1} parent=5 // pred_check
      %p226 = pneg %p225
    $region38: #{net_forward.1} parent=5 // pred_check_branch
      %228 = sbr.rel (%p226) target = $region40
    $region39: #{net_forward.1} parent=5 // pred_region
      // Predicated region
      $region41: #{net_forward.1} parent=39 // pred_check
        %p229 = pneg %p34
      $region42: #{net_forward.1} parent=39 // pred_check_branch
        %231 = sbr.rel (%p229) target = $region44
      $region43: #{net_forward.1} parent=39 // pred_region
        %p232 = scmp.lt.s32.totalorder %s14, 1
        %s233 = scalar_select %p232, %s14, 1
        %s234 = smul.addr %s233, 32
        %s235 = smul.addr %s234, 4
        %s236 = scalar_lea.vmem %s0, %s235
      $region44: #{net_forward.1} parent=39 // pred_fallthru
        _
    $region40: #{net_forward.1} parent=5 // pred_fallthru
      _
    %p237 = scmp.le.s32.totalorder 1, %s14
    %p238 = scmp.lt.s32.totalorder %s14, 3
    %p239 = pnand %p237, %p238
    %p240 = pneg %p239
    // Predicated region
    $region45: #{net_forward.1} parent=5 // pred_check
      _
    $region46: #{net_forward.1} parent=5 // pred_check_branch
      %242 = sbr.rel (%p239) target = $region48
    $region47: #{net_forward.1} parent=5 // pred_region
      %s243 = ssub.s32 %s14, 1
      %p244 = scmp.lt.s32.totalorder %s19, 1
      %s245 = scalar_select %p244, %s19, 1
      %s246 = smul.addr %s245, 32
      %s247 = smul.addr %s246, 4
      %s248 = scalar_lea.vmem %s0, %s247
      %p249 = pneg %p40
      %p250 = pneg %p37
      %p251 = pneg %p61
      %p252 = pneg %p58
      %p253 = pneg %p82
      %p254 = pneg %p79
      %p255 = pneg %p103
      %p256 = pneg %p100
      %p257 = pneg %p124
      %p258 = pneg %p121
      %p259 = pneg %p145
      %p260 = pneg %p142
      %p261 = pneg %p166
      %p262 = pneg %p163
      %p263 = pneg %p192
      %p264 = pneg %p189
      %p265 = scmp.lt.s32.totalorder %s19, 1
      %s266 = scalar_select %p265, %s19, 1
      %s267 = scalar_lea.vmem %s7, %s266
      %p268 = scmp.lt.s32.totalorder %s19, 1
      %s269 = scalar_select %p268, %s19, 1
      %s270 = smul.addr %s269, 32
      %s271 = smul.addr %s270, 4
      %s272 = scalar_lea.vmem %s0, %s271
      %p273 = scmp.lt.s32.totalorder %s19, 1
      %s274 = scalar_select %p273, %s19, 1
      %s275 = scalar_lea.vmem %s7, %s274
      %v277 = vld [vmem:[%s1] sm:$0xf]
      %v278 = vld [vmem:[%s1 + $0x4] sm:$0xf]
      %v279 = vld [vmem:[%s1 + $0x8] sm:$0xf]
      %v280 = vld [vmem:[%s1 + $0xc] sm:$0xf]
      %v281 = vld [vmem:[%s272] sm:$0xff]
      %v282 = vld [vmem:[%s272 + $0x8] sm:$0xff]
      %v283 = vld [vmem:[%s272 + $0x10] sm:$0xff]
      %v284 = vld [vmem:[%s272 + $0x18] sm:$0xff]
      %v289 = vunpack.c.l.b16 %v277
      %v290 = vunpack.c.l.b16 %v278
      %v291 = vunpack.c.l.b16 %v279
      %v292 = vunpack.c.l.b16 %v280
      %v293 = vpack.c.b16 %v290, %v289
      %v294 = vpack.c.b16 %v292, %v291
      %v299 = vunpack.c.l.b16 %v281
      %v300 = vunpack.c.h.b16 %v281
      %v301 = vunpack.c.l.b16 %v282
      %v302 = vunpack.c.h.b16 %v282
      %v303 = vunpack.c.l.b16 %v283
      %v304 = vunpack.c.h.b16 %v283
      %v305 = vunpack.c.l.b16 %v284
      %v306 = vunpack.c.h.b16 %v284
      %v307 = vpack.c.b16 %v301, %v299
      %v308 = vpack.c.b16 %v302, %v300
      %v309 = vpack.c.b16 %v305, %v303
      %v310 = vpack.c.b16 %v306, %v304
      %vm315 = vcmask 261120
      %v317 = vsel %vm315, %v293, 0
      %v320 = vsel %vm315, %v294, 0
      %322 = vmatprep.subr.bf16.mxu0 %v308
      %323 = vmatpush1.bf16.msra.mxu0 %v307
      %324 = vmatprep.subr.bf16.mxu0 %v310
      %325 = vmatpush1.bf16.msra.mxu0 %v309
      %326 = vmatprep.subr.bf16.mxu0 0
      %327 = vmatpush1.bf16.msra.mxu0 0
      %328 = vmatprep.subr.bf16.mxu0 0
      %329 = vmatpush1.bf16.msra.mxu0 0
      %330 = vmatprep.subr.bf16.mxu0 0
      %331 = vmatpush1.bf16.msra.mxu0 0
      %332 = vmatprep.subr.bf16.mxu0 0
      %333 = vmatpush1.bf16.msra.mxu0 0
      %334 = vmatprep.subr.bf16.mxu0 0
      %335 = vmatpush1.bf16.msra.mxu0 0
      %336 = vmatprep.subr.bf16.mxu0 0
      %337 = vmatpush1.bf16.msra.mxu0 0
      %338 = vmatprep.subr.bf16.mxu0 0
      %339 = vmatpush1.bf16.msra.mxu0 0
      %340 = vmatprep.subr.bf16.mxu0 0
      %341 = vmatpush1.bf16.msra.mxu0 0
      %342 = vmatprep.subr.bf16.mxu0 0
      %343 = vmatpush1.bf16.msra.mxu0 0
      %344 = vmatprep.subr.bf16.mxu0 0
      %345 = vmatpush1.bf16.msra.mxu0 0
      %346 = vmatprep.subr.bf16.mxu0 0
      %347 = vmatpush1.bf16.msra.mxu0 0
      %348 = vmatprep.subr.bf16.mxu0 0
      %349 = vmatpush1.bf16.msra.mxu0 0
      %350 = vmatprep.subr.bf16.mxu0 0
      %351 = vmatpush1.bf16.msra.mxu0 0
      %352 = vmatprep.subr.bf16.mxu0 0
      %353 = vmatpush1.bf16.msra.mxu0 0
      %354 = vmatprep.mubr.bf16.mxu0 0
      %355 = vmatmul.mubr.bf16.gmra.mrb[0].mxu0 %v317
      %v356 = vpop.f32.mrb[0].mxu0
      %v357 = vadd.f32 0.0, %v356
      %v358 = vpop.f32.mrb[0].mxu0
      %v359 = vadd.f32 0.0, %v358
      %v360 = vpop.f32.mrb[0].mxu0
      %v361 = vadd.f32 0.0, %v360
      %v362 = vpop.f32.mrb[0].mxu0
      %v363 = vadd.f32 0.0, %v362
      %364 = vmatprep.mubr.bf16.mxu0 0
      %365 = vmatmul.mubr.bf16.gmra.mrb[0].mxu0 %v320
      %v366 = vpop.f32.mrb[0].mxu0
      %v367 = vadd.f32 0.0, %v366
      %v368 = vpop.f32.mrb[0].mxu0
      %v369 = vadd.f32 0.0, %v368
      %v370 = vpop.f32.mrb[0].mxu0
      %v371 = vadd.f32 0.0, %v370
      %v372 = vpop.f32.mrb[0].mxu0
      %v373 = vadd.f32 0.0, %v372
      %374 = vdwg.mxu0
      %s375 = scalar_lea.vmem %s272, 32
      %v376 = vld [vmem:[%s375] sm:$0xff]
      %v377 = vld [vmem:[%s375 + $0x8] sm:$0xff]
      %v378 = vld [vmem:[%s375 + $0x10] sm:$0xff]
      %v379 = vld [vmem:[%s375 + $0x18] sm:$0xff]
      %v384 = vunpack.c.l.b16 %v376
      %v385 = vunpack.c.h.b16 %v376
      %v386 = vunpack.c.l.b16 %v377
      %v387 = vunpack.c.h.b16 %v377
      %v388 = vunpack.c.l.b16 %v378
      %v389 = vunpack.c.h.b16 %v378
      %v390 = vunpack.c.l.b16 %v379
      %v391 = vunpack.c.h.b16 %v379
      %v392 = vpack.c.b16 %v386, %v384
      %v393 = vpack.c.b16 %v387, %v385
      %v394 = vpack.c.b16 %v390, %v388
      %v395 = vpack.c.b16 %v391, %v389
      %400 = vmatprep.subr.bf16.mxu0 %v393
      %401 = vmatpush1.bf16.msra.mxu0 %v392
      %402 = vmatprep.subr.bf16.mxu0 %v395
      %403 = vmatpush1.bf16.msra.mxu0 %v394
      %404 = vmatprep.subr.bf16.mxu0 0
      %405 = vmatpush1.bf16.msra.mxu0 0
      %406 = vmatprep.subr.bf16.mxu0 0
      %407 = vmatpush1.bf16.msra.mxu0 0
      %408 = vmatprep.subr.bf16.mxu0 0
      %409 = vmatpush1.bf16.msra.mxu0 0
      %410 = vmatprep.subr.bf16.mxu0 0
      %411 = vmatpush1.bf16.msra.mxu0 0
      %412 = vmatprep.subr.bf16.mxu0 0
      %413 = vmatpush1.bf16.msra.mxu0 0
      %414 = vmatprep.subr.bf16.mxu0 0
      %415 = vmatpush1.bf16.msra.mxu0 0
      %416 = vmatprep.subr.bf16.mxu0 0
      %417 = vmatpush1.bf16.msra.mxu0 0
      %418 = vmatprep.subr.bf16.mxu0 0
      %419 = vmatpush1.bf16.msra.mxu0 0
      %420 = vmatprep.subr.bf16.mxu0 0
      %421 = vmatpush1.bf16.msra.mxu0 0
      %422 = vmatprep.subr.bf16.mxu0 0
      %423 = vmatpush1.bf16.msra.mxu0 0
      %424 = vmatprep.subr.bf16.mxu0 0
      %425 = vmatpush1.bf16.msra.mxu0 0
      %426 = vmatprep.subr.bf16.mxu0 0
      %427 = vmatpush1.bf16.msra.mxu0 0
      %428 = vmatprep.subr.bf16.mxu0 0
      %429 = vmatpush1.bf16.msra.mxu0 0
      %430 = vmatprep.subr.bf16.mxu0 0
      %431 = vmatpush1.bf16.msra.mxu0 0
      %432 = vmatprep.mubr.bf16.mxu0 0
      %433 = vmatmul.mubr.bf16.gmra.mrb[0].mxu0 %v317
      %v434 = vpop.f32.mrb[0].mxu0
      %v435 = vadd.f32 0.0, %v434
      %v436 = vpop.f32.mrb[0].mxu0
      %v437 = vadd.f32 0.0, %v436
      %v438 = vpop.f32.mrb[0].mxu0
      %v439 = vadd.f32 0.0, %v438
      %v440 = vpop.f32.mrb[0].mxu0
      %v441 = vadd.f32 0.0, %v440
      %442 = vmatprep.mubr.bf16.mxu0 0
      %443 = vmatmul.mubr.bf16.gmra.mrb[0].mxu0 %v320
      %v444 = vpop.f32.mrb[0].mxu0
      %v445 = vadd.f32 0.0, %v444
      %v446 = vpop.f32.mrb[0].mxu0
      %v447 = vadd.f32 0.0, %v446
      %v448 = vpop.f32.mrb[0].mxu0
      %v449 = vadd.f32 0.0, %v448
      %v450 = vpop.f32.mrb[0].mxu0
      %v451 = vadd.f32 0.0, %v450
      %452 = vdwg.mxu0
      %v453 = vmax.f32 %v357, %v435
      %v454 = vmax.f32 %v359, %v437
      %v455 = vmax.f32 %v361, %v439
      %v456 = vmax.f32 %v363, %v441
      %v457 = vmax.f32 %v367, %v445
      %v458 = vmax.f32 %v369, %v447
      %v459 = vmax.f32 %v371, %v449
      %v460 = vmax.f32 %v373, %v451
      %s461 = scalar_lea.vmem %s272, 64
      %v462 = vld [vmem:[%s461] sm:$0xff]
      %v463 = vld [vmem:[%s461 + $0x8] sm:$0xff]
      %v464 = vld [vmem:[%s461 + $0x10] sm:$0xff]
      %v465 = vld [vmem:[%s461 + $0x18] sm:$0xff]
      %v470 = vunpack.c.l.b16 %v462
      %v471 = vunpack.c.h.b16 %v462
      %v472 = vunpack.c.l.b16 %v463
      %v473 = vunpack.c.h.b16 %v463
      %v474 = vunpack.c.l.b16 %v464
      %v475 = vunpack.c.h.b16 %v464
      %v476 = vunpack.c.l.b16 %v465
      %v477 = vunpack.c.h.b16 %v465
      %v478 = vpack.c.b16 %v472, %v470
      %v479 = vpack.c.b16 %v473, %v471
      %v480 = vpack.c.b16 %v476, %v474
      %v481 = vpack.c.b16 %v477, %v475
      %486 = vmatprep.subr.bf16.mxu0 %v479
      %487 = vmatpush1.bf16.msra.mxu0 %v478
      %488 = vmatprep.subr.bf16.mxu0 %v481
      %489 = vmatpush1.bf16.msra.mxu0 %v480
      %490 = vmatprep.subr.bf16.mxu0 0
      %491 = vmatpush1.bf16.msra.mxu0 0
      %492 = vmatprep.subr.bf16.mxu0 0
      %493 = vmatpush1.bf16.msra.mxu0 0
      %494 = vmatprep.subr.bf16.mxu0 0
      %495 = vmatpush1.bf16.msra.mxu0 0
      %496 = vmatprep.subr.bf16.mxu0 0
      %497 = vmatpush1.bf16.msra.mxu0 0
      %498 = vmatprep.subr.bf16.mxu0 0
      %499 = vmatpush1.bf16.msra.mxu0 0
      %500 = vmatprep.subr.bf16.mxu0 0
      %501 = vmatpush1.bf16.msra.mxu0 0
      %502 = vmatprep.subr.bf16.mxu0 0
      %503 = vmatpush1.bf16.msra.mxu0 0
      %504 = vmatprep.subr.bf16.mxu0 0
      %505 = vmatpush1.bf16.msra.mxu0 0
      %506 = vmatprep.subr.bf16.mxu0 0
      %507 = vmatpush1.bf16.msra.mxu0 0
      %508 = vmatprep.subr.bf16.mxu0 0
      %509 = vmatpush1.bf16.msra.mxu0 0
      %510 = vmatprep.subr.bf16.mxu0 0
      %511 = vmatpush1.bf16.msra.mxu0 0
      %512 = vmatprep.subr.bf16.mxu0 0
      %513 = vmatpush1.bf16.msra.mxu0 0
      %514 = vmatprep.subr.bf16.mxu0 0
      %515 = vmatpush1.bf16.msra.mxu0 0
      %516 = vmatprep.subr.bf16.mxu0 0
      %517 = vmatpush1.bf16.msra.mxu0 0
      %518 = vmatprep.mubr.bf16.mxu0 0
      %519 = vmatmul.mubr.bf16.gmra.mrb[0].mxu0 %v317
      %v520 = vpop.f32.mrb[0].mxu0
      %v521 = vadd.f32 0.0, %v520
      %v522 = vpop.f32.mrb[0].mxu0
      %v523 = vadd.f32 0.0, %v522
      %v524 = vpop.f32.mrb[0].mxu0
      %v525 = vadd.f32 0.0, %v524
      %v526 = vpop.f32.mrb[0].mxu0
      %v527 = vadd.f32 0.0, %v526
      %528 = vmatprep.mubr.bf16.mxu0 0
      %529 = vmatmul.mubr.bf16.gmra.mrb[0].mxu0 %v320
      %v530 = vpop.f32.mrb[0].mxu0
      %v531 = vadd.f32 0.0, %v530
      %v532 = vpop.f32.mrb[0].mxu0
      %v533 = vadd.f32 0.0, %v532
      %v534 = vpop.f32.mrb[0].mxu0
      %v535 = vadd.f32 0.0, %v534
      %v536 = vpop.f32.mrb[0].mxu0
      %v537 = vadd.f32 0.0, %v536
      %538 = vdwg.mxu0
      %v539 = vmax.f32 %v453, %v521
      %v540 = vmax.f32 %v454, %v523
      %v541 = vmax.f32 %v455, %v525
      %v542 = vmax.f32 %v456, %v527
      %v543 = vmax.f32 %v457, %v531
      %v544 = vmax.f32 %v458, %v533
      %v545 = vmax.f32 %v459, %v535
      %v546 = vmax.f32 %v460, %v537
      %s547 = scalar_lea.vmem %s272, 96
      %v548 = vld [vmem:[%s547] sm:$0xff]
      %v549 = vld [vmem:[%s547 + $0x8] sm:$0xff]
      %v550 = vld [vmem:[%s547 + $0x10] sm:$0xff]
      %v551 = vld [vmem:[%s547 + $0x18] sm:$0xff]
      %v556 = vunpack.c.l.b16 %v548
      %v557 = vunpack.c.h.b16 %v548
      %v558 = vunpack.c.l.b16 %v549
      %v559 = vunpack.c.h.b16 %v549
      %v560 = vunpack.c.l.b16 %v550
      %v561 = vunpack.c.h.b16 %v550
      %v562 = vunpack.c.l.b16 %v551
      %v563 = vunpack.c.h.b16 %v551
      %v564 = vpack.c.b16 %v558, %v556
      %v565 = vpack.c.b16 %v559, %v557
      %v566 = vpack.c.b16 %v562, %v560
      %v567 = vpack.c.b16 %v563, %v561
      %572 = vmatprep.subr.bf16.mxu0 %v565
      %573 = vmatpush1.bf16.msra.mxu0 %v564
      %574 = vmatprep.subr.bf16.mxu0 %v567
      %575 = vmatpush1.bf16.msra.mxu0 %v566
      %576 = vmatprep.subr.bf16.mxu0 0
      %577 = vmatpush1.bf16.msra.mxu0 0
      %578 = vmatprep.subr.bf16.mxu0 0
      %579 = vmatpush1.bf16.msra.mxu0 0
      %580 = vmatprep.subr.bf16.mxu0 0
      %581 = vmatpush1.bf16.msra.mxu0 0
      %582 = vmatprep.subr.bf16.mxu0 0
      %583 = vmatpush1.bf16.msra.mxu0 0
      %584 = vmatprep.subr.bf16.mxu0 0
      %585 = vmatpush1.bf16.msra.mxu0 0
      %586 = vmatprep.subr.bf16.mxu0 0
      %587 = vmatpush1.bf16.msra.mxu0 0
      %588 = vmatprep.subr.bf16.mxu0 0
      %589 = vmatpush1.bf16.msra.mxu0 0
      %590 = vmatprep.subr.bf16.mxu0 0
      %591 = vmatpush1.bf16.msra.mxu0 0
      %592 = vmatprep.subr.bf16.mxu0 0
      %593 = vmatpush1.bf16.msra.mxu0 0
      %594 = vmatprep.subr.bf16.mxu0 0
      %595 = vmatpush1.bf16.msra.mxu0 0
      %596 = vmatprep.subr.bf16.mxu0 0
      %597 = vmatpush1.bf16.msra.mxu0 0
      %598 = vmatprep.subr.bf16.mxu0 0
      %599 = vmatpush1.bf16.msra.mxu0 0
      %600 = vmatprep.subr.bf16.mxu0 0
      %601 = vmatpush1.bf16.msra.mxu0 0
      %602 = vmatprep.subr.bf16.mxu0 0
      %603 = vmatpush1.bf16.msra.mxu0 0
      %604 = vmatprep.mubr.bf16.mxu0 0
      %605 = vmatmul.mubr.bf16.gmra.mrb[0].mxu0 %v317
      %v606 = vpop.f32.mrb[0].mxu0
      %v607 = vadd.f32 0.0, %v606
      %v608 = vpop.f32.mrb[0].mxu0
      %v609 = vadd.f32 0.0, %v608
      %v610 = vpop.f32.mrb[0].mxu0
      %v611 = vadd.f32 0.0, %v610
      %v612 = vpop.f32.mrb[0].mxu0
      %v613 = vadd.f32 0.0, %v612
      %614 = vmatprep.mubr.bf16.mxu0 0
      %615 = vmatmul.mubr.bf16.gmra.mrb[0].mxu0 %v320
      %v616 = vpop.f32.mrb[0].mxu0
      %v617 = vadd.f32 0.0, %v616
      %v618 = vpop.f32.mrb[0].mxu0
      %v619 = vadd.f32 0.0, %v618
      %v620 = vpop.f32.mrb[0].mxu0
      %v621 = vadd.f32 0.0, %v620
      %v622 = vpop.f32.mrb[0].mxu0
      %v623 = vadd.f32 0.0, %v622
      %624 = vdwg.mxu0
      %v625 = vmax.f32 %v539, %v607
      %v626 = vmax.f32 %v540, %v609
      %v627 = vmax.f32 %v541, %v611
      %v628 = vmax.f32 %v542, %v613
      %v629 = vmax.f32 %v543, %v617
      %v630 = vmax.f32 %v544, %v619
      %v631 = vmax.f32 %v545, %v621
      %v632 = vmax.f32 %v546, %v623
      %v633 = vld [vmem:[%s2] sm:$0xff]
      %v634 = vld [vmem:[%s2 + $0x8] sm:$0xff]
      %v635 = vld [vmem:[%s2 + $0x10] sm:$0xff]
      %v636 = vld [vmem:[%s2 + $0x18] sm:$0xff]
      %638 = vset.pattern.permute.xlu0 0
      %639 = vperm.xlu0 %638, %v633
      %v640 = vpop.permute.xlu0 %639
      %643 = vset.pattern.permute.xlu0 0
      %644 = vperm.xlu0 %643, %v634
      %v645 = vpop.permute.xlu0 %644
      %648 = vset.pattern.permute.xlu0 0
      %649 = vperm.xlu0 %648, %v635
      %v650 = vpop.permute.xlu0 %649
      %653 = vset.pattern.permute.xlu0 0
      %654 = vperm.xlu0 %653, %v636
      %v655 = vpop.permute.xlu0 %654
      %v657 = vadd.f32 %v625, %v640
      %v658 = vadd.f32 %v626, %v640
      %v659 = vadd.f32 %v627, %v645
      %v660 = vadd.f32 %v628, %v645
      %v661 = vadd.f32 %v629, %v650
      %v662 = vadd.f32 %v630, %v650
      %v663 = vadd.f32 %v631, %v655
      %v664 = vadd.f32 %v632, %v655
      %v665 = vmax.f32 %v657, 0.0
      %v666 = vmax.f32 %v658, 0.0
      %v667 = vmax.f32 %v659, 0.0
      %v668 = vmax.f32 %v660, 0.0
      %v669 = vmax.f32 %v661, 0.0
      %v670 = vmax.f32 %v662, 0.0
      %v671 = vmax.f32 %v663, 0.0
      %v672 = vmax.f32 %v664, 0.0
      %v673 = vpack.c.bf16 %v667, %v665
      %v674 = vpack.c.bf16 %v668, %v666
      %v675 = vpack.c.bf16 %v671, %v669
      %v676 = vpack.c.bf16 %v672, %v670
      %v677 = vld [vmem:[%s3] sm:$0xf]
      %v678 = vld [vmem:[%s3 + $0x4] sm:$0xf]
      %v679 = vld [vmem:[%s3 + $0x8] sm:$0xf]
      %v680 = vld [vmem:[%s3 + $0xc] sm:$0xf]
      %v681 = vld [vmem:[%s3 + $0x10] sm:$0xf]
      %v682 = vld [vmem:[%s3 + $0x14] sm:$0xf]
      %v683 = vld [vmem:[%s3 + $0x18] sm:$0xf]
      %v684 = vld [vmem:[%s3 + $0x1c] sm:$0xf]
      %v685 = vld [vmem:[%s3 + $0x20] sm:$0xf]
      %v686 = vld [vmem:[%s3 + $0x24] sm:$0xf]
      %v687 = vld [vmem:[%s3 + $0x28] sm:$0xf]
      %v688 = vld [vmem:[%s3 + $0x2c] sm:$0xf]
      %v689 = vld [vmem:[%s3 + $0x30] sm:$0xf]
      %v690 = vld [vmem:[%s3 + $0x34] sm:$0xf]
      %v691 = vld [vmem:[%s3 + $0x38] sm:$0xf]
      %v692 = vld [vmem:[%s3 + $0x3c] sm:$0xf]
      %v693 = vld [vmem:[%s3 + $0x40] sm:$0xf]
      %v694 = vld [vmem:[%s3 + $0x44] sm:$0xf]
      %v695 = vld [vmem:[%s3 + $0x48] sm:$0xf]
      %v696 = vld [vmem:[%s3 + $0x4c] sm:$0xf]
      %v697 = vld [vmem:[%s3 + $0x50] sm:$0xf]
      %v698 = vld [vmem:[%s3 + $0x54] sm:$0xf]
      %v699 = vld [vmem:[%s3 + $0x58] sm:$0xf]
      %v700 = vld [vmem:[%s3 + $0x5c] sm:$0xf]
      %v701 = vld [vmem:[%s3 + $0x60] sm:$0xf]
      %v702 = vld [vmem:[%s3 + $0x64] sm:$0xf]
      %v703 = vld [vmem:[%s3 + $0x68] sm:$0xf]
      %v704 = vld [vmem:[%s3 + $0x6c] sm:$0xf]
      %v705 = vld [vmem:[%s3 + $0x70] sm:$0xf]
      %v706 = vld [vmem:[%s3 + $0x74] sm:$0xf]
      %v707 = vld [vmem:[%s3 + $0x78] sm:$0xf]
      %v708 = vld [vmem:[%s3 + $0x7c] sm:$0xf]
      %s709 = scalar_lea.vmem %s3, 128
      %v710 = vld [vmem:[%s709] sm:$0xf]
      %v711 = vld [vmem:[%s709 + $0x4] sm:$0xf]
      %v712 = vld [vmem:[%s709 + $0x8] sm:$0xf]
      %v713 = vld [vmem:[%s709 + $0xc] sm:$0xf]
      %v714 = vld [vmem:[%s709 + $0x10] sm:$0xf]
      %v715 = vld [vmem:[%s709 + $0x14] sm:$0xf]
      %v716 = vld [vmem:[%s709 + $0x18] sm:$0xf]
      %v717 = vld [vmem:[%s709 + $0x1c] sm:$0xf]
      %v718 = vld [vmem:[%s709 + $0x20] sm:$0xf]
      %v719 = vld [vmem:[%s709 + $0x24] sm:$0xf]
      %v720 = vld [vmem:[%s709 + $0x28] sm:$0xf]
      %v721 = vld [vmem:[%s709 + $0x2c] sm:$0xf]
      %v722 = vld [vmem:[%s709 + $0x30] sm:$0xf]
      %v723 = vld [vmem:[%s709 + $0x34] sm:$0xf]
      %v724 = vld [vmem:[%s709 + $0x38] sm:$0xf]
      %v725 = vld [vmem:[%s709 + $0x3c] sm:$0xf]
      %v726 = vld [vmem:[%s709 + $0x40] sm:$0xf]
      %v727 = vld [vmem:[%s709 + $0x44] sm:$0xf]
      %v728 = vld [vmem:[%s709 + $0x48] sm:$0xf]
      %v729 = vld [vmem:[%s709 + $0x4c] sm:$0xf]
      %v730 = vld [vmem:[%s709 + $0x50] sm:$0xf]
      %v731 = vld [vmem:[%s709 + $0x54] sm:$0xf]
      %v732 = vld [vmem:[%s709 + $0x58] sm:$0xf]
      %v733 = vld [vmem:[%s709 + $0x5c] sm:$0xf]
      %v734 = vld [vmem:[%s709 + $0x60] sm:$0xf]
      %v735 = vld [vmem:[%s709 + $0x64] sm:$0xf]
      %v736 = vld [vmem:[%s709 + $0x68] sm:$0xf]
      %v737 = vld [vmem:[%s709 + $0x6c] sm:$0xf]
      %v738 = vld [vmem:[%s709 + $0x70] sm:$0xf]
      %v739 = vld [vmem:[%s709 + $0x74] sm:$0xf]
      %v740 = vld [vmem:[%s709 + $0x78] sm:$0xf]
      %v741 = vld [vmem:[%s709 + $0x7c] sm:$0xf]
      %v743 = vshrl.u32 %v673, 16
      %v746 = vshrl.u32 %v674, 16
      %v782 = vunpack.c.l.b16 %v710
      %v783 = vunpack.c.l.b16 %v711
      %v784 = vunpack.c.l.b16 %v712
      %v785 = vunpack.c.l.b16 %v713
      %v786 = vunpack.c.l.b16 %v714
      %v787 = vunpack.c.l.b16 %v715
      %v788 = vunpack.c.l.b16 %v716
      %v789 = vunpack.c.l.b16 %v717
      %v790 = vunpack.c.l.b16 %v718
      %v791 = vunpack.c.l.b16 %v719
      %v792 = vunpack.c.l.b16 %v720
      %v793 = vunpack.c.l.b16 %v721
      %v794 = vunpack.c.l.b16 %v722
      %v795 = vunpack.c.l.b16 %v723
      %v796 = vunpack.c.l.b16 %v724
      %v797 = vunpack.c.l.b16 %v725
      %v798 = vunpack.c.l.b16 %v726
      %v799 = vunpack.c.l.b16 %v727
      %v800 = vunpack.c.l.b16 %v728
      %v801 = vunpack.c.l.b16 %v729
      %v802 = vunpack.c.l.b16 %v730
      %v803 = vunpack.c.l.b16 %v731
      %v804 = vunpack.c.l.b16 %v732
      %v805 = vunpack.c.l.b16 %v733
      %v806 = vunpack.c.l.b16 %v734
      %v807 = vunpack.c.l.b16 %v735
      %v808 = vunpack.c.l.b16 %v736
      %v809 = vunpack.c.l.b16 %v737
      %v810 = vunpack.c.l.b16 %v738
      %v811 = vunpack.c.l.b16 %v739
      %v812 = vunpack.c.l.b16 %v740
      %v813 = vunpack.c.l.b16 %v741
      %v814 = vpack.c.b16 %v783, %v782
      %v815 = vpack.c.b16 %v785, %v784
      %v816 = vpack.c.b16 %v787, %v786
      %v817 = vpack.c.b16 %v789, %v788
      %v818 = vpack.c.b16 %v791, %v790
      %v819 = vpack.c.b16 %v793, %v792
      %v820 = vpack.c.b16 %v795, %v794
      %v821 = vpack.c.b16 %v797, %v796
      %v822 = vpack.c.b16 %v799, %v798
      %v823 = vpack.c.b16 %v801, %v800
      %v824 = vpack.c.b16 %v803, %v802
      %v825 = vpack.c.b16 %v805, %v804
      %v826 = vpack.c.b16 %v807, %v806
      %v827 = vpack.c.b16 %v809, %v808
      %v828 = vpack.c.b16 %v811, %v810
      %v829 = vpack.c.b16 %v813, %v812
      %846 = vmatprep.subr.bf16.mxu0 0
      %847 = vmatpush1.bf16.msra.mxu0 %v814
      %848 = vmatprep.subr.bf16.mxu0 0
      %849 = vmatpush1.bf16.msra.mxu0 %v815
      %850 = vmatprep.subr.bf16.mxu0 0
      %851 = vmatpush1.bf16.msra.mxu0 %v816
      %852 = vmatprep.subr.bf16.mxu0 0
      %853 = vmatpush1.bf16.msra.mxu0 %v817
      %854 = vmatprep.subr.bf16.mxu0 0
      %855 = vmatpush1.bf16.msra.mxu0 %v818
      %856 = vmatprep.subr.bf16.mxu0 0
      %857 = vmatpush1.bf16.msra.mxu0 %v819
      %858 = vmatprep.subr.bf16.mxu0 0
      %859 = vmatpush1.bf16.msra.mxu0 %v820
      %860 = vmatprep.subr.bf16.mxu0 0
      %861 = vmatpush1.bf16.msra.mxu0 %v821
      %862 = vmatprep.subr.bf16.mxu0 0
      %863 = vmatpush1.bf16.msra.mxu0 %v822
      %864 = vmatprep.subr.bf16.mxu0 0
      %865 = vmatpush1.bf16.msra.mxu0 %v823
      %866 = vmatprep.subr.bf16.mxu0 0
      %867 = vmatpush1.bf16.msra.mxu0 %v824
      %868 = vmatprep.subr.bf16.mxu0 0
      %869 = vmatpush1.bf16.msra.mxu0 %v825
      %870 = vmatprep.subr.bf16.mxu0 0
      %871 = vmatpush1.bf16.msra.mxu0 %v826
      %872 = vmatprep.subr.bf16.mxu0 0
      %873 = vmatpush1.bf16.msra.mxu0 %v827
      %874 = vmatprep.subr.bf16.mxu0 0
      %875 = vmatpush1.bf16.msra.mxu0 %v828
      %876 = vmatprep.subr.bf16.mxu0 0
      %877 = vmatpush1.bf16.msra.mxu0 %v829
      %878 = vmatprep.mubr.bf16.mxu0 %v746
      %879 = vmatmul.mubr.bf16.gmra.mrb[0].mxu0 %v743
      %v880 = vpop.f32.mrb[0].mxu0
      %v881 = vadd.f32 0.0, %v880
      %v882 = vpop.f32.mrb[0].mxu0
      %v883 = vpop.f32.mrb[0].mxu0
      %v884 = vpop.f32.mrb[0].mxu0
      %885 = vdwg.mxu0
      %v918 = vunpack.c.l.b16 %v677
      %v919 = vunpack.c.l.b16 %v678
      %v920 = vunpack.c.l.b16 %v679
      %v921 = vunpack.c.l.b16 %v680
      %v922 = vunpack.c.l.b16 %v681
      %v923 = vunpack.c.l.b16 %v682
      %v924 = vunpack.c.l.b16 %v683
      %v925 = vunpack.c.l.b16 %v684
      %v926 = vunpack.c.l.b16 %v685
      %v927 = vunpack.c.l.b16 %v686
      %v928 = vunpack.c.l.b16 %v687
      %v929 = vunpack.c.l.b16 %v688
      %v930 = vunpack.c.l.b16 %v689
      %v931 = vunpack.c.l.b16 %v690
      %v932 = vunpack.c.l.b16 %v691
      %v933 = vunpack.c.l.b16 %v692
      %v934 = vunpack.c.l.b16 %v693
      %v935 = vunpack.c.l.b16 %v694
      %v936 = vunpack.c.l.b16 %v695
      %v937 = vunpack.c.l.b16 %v696
      %v938 = vunpack.c.l.b16 %v697
      %v939 = vunpack.c.l.b16 %v698
      %v940 = vunpack.c.l.b16 %v699
      %v941 = vunpack.c.l.b16 %v700
      %v942 = vunpack.c.l.b16 %v701
      %v943 = vunpack.c.l.b16 %v702
      %v944 = vunpack.c.l.b16 %v703
      %v945 = vunpack.c.l.b16 %v704
      %v946 = vunpack.c.l.b16 %v705
      %v947 = vunpack.c.l.b16 %v706
      %v948 = vunpack.c.l.b16 %v707
      %v949 = vunpack.c.l.b16 %v708
      %v950 = vpack.c.b16 %v919, %v918
      %v951 = vpack.c.b16 %v921, %v920
      %v952 = vpack.c.b16 %v923, %v922
      %v953 = vpack.c.b16 %v925, %v924
      %v954 = vpack.c.b16 %v927, %v926
      %v955 = vpack.c.b16 %v929, %v928
      %v956 = vpack.c.b16 %v931, %v930
      %v957 = vpack.c.b16 %v933, %v932
      %v958 = vpack.c.b16 %v935, %v934
      %v959 = vpack.c.b16 %v937, %v936
      %v960 = vpack.c.b16 %v939, %v938
      %v961 = vpack.c.b16 %v941, %v940
      %v962 = vpack.c.b16 %v943, %v942
      %v963 = vpack.c.b16 %v945, %v944
      %v964 = vpack.c.b16 %v947, %v946
      %v965 = vpack.c.b16 %v949, %v948
      %982 = vmatprep.subr.bf16.mxu0 0
      %983 = vmatpush1.bf16.msra.mxu0 %v950
      %984 = vmatprep.subr.bf16.mxu0 0
      %985 = vmatpush1.bf16.msra.mxu0 %v951
      %986 = vmatprep.subr.bf16.mxu0 0
      %987 = vmatpush1.bf16.msra.mxu0 %v952
      %988 = vmatprep.subr.bf16.mxu0 0
      %989 = vmatpush1.bf16.msra.mxu0 %v953
      %990 = vmatprep.subr.bf16.mxu0 0
      %991 = vmatpush1.bf16.msra.mxu0 %v954
      %992 = vmatprep.subr.bf16.mxu0 0
      %993 = vmatpush1.bf16.msra.mxu0 %v955
      %994 = vmatprep.subr.bf16.mxu0 0
      %995 = vmatpush1.bf16.msra.mxu0 %v956
      %996 = vmatprep.subr.bf16.mxu0 0
      %997 = vmatpush1.bf16.msra.mxu0 %v957
      %998 = vmatprep.subr.bf16.mxu0 0
      %999 = vmatpush1.bf16.msra.mxu0 %v958
      %1000 = vmatprep.subr.bf16.mxu0 0
      %1001 = vmatpush1.bf16.msra.mxu0 %v959
      %1002 = vmatprep.subr.bf16.mxu0 0
      %1003 = vmatpush1.bf16.msra.mxu0 %v960
      %1004 = vmatprep.subr.bf16.mxu0 0
      %1005 = vmatpush1.bf16.msra.mxu0 %v961
      %1006 = vmatprep.subr.bf16.mxu0 0
      %1007 = vmatpush1.bf16.msra.mxu0 %v962
      %1008 = vmatprep.subr.bf16.mxu0 0
      %1009 = vmatpush1.bf16.msra.mxu0 %v963
      %1010 = vmatprep.subr.bf16.mxu0 0
      %1011 = vmatpush1.bf16.msra.mxu0 %v964
      %1012 = vmatprep.subr.bf16.mxu0 0
      %1013 = vmatpush1.bf16.msra.mxu0 %v965
      %1014 = vmatprep.mubr.bf16.mxu0 %v674
      %1015 = vmatmul.mubr.bf16.gmra.mrb[0].mxu0 %v673
      %v1016 = vpop.f32.mrb[0].mxu0
      %v1017 = vadd.f32 %v881, %v1016
      %v1018 = vpop.f32.mrb[0].mxu0
      %v1019 = vpop.f32.mrb[0].mxu0
      %v1020 = vpop.f32.mrb[0].mxu0
      %1021 = vdwg.mxu0
      %s1022 = scalar_lea.vmem %s3, 256
      %v1023 = vld [vmem:[%s1022] sm:$0xf]
      %v1024 = vld [vmem:[%s1022 + $0x4] sm:$0xf]
      %v1025 = vld [vmem:[%s1022 + $0x8] sm:$0xf]
      %v1026 = vld [vmem:[%s1022 + $0xc] sm:$0xf]
      %v1027 = vld [vmem:[%s1022 + $0x10] sm:$0xf]
      %v1028 = vld [vmem:[%s1022 + $0x14] sm:$0xf]
      %v1029 = vld [vmem:[%s1022 + $0x18] sm:$0xf]
      %v1030 = vld [vmem:[%s1022 + $0x1c] sm:$0xf]
      %v1031 = vld [vmem:[%s1022 + $0x20] sm:$0xf]
      %v1032 = vld [vmem:[%s1022 + $0x24] sm:$0xf]
      %v1033 = vld [vmem:[%s1022 + $0x28] sm:$0xf]
      %v1034 = vld [vmem:[%s1022 + $0x2c] sm:$0xf]
      %v1035 = vld [vmem:[%s1022 + $0x30] sm:$0xf]
      %v1036 = vld [vmem:[%s1022 + $0x34] sm:$0xf]
      %v1037 = vld [vmem:[%s1022 + $0x38] sm:$0xf]
      %v1038 = vld [vmem:[%s1022 + $0x3c] sm:$0xf]
      %v1039 = vld [vmem:[%s1022 + $0x40] sm:$0xf]
      %v1040 = vld [vmem:[%s1022 + $0x44] sm:$0xf]
      %v1041 = vld [vmem:[%s1022 + $0x48] sm:$0xf]
      %v1042 = vld [vmem:[%s1022 + $0x4c] sm:$0xf]
      %v1043 = vld [vmem:[%s1022 + $0x50] sm:$0xf]
      %v1044 = vld [vmem:[%s1022 + $0x54] sm:$0xf]
      %v1045 = vld [vmem:[%s1022 + $0x58] sm:$0xf]
      %v1046 = vld [vmem:[%s1022 + $0x5c] sm:$0xf]
      %v1047 = vld [vmem:[%s1022 + $0x60] sm:$0xf]
      %v1048 = vld [vmem:[%s1022 + $0x64] sm:$0xf]
      %v1049 = vld [vmem:[%s1022 + $0x68] sm:$0xf]
      %v1050 = vld [vmem:[%s1022 + $0x6c] sm:$0xf]
      %v1051 = vld [vmem:[%s1022 + $0x70] sm:$0xf]
      %v1052 = vld [vmem:[%s1022 + $0x74] sm:$0xf]
      %v1053 = vld [vmem:[%s1022 + $0x78] sm:$0xf]
      %v1054 = vld [vmem:[%s1022 + $0x7c] sm:$0xf]
      %v1057 = vrot.slane %v673, 1
      %v1058 = vrot.slane %v674, 1
      %v1093 = vunpack.c.l.b16 %v1023
      %v1094 = vunpack.c.l.b16 %v1024
      %v1095 = vunpack.c.l.b16 %v1025
      %v1096 = vunpack.c.l.b16 %v1026
      %v1097 = vunpack.c.l.b16 %v1027
      %v1098 = vunpack.c.l.b16 %v1028
      %v1099 = vunpack.c.l.b16 %v1029
      %v1100 = vunpack.c.l.b16 %v1030
      %v1101 = vunpack.c.l.b16 %v1031
      %v1102 = vunpack.c.l.b16 %v1032
      %v1103 = vunpack.c.l.b16 %v1033
      %v1104 = vunpack.c.l.b16 %v1034
      %v1105 = vunpack.c.l.b16 %v1035
      %v1106 = vunpack.c.l.b16 %v1036
      %v1107 = vunpack.c.l.b16 %v1037
      %v1108 = vunpack.c.l.b16 %v1038
      %v1109 = vunpack.c.l.b16 %v1039
      %v1110 = vunpack.c.l.b16 %v1040
      %v1111 = vunpack.c.l.b16 %v1041
      %v1112 = vunpack.c.l.b16 %v1042
      %v1113 = vunpack.c.l.b16 %v1043
      %v1114 = vunpack.c.l.b16 %v1044
      %v1115 = vunpack.c.l.b16 %v1045
      %v1116 = vunpack.c.l.b16 %v1046
      %v1117 = vunpack.c.l.b16 %v1047
      %v1118 = vunpack.c.l.b16 %v1048
      %v1119 = vunpack.c.l.b16 %v1049
      %v1120 = vunpack.c.l.b16 %v1050
      %v1121 = vunpack.c.l.b16 %v1051
      %v1122 = vunpack.c.l.b16 %v1052
      %v1123 = vunpack.c.l.b16 %v1053
      %v1124 = vunpack.c.l.b16 %v1054
      %v1125 = vpack.c.b16 %v1094, %v1093
      %v1126 = vpack.c.b16 %v1096, %v1095
      %v1127 = vpack.c.b16 %v1098, %v1097
      %v1128 = vpack.c.b16 %v1100, %v1099
      %v1129 = vpack.c.b16 %v1102, %v1101
      %v1130 = vpack.c.b16 %v1104, %v1103
      %v1131 = vpack.c.b16 %v1106, %v1105
      %v1132 = vpack.c.b16 %v1108, %v1107
      %v1133 = vpack.c.b16 %v1110, %v1109
      %v1134 = vpack.c.b16 %v1112, %v1111
      %v1135 = vpack.c.b16 %v1114, %v1113
      %v1136 = vpack.c.b16 %v1116, %v1115
      %v1137 = vpack.c.b16 %v1118, %v1117
      %v1138 = vpack.c.b16 %v1120, %v1119
      %v1139 = vpack.c.b16 %v1122, %v1121
      %v1140 = vpack.c.b16 %v1124, %v1123
      %1157 = vmatprep.subr.bf16.mxu0 0
      %1158 = vmatpush1.bf16.msra.mxu0 %v1125
      %1159 = vmatprep.subr.bf16.mxu0 0
      %1160 = vmatpush1.bf16.msra.mxu0 %v1126
      %1161 = vmatprep.subr.bf16.mxu0 0
      %1162 = vmatpush1.bf16.msra.mxu0 %v1127
      %1163 = vmatprep.subr.bf16.mxu0 0
      %1164 = vmatpush1.bf16.msra.mxu0 %v1128
      %1165 = vmatprep.subr.bf16.mxu0 0
      %1166 = vmatpush1.bf16.msra.mxu0 %v1129
      %1167 = vmatprep.subr.bf16.mxu0 0
      %1168 = vmatpush1.bf16.msra.mxu0 %v1130
      %1169 = vmatprep.subr.bf16.mxu0 0
      %1170 = vmatpush1.bf16.msra.mxu0 %v1131
      %1171 = vmatprep.subr.bf16.mxu0 0
      %1172 = vmatpush1.bf16.msra.mxu0 %v1132
      %1173 = vmatprep.subr.bf16.mxu0 0
      %1174 = vmatpush1.bf16.msra.mxu0 %v1133
      %1175 = vmatprep.subr.bf16.mxu0 0
      %1176 = vmatpush1.bf16.msra.mxu0 %v1134
      %1177 = vmatprep.subr.bf16.mxu0 0
      %1178 = vmatpush1.bf16.msra.mxu0 %v1135
      %1179 = vmatprep.subr.bf16.mxu0 0
      %1180 = vmatpush1.bf16.msra.mxu0 %v1136
      %1181 = vmatprep.subr.bf16.mxu0 0
      %1182 = vmatpush1.bf16.msra.mxu0 %v1137
      %1183 = vmatprep.subr.bf16.mxu0 0
      %1184 = vmatpush1.bf16.msra.mxu0 %v1138
      %1185 = vmatprep.subr.bf16.mxu0 0
      %1186 = vmatpush1.bf16.msra.mxu0 %v1139
      %1187 = vmatprep.subr.bf16.mxu0 0
      %1188 = vmatpush1.bf16.msra.mxu0 %v1140
      %1189 = vmatprep.mubr.bf16.mxu0 %v1058
      %1190 = vmatmul.mubr.bf16.gmra.mrb[0].mxu0 %v1057
      %v1191 = vpop.f32.mrb[0].mxu0
      %v1192 = vadd.f32 0.0, %v1191
      %v1193 = vpop.f32.mrb[0].mxu0
      %v1194 = vpop.f32.mrb[0].mxu0
      %v1195 = vpop.f32.mrb[0].mxu0
      %1196 = vdwg.mxu0
      %v1197 = vadd.f32 %v1017, %v1192
      %s1198 = scalar_lea.vmem %s3, 384
      %v1199 = vld [vmem:[%s1198] sm:$0xf]
      %v1200 = vld [vmem:[%s1198 + $0x4] sm:$0xf]
      %v1201 = vld [vmem:[%s1198 + $0x8] sm:$0xf]
      %v1202 = vld [vmem:[%s1198 + $0xc] sm:$0xf]
      %v1203 = vld [vmem:[%s1198 + $0x10] sm:$0xf]
      %v1204 = vld [vmem:[%s1198 + $0x14] sm:$0xf]
      %v1205 = vld [vmem:[%s1198 + $0x18] sm:$0xf]
      %v1206 = vld [vmem:[%s1198 + $0x1c] sm:$0xf]
      %v1207 = vld [vmem:[%s1198 + $0x20] sm:$0xf]
      %v1208 = vld [vmem:[%s1198 + $0x24] sm:$0xf]
      %v1209 = vld [vmem:[%s1198 + $0x28] sm:$0xf]
      %v1210 = vld [vmem:[%s1198 + $0x2c] sm:$0xf]
      %v1211 = vld [vmem:[%s1198 + $0x30] sm:$0xf]
      %v1212 = vld [vmem:[%s1198 + $0x34] sm:$0xf]
      %v1213 = vld [vmem:[%s1198 + $0x38] sm:$0xf]
      %v1214 = vld [vmem:[%s1198 + $0x3c] sm:$0xf]
      %v1215 = vld [vmem:[%s1198 + $0x40] sm:$0xf]
      %v1216 = vld [vmem:[%s1198 + $0x44] sm:$0xf]
      %v1217 = vld [vmem:[%s1198 + $0x48] sm:$0xf]
      %v1218 = vld [vmem:[%s1198 + $0x4c] sm:$0xf]
      %v1219 = vld [vmem:[%s1198 + $0x50] sm:$0xf]
      %v1220 = vld [vmem:[%s1198 + $0x54] sm:$0xf]
      %v1221 = vld [vmem:[%s1198 + $0x58] sm:$0xf]
      %v1222 = vld [vmem:[%s1198 + $0x5c] sm:$0xf]
      %v1223 = vld [vmem:[%s1198 + $0x60] sm:$0xf]
      %v1224 = vld [vmem:[%s1198 + $0x64] sm:$0xf]
      %v1225 = vld [vmem:[%s1198 + $0x68] sm:$0xf]
      %v1226 = vld [vmem:[%s1198 + $0x6c] sm:$0xf]
      %v1227 = vld [vmem:[%s1198 + $0x70] sm:$0xf]
      %v1228 = vld [vmem:[%s1198 + $0x74] sm:$0xf]
      %v1229 = vld [vmem:[%s1198 + $0x78] sm:$0xf]
      %v1230 = vld [vmem:[%s1198 + $0x7c] sm:$0xf]
      %v1231 = vrot.slane %v743, 1
      %v1232 = vrot.slane %v746, 1
      %v1267 = vunpack.c.l.b16 %v1199
      %v1268 = vunpack.c.l.b16 %v1200
      %v1269 = vunpack.c.l.b16 %v1201
      %v1270 = vunpack.c.l.b16 %v1202
      %v1271 = vunpack.c.l.b16 %v1203
      %v1272 = vunpack.c.l.b16 %v1204
      %v1273 = vunpack.c.l.b16 %v1205
      %v1274 = vunpack.c.l.b16 %v1206
      %v1275 = vunpack.c.l.b16 %v1207
      %v1276 = vunpack.c.l.b16 %v1208
      %v1277 = vunpack.c.l.b16 %v1209
      %v1278 = vunpack.c.l.b16 %v1210
      %v1279 = vunpack.c.l.b16 %v1211
      %v1280 = vunpack.c.l.b16 %v1212
      %v1281 = vunpack.c.l.b16 %v1213
      %v1282 = vunpack.c.l.b16 %v1214
      %v1283 = vunpack.c.l.b16 %v1215
      %v1284 = vunpack.c.l.b16 %v1216
      %v1285 = vunpack.c.l.b16 %v1217
      %v1286 = vunpack.c.l.b16 %v1218
      %v1287 = vunpack.c.l.b16 %v1219
      %v1288 = vunpack.c.l.b16 %v1220
      %v1289 = vunpack.c.l.b16 %v1221
      %v1290 = vunpack.c.l.b16 %v1222
      %v1291 = vunpack.c.l.b16 %v1223
      %v1292 = vunpack.c.l.b16 %v1224
      %v1293 = vunpack.c.l.b16 %v1225
      %v1294 = vunpack.c.l.b16 %v1226
      %v1295 = vunpack.c.l.b16 %v1227
      %v1296 = vunpack.c.l.b16 %v1228
      %v1297 = vunpack.c.l.b16 %v1229
      %v1298 = vunpack.c.l.b16 %v1230
      %v1299 = vpack.c.b16 %v1268, %v1267
      %v1300 = vpack.c.b16 %v1270, %v1269
      %v1301 = vpack.c.b16 %v1272, %v1271
      %v1302 = vpack.c.b16 %v1274, %v1273
      %v1303 = vpack.c.b16 %v1276, %v1275
      %v1304 = vpack.c.b16 %v1278, %v1277
      %v1305 = vpack.c.b16 %v1280, %v1279
      %v1306 = vpack.c.b16 %v1282, %v1281
      %v1307 = vpack.c.b16 %v1284, %v1283
      %v1308 = vpack.c.b16 %v1286, %v1285
      %v1309 = vpack.c.b16 %v1288, %v1287
      %v1310 = vpack.c.b16 %v1290, %v1289
      %v1311 = vpack.c.b16 %v1292, %v1291
      %v1312 = vpack.c.b16 %v1294, %v1293
      %v1313 = vpack.c.b16 %v1296, %v1295
      %v1314 = vpack.c.b16 %v1298, %v1297
      %1331 = vmatprep.subr.bf16.mxu0 0
      %1332 = vmatpush1.bf16.msra.mxu0 %v1299
      %1333 = vmatprep.subr.bf16.mxu0 0
      %1334 = vmatpush1.bf16.msra.mxu0 %v1300
      %1335 = vmatprep.subr.bf16.mxu0 0
      %1336 = vmatpush1.bf16.msra.mxu0 %v1301
      %1337 = vmatprep.subr.bf16.mxu0 0
      %1338 = vmatpush1.bf16.msra.mxu0 %v1302
      %1339 = vmatprep.subr.bf16.mxu0 0
      %1340 = vmatpush1.bf16.msra.mxu0 %v1303
      %1341 = vmatprep.subr.bf16.mxu0 0
      %1342 = vmatpush1.bf16.msra.mxu0 %v1304
      %1343 = vmatprep.subr.bf16.mxu0 0
      %1344 = vmatpush1.bf16.msra.mxu0 %v1305
      %1345 = vmatprep.subr.bf16.mxu0 0
      %1346 = vmatpush1.bf16.msra.mxu0 %v1306
      %1347 = vmatprep.subr.bf16.mxu0 0
      %1348 = vmatpush1.bf16.msra.mxu0 %v1307
      %1349 = vmatprep.subr.bf16.mxu0 0
      %1350 = vmatpush1.bf16.msra.mxu0 %v1308
      %1351 = vmatprep.subr.bf16.mxu0 0
      %1352 = vmatpush1.bf16.msra.mxu0 %v1309
      %1353 = vmatprep.subr.bf16.mxu0 0
      %1354 = vmatpush1.bf16.msra.mxu0 %v1310
      %1355 = vmatprep.subr.bf16.mxu0 0
      %1356 = vmatpush1.bf16.msra.mxu0 %v1311
      %1357 = vmatprep.subr.bf16.mxu0 0
      %1358 = vmatpush1.bf16.msra.mxu0 %v1312
      %1359 = vmatprep.subr.bf16.mxu0 0
      %1360 = vmatpush1.bf16.msra.mxu0 %v1313
      %1361 = vmatprep.subr.bf16.mxu0 0
      %1362 = vmatpush1.bf16.msra.mxu0 %v1314
      %1363 = vmatprep.mubr.bf16.mxu0 %v1232
      %1364 = vmatmul.mubr.bf16.gmra.mrb[0].mxu0 %v1231
      %v1365 = vpop.f32.mrb[0].mxu0
      %v1366 = vadd.f32 0.0, %v1365
      %v1367 = vpop.f32.mrb[0].mxu0
      %v1368 = vpop.f32.mrb[0].mxu0
      %v1369 = vpop.f32.mrb[0].mxu0
      %1370 = vdwg.mxu0
      %v1371 = vadd.f32 %v1197, %v1366
      %s1372 = scalar_lea.vmem %s3, 512
      %v1373 = vld [vmem:[%s1372] sm:$0xf]
      %v1374 = vld [vmem:[%s1372 + $0x4] sm:$0xf]
      %v1375 = vld [vmem:[%s1372 + $0x8] sm:$0xf]
      %v1376 = vld [vmem:[%s1372 + $0xc] sm:$0xf]
      %v1377 = vld [vmem:[%s1372 + $0x10] sm:$0xf]
      %v1378 = vld [vmem:[%s1372 + $0x14] sm:$0xf]
      %v1379 = vld [vmem:[%s1372 + $0x18] sm:$0xf]
      %v1380 = vld [vmem:[%s1372 + $0x1c] sm:$0xf]
      %v1381 = vld [vmem:[%s1372 + $0x20] sm:$0xf]
      %v1382 = vld [vmem:[%s1372 + $0x24] sm:$0xf]
      %v1383 = vld [vmem:[%s1372 + $0x28] sm:$0xf]
      %v1384 = vld [vmem:[%s1372 + $0x2c] sm:$0xf]
      %v1385 = vld [vmem:[%s1372 + $0x30] sm:$0xf]
      %v1386 = vld [vmem:[%s1372 + $0x34] sm:$0xf]
      %v1387 = vld [vmem:[%s1372 + $0x38] sm:$0xf]
      %v1388 = vld [vmem:[%s1372 + $0x3c] sm:$0xf]
      %v1389 = vld [vmem:[%s1372 + $0x40] sm:$0xf]
      %v1390 = vld [vmem:[%s1372 + $0x44] sm:$0xf]
      %v1391 = vld [vmem:[%s1372 + $0x48] sm:$0xf]
      %v1392 = vld [vmem:[%s1372 + $0x4c] sm:$0xf]
      %v1393 = vld [vmem:[%s1372 + $0x50] sm:$0xf]
      %v1394 = vld [vmem:[%s1372 + $0x54] sm:$0xf]
      %v1395 = vld [vmem:[%s1372 + $0x58] sm:$0xf]
      %v1396 = vld [vmem:[%s1372 + $0x5c] sm:$0xf]
      %v1397 = vld [vmem:[%s1372 + $0x60] sm:$0xf]
      %v1398 = vld [vmem:[%s1372 + $0x64] sm:$0xf]
      %v1399 = vld [vmem:[%s1372 + $0x68] sm:$0xf]
      %v1400 = vld [vmem:[%s1372 + $0x6c] sm:$0xf]
      %v1401 = vld [vmem:[%s1372 + $0x70] sm:$0xf]
      %v1402 = vld [vmem:[%s1372 + $0x74] sm:$0xf]
      %v1403 = vld [vmem:[%s1372 + $0x78] sm:$0xf]
      %v1404 = vld [vmem:[%s1372 + $0x7c] sm:$0xf]
      %v1405 = vrot.slane %v673, 2
      %v1406 = vrot.slane %v674, 2
      %v1441 = vunpack.c.l.b16 %v1373
      %v1442 = vunpack.c.l.b16 %v1374
      %v1443 = vunpack.c.l.b16 %v1375
      %v1444 = vunpack.c.l.b16 %v1376
      %v1445 = vunpack.c.l.b16 %v1377
      %v1446 = vunpack.c.l.b16 %v1378
      %v1447 = vunpack.c.l.b16 %v1379
      %v1448 = vunpack.c.l.b16 %v1380
      %v1449 = vunpack.c.l.b16 %v1381
      %v1450 = vunpack.c.l.b16 %v1382
      %v1451 = vunpack.c.l.b16 %v1383
      %v1452 = vunpack.c.l.b16 %v1384
      %v1453 = vunpack.c.l.b16 %v1385
      %v1454 = vunpack.c.l.b16 %v1386
      %v1455 = vunpack.c.l.b16 %v1387
      %v1456 = vunpack.c.l.b16 %v1388
      %v1457 = vunpack.c.l.b16 %v1389
      %v1458 = vunpack.c.l.b16 %v1390
      %v1459 = vunpack.c.l.b16 %v1391
      %v1460 = vunpack.c.l.b16 %v1392
      %v1461 = vunpack.c.l.b16 %v1393
      %v1462 = vunpack.c.l.b16 %v1394
      %v1463 = vunpack.c.l.b16 %v1395
      %v1464 = vunpack.c.l.b16 %v1396
      %v1465 = vunpack.c.l.b16 %v1397
      %v1466 = vunpack.c.l.b16 %v1398
      %v1467 = vunpack.c.l.b16 %v1399
      %v1468 = vunpack.c.l.b16 %v1400
      %v1469 = vunpack.c.l.b16 %v1401
      %v1470 = vunpack.c.l.b16 %v1402
      %v1471 = vunpack.c.l.b16 %v1403
      %v1472 = vunpack.c.l.b16 %v1404
      %v1473 = vpack.c.b16 %v1442, %v1441
      %v1474 = vpack.c.b16 %v1444, %v1443
      %v1475 = vpack.c.b16 %v1446, %v1445
      %v1476 = vpack.c.b16 %v1448, %v1447
      %v1477 = vpack.c.b16 %v1450, %v1449
      %v1478 = vpack.c.b16 %v1452, %v1451
      %v1479 = vpack.c.b16 %v1454, %v1453
      %v1480 = vpack.c.b16 %v1456, %v1455
      %v1481 = vpack.c.b16 %v1458, %v1457
      %v1482 = vpack.c.b16 %v1460, %v1459
      %v1483 = vpack.c.b16 %v1462, %v1461
      %v1484 = vpack.c.b16 %v1464, %v1463
      %v1485 = vpack.c.b16 %v1466, %v1465
      %v1486 = vpack.c.b16 %v1468, %v1467
      %v1487 = vpack.c.b16 %v1470, %v1469
      %v1488 = vpack.c.b16 %v1472, %v1471
      %1505 = vmatprep.subr.bf16.mxu0 0
      %1506 = vmatpush1.bf16.msra.mxu0 %v1473
      %1507 = vmatprep.subr.bf16.mxu0 0
      %1508 = vmatpush1.bf16.msra.mxu0 %v1474
      %1509 = vmatprep.subr.bf16.mxu0 0
      %1510 = vmatpush1.bf16.msra.mxu0 %v1475
      %1511 = vmatprep.subr.bf16.mxu0 0
      %1512 = vmatpush1.bf16.msra.mxu0 %v1476
      %1513 = vmatprep.subr.bf16.mxu0 0
      %1514 = vmatpush1.bf16.msra.mxu0 %v1477
      %1515 = vmatprep.subr.bf16.mxu0 0
      %1516 = vmatpush1.bf16.msra.mxu0 %v1478
      %1517 = vmatprep.subr.bf16.mxu0 0
      %1518 = vmatpush1.bf16.msra.mxu0 %v1479
      %1519 = vmatprep.subr.bf16.mxu0 0
      %1520 = vmatpush1.bf16.msra.mxu0 %v1480
      %1521 = vmatprep.subr.bf16.mxu0 0
      %1522 = vmatpush1.bf16.msra.mxu0 %v1481
      %1523 = vmatprep.subr.bf16.mxu0 0
      %1524 = vmatpush1.bf16.msra.mxu0 %v1482
      %1525 = vmatprep.subr.bf16.mxu0 0
      %1526 = vmatpush1.bf16.msra.mxu0 %v1483
      %1527 = vmatprep.subr.bf16.mxu0 0
      %1528 = vmatpush1.bf16.msra.mxu0 %v1484
      %1529 = vmatprep.subr.bf16.mxu0 0
      %1530 = vmatpush1.bf16.msra.mxu0 %v1485
      %1531 = vmatprep.subr.bf16.mxu0 0
      %1532 = vmatpush1.bf16.msra.mxu0 %v1486
      %1533 = vmatprep.subr.bf16.mxu0 0
      %1534 = vmatpush1.bf16.msra.mxu0 %v1487
      %1535 = vmatprep.subr.bf16.mxu0 0
      %1536 = vmatpush1.bf16.msra.mxu0 %v1488
      %1537 = vmatprep.mubr.bf16.mxu0 %v1406
      %1538 = vmatmul.mubr.bf16.gmra.mrb[0].mxu0 %v1405
      %v1539 = vpop.f32.mrb[0].mxu0
      %v1540 = vadd.f32 0.0, %v1539
      %v1541 = vpop.f32.mrb[0].mxu0
      %v1542 = vpop.f32.mrb[0].mxu0
      %v1543 = vpop.f32.mrb[0].mxu0
      %1544 = vdwg.mxu0
      %v1545 = vadd.f32 %v1371, %v1540
      %s1546 = scalar_lea.vmem %s3, 640
      %v1547 = vld [vmem:[%s1546] sm:$0xf]
      %v1548 = vld [vmem:[%s1546 + $0x4] sm:$0xf]
      %v1549 = vld [vmem:[%s1546 + $0x8] sm:$0xf]
      %v1550 = vld [vmem:[%s1546 + $0xc] sm:$0xf]
      %v1551 = vld [vmem:[%s1546 + $0x10] sm:$0xf]
      %v1552 = vld [vmem:[%s1546 + $0x14] sm:$0xf]
      %v1553 = vld [vmem:[%s1546 + $0x18] sm:$0xf]
      %v1554 = vld [vmem:[%s1546 + $0x1c] sm:$0xf]
      %v1555 = vld [vmem:[%s1546 + $0x20] sm:$0xf]
      %v1556 = vld [vmem:[%s1546 + $0x24] sm:$0xf]
      %v1557 = vld [vmem:[%s1546 + $0x28] sm:$0xf]
      %v1558 = vld [vmem:[%s1546 + $0x2c] sm:$0xf]
      %v1559 = vld [vmem:[%s1546 + $0x30] sm:$0xf]
      %v1560 = vld [vmem:[%s1546 + $0x34] sm:$0xf]
      %v1561 = vld [vmem:[%s1546 + $0x38] sm:$0xf]
      %v1562 = vld [vmem:[%s1546 + $0x3c] sm:$0xf]
      %v1563 = vld [vmem:[%s1546 + $0x40] sm:$0xf]
      %v1564 = vld [vmem:[%s1546 + $0x44] sm:$0xf]
      %v1565 = vld [vmem:[%s1546 + $0x48] sm:$0xf]
      %v1566 = vld [vmem:[%s1546 + $0x4c] sm:$0xf]
      %v1567 = vld [vmem:[%s1546 + $0x50] sm:$0xf]
      %v1568 = vld [vmem:[%s1546 + $0x54] sm:$0xf]
      %v1569 = vld [vmem:[%s1546 + $0x58] sm:$0xf]
      %v1570 = vld [vmem:[%s1546 + $0x5c] sm:$0xf]
      %v1571 = vld [vmem:[%s1546 + $0x60] sm:$0xf]
      %v1572 = vld [vmem:[%s1546 + $0x64] sm:$0xf]
      %v1573 = vld [vmem:[%s1546 + $0x68] sm:$0xf]
      %v1574 = vld [vmem:[%s1546 + $0x6c] sm:$0xf]
      %v1575 = vld [vmem:[%s1546 + $0x70] sm:$0xf]
      %v1576 = vld [vmem:[%s1546 + $0x74] sm:$0xf]
      %v1577 = vld [vmem:[%s1546 + $0x78] sm:$0xf]
      %v1578 = vld [vmem:[%s1546 + $0x7c] sm:$0xf]
      %v1579 = vrot.slane %v743, 2
      %v1580 = vrot.slane %v746, 2
      %v1615 = vunpack.c.l.b16 %v1547
      %v1616 = vunpack.c.l.b16 %v1548
      %v1617 = vunpack.c.l.b16 %v1549
      %v1618 = vunpack.c.l.b16 %v1550
      %v1619 = vunpack.c.l.b16 %v1551
      %v1620 = vunpack.c.l.b16 %v1552
      %v1621 = vunpack.c.l.b16 %v1553
      %v1622 = vunpack.c.l.b16 %v1554
      %v1623 = vunpack.c.l.b16 %v1555
      %v1624 = vunpack.c.l.b16 %v1556
      %v1625 = vunpack.c.l.b16 %v1557
      %v1626 = vunpack.c.l.b16 %v1558
      %v1627 = vunpack.c.l.b16 %v1559
      %v1628 = vunpack.c.l.b16 %v1560
      %v1629 = vunpack.c.l.b16 %v1561
      %v1630 = vunpack.c.l.b16 %v1562
      %v1631 = vunpack.c.l.b16 %v1563
      %v1632 = vunpack.c.l.b16 %v1564
      %v1633 = vunpack.c.l.b16 %v1565
      %v1634 = vunpack.c.l.b16 %v1566
      %v1635 = vunpack.c.l.b16 %v1567
      %v1636 = vunpack.c.l.b16 %v1568
      %v1637 = vunpack.c.l.b16 %v1569
      %v1638 = vunpack.c.l.b16 %v1570
      %v1639 = vunpack.c.l.b16 %v1571
      %v1640 = vunpack.c.l.b16 %v1572
      %v1641 = vunpack.c.l.b16 %v1573
      %v1642 = vunpack.c.l.b16 %v1574
      %v1643 = vunpack.c.l.b16 %v1575
      %v1644 = vunpack.c.l.b16 %v1576
      %v1645 = vunpack.c.l.b16 %v1577
      %v1646 = vunpack.c.l.b16 %v1578
      %v1647 = vpack.c.b16 %v1616, %v1615
      %v1648 = vpack.c.b16 %v1618, %v1617
      %v1649 = vpack.c.b16 %v1620, %v1619
      %v1650 = vpack.c.b16 %v1622, %v1621
      %v1651 = vpack.c.b16 %v1624, %v1623
      %v1652 = vpack.c.b16 %v1626, %v1625
      %v1653 = vpack.c.b16 %v1628, %v1627
      %v1654 = vpack.c.b16 %v1630, %v1629
      %v1655 = vpack.c.b16 %v1632, %v1631
      %v1656 = vpack.c.b16 %v1634, %v1633
      %v1657 = vpack.c.b16 %v1636, %v1635
      %v1658 = vpack.c.b16 %v1638, %v1637
      %v1659 = vpack.c.b16 %v1640, %v1639
      %v1660 = vpack.c.b16 %v1642, %v1641
      %v1661 = vpack.c.b16 %v1644, %v1643
      %v1662 = vpack.c.b16 %v1646, %v1645
      %1679 = vmatprep.subr.bf16.mxu0 0
      %1680 = vmatpush1.bf16.msra.mxu0 %v1647
      %1681 = vmatprep.subr.bf16.mxu0 0
      %1682 = vmatpush1.bf16.msra.mxu0 %v1648
      %1683 = vmatprep.subr.bf16.mxu0 0
      %1684 = vmatpush1.bf16.msra.mxu0 %v1649
      %1685 = vmatprep.subr.bf16.mxu0 0
      %1686 = vmatpush1.bf16.msra.mxu0 %v1650
      %1687 = vmatprep.subr.bf16.mxu0 0
      %1688 = vmatpush1.bf16.msra.mxu0 %v1651
      %1689 = vmatprep.subr.bf16.mxu0 0
      %1690 = vmatpush1.bf16.msra.mxu0 %v1652
      %1691 = vmatprep.subr.bf16.mxu0 0
      %1692 = vmatpush1.bf16.msra.mxu0 %v1653
      %1693 = vmatprep.subr.bf16.mxu0 0
      %1694 = vmatpush1.bf16.msra.mxu0 %v1654
      %1695 = vmatprep.subr.bf16.mxu0 0
      %1696 = vmatpush1.bf16.msra.mxu0 %v1655
      %1697 = vmatprep.subr.bf16.mxu0 0
      %1698 = vmatpush1.bf16.msra.mxu0 %v1656
      %1699 = vmatprep.subr.bf16.mxu0 0
      %1700 = vmatpush1.bf16.msra.mxu0 %v1657
      %1701 = vmatprep.subr.bf16.mxu0 0
      %1702 = vmatpush1.bf16.msra.mxu0 %v1658
      %1703 = vmatprep.subr.bf16.mxu0 0
      %1704 = vmatpush1.bf16.msra.mxu0 %v1659
      %1705 = vmatprep.subr.bf16.mxu0 0
      %1706 = vmatpush1.bf16.msra.mxu0 %v1660
      %1707 = vmatprep.subr.bf16.mxu0 0
      %1708 = vmatpush1.bf16.msra.mxu0 %v1661
      %1709 = vmatprep.subr.bf16.mxu0 0
      %1710 = vmatpush1.bf16.msra.mxu0 %v1662
      %1711 = vmatprep.mubr.bf16.mxu0 %v1580
      %1712 = vmatmul.mubr.bf16.gmra.mrb[0].mxu0 %v1579
      %v1713 = vpop.f32.mrb[0].mxu0
      %v1714 = vadd.f32 0.0, %v1713
      %v1715 = vpop.f32.mrb[0].mxu0
      %v1716 = vpop.f32.mrb[0].mxu0
      %v1717 = vpop.f32.mrb[0].mxu0
      %1718 = vdwg.mxu0
      %v1719 = vadd.f32 %v1545, %v1714
      %s1720 = scalar_lea.vmem %s3, 768
      %v1721 = vld [vmem:[%s1720] sm:$0xf]
      %v1722 = vld [vmem:[%s1720 + $0x4] sm:$0xf]
      %v1723 = vld [vmem:[%s1720 + $0x8] sm:$0xf]
      %v1724 = vld [vmem:[%s1720 + $0xc] sm:$0xf]
      %v1725 = vld [vmem:[%s1720 + $0x10] sm:$0xf]
      %v1726 = vld [vmem:[%s1720 + $0x14] sm:$0xf]
      %v1727 = vld [vmem:[%s1720 + $0x18] sm:$0xf]
      %v1728 = vld [vmem:[%s1720 + $0x1c] sm:$0xf]
      %v1729 = vld [vmem:[%s1720 + $0x20] sm:$0xf]
      %v1730 = vld [vmem:[%s1720 + $0x24] sm:$0xf]
      %v1731 = vld [vmem:[%s1720 + $0x28] sm:$0xf]
      %v1732 = vld [vmem:[%s1720 + $0x2c] sm:$0xf]
      %v1733 = vld [vmem:[%s1720 + $0x30] sm:$0xf]
      %v1734 = vld [vmem:[%s1720 + $0x34] sm:$0xf]
      %v1735 = vld [vmem:[%s1720 + $0x38] sm:$0xf]
      %v1736 = vld [vmem:[%s1720 + $0x3c] sm:$0xf]
      %v1737 = vld [vmem:[%s1720 + $0x40] sm:$0xf]
      %v1738 = vld [vmem:[%s1720 + $0x44] sm:$0xf]
      %v1739 = vld [vmem:[%s1720 + $0x48] sm:$0xf]
      %v1740 = vld [vmem:[%s1720 + $0x4c] sm:$0xf]
      %v1741 = vld [vmem:[%s1720 + $0x50] sm:$0xf]
      %v1742 = vld [vmem:[%s1720 + $0x54] sm:$0xf]
      %v1743 = vld [vmem:[%s1720 + $0x58] sm:$0xf]
      %v1744 = vld [vmem:[%s1720 + $0x5c] sm:$0xf]
      %v1745 = vld [vmem:[%s1720 + $0x60] sm:$0xf]
      %v1746 = vld [vmem:[%s1720 + $0x64] sm:$0xf]
      %v1747 = vld [vmem:[%s1720 + $0x68] sm:$0xf]
      %v1748 = vld [vmem:[%s1720 + $0x6c] sm:$0xf]
      %v1749 = vld [vmem:[%s1720 + $0x70] sm:$0xf]
      %v1750 = vld [vmem:[%s1720 + $0x74] sm:$0xf]
      %v1751 = vld [vmem:[%s1720 + $0x78] sm:$0xf]
      %v1752 = vld [vmem:[%s1720 + $0x7c] sm:$0xf]
      %v1753 = vrot.slane %v673, 3
      %v1754 = vrot.slane %v674, 3
      %v1789 = vunpack.c.l.b16 %v1721
      %v1790 = vunpack.c.l.b16 %v1722
      %v1791 = vunpack.c.l.b16 %v1723
      %v1792 = vunpack.c.l.b16 %v1724
      %v1793 = vunpack.c.l.b16 %v1725
      %v1794 = vunpack.c.l.b16 %v1726
      %v1795 = vunpack.c.l.b16 %v1727
      %v1796 = vunpack.c.l.b16 %v1728
      %v1797 = vunpack.c.l.b16 %v1729
      %v1798 = vunpack.c.l.b16 %v1730
      %v1799 = vunpack.c.l.b16 %v1731
      %v1800 = vunpack.c.l.b16 %v1732
      %v1801 = vunpack.c.l.b16 %v1733
      %v1802 = vunpack.c.l.b16 %v1734
      %v1803 = vunpack.c.l.b16 %v1735
      %v1804 = vunpack.c.l.b16 %v1736
      %v1805 = vunpack.c.l.b16 %v1737
      %v1806 = vunpack.c.l.b16 %v1738
      %v1807 = vunpack.c.l.b16 %v1739
      %v1808 = vunpack.c.l.b16 %v1740
      %v1809 = vunpack.c.l.b16 %v1741
      %v1810 = vunpack.c.l.b16 %v1742
      %v1811 = vunpack.c.l.b16 %v1743
      %v1812 = vunpack.c.l.b16 %v1744
      %v1813 = vunpack.c.l.b16 %v1745
      %v1814 = vunpack.c.l.b16 %v1746
      %v1815 = vunpack.c.l.b16 %v1747
      %v1816 = vunpack.c.l.b16 %v1748
      %v1817 = vunpack.c.l.b16 %v1749
      %v1818 = vunpack.c.l.b16 %v1750
      %v1819 = vunpack.c.l.b16 %v1751
      %v1820 = vunpack.c.l.b16 %v1752
      %v1821 = vpack.c.b16 %v1790, %v1789
      %v1822 = vpack.c.b16 %v1792, %v1791
      %v1823 = vpack.c.b16 %v1794, %v1793
      %v1824 = vpack.c.b16 %v1796, %v1795
      %v1825 = vpack.c.b16 %v1798, %v1797
      %v1826 = vpack.c.b16 %v1800, %v1799
      %v1827 = vpack.c.b16 %v1802, %v1801
      %v1828 = vpack.c.b16 %v1804, %v1803
      %v1829 = vpack.c.b16 %v1806, %v1805
      %v1830 = vpack.c.b16 %v1808, %v1807
      %v1831 = vpack.c.b16 %v1810, %v1809
      %v1832 = vpack.c.b16 %v1812, %v1811
      %v1833 = vpack.c.b16 %v1814, %v1813
      %v1834 = vpack.c.b16 %v1816, %v1815
      %v1835 = vpack.c.b16 %v1818, %v1817
      %v1836 = vpack.c.b16 %v1820, %v1819
      %1853 = vmatprep.subr.bf16.mxu0 0
      %1854 = vmatpush1.bf16.msra.mxu0 %v1821
      %1855 = vmatprep.subr.bf16.mxu0 0
      %1856 = vmatpush1.bf16.msra.mxu0 %v1822
      %1857 = vmatprep.subr.bf16.mxu0 0
      %1858 = vmatpush1.bf16.msra.mxu0 %v1823
      %1859 = vmatprep.subr.bf16.mxu0 0
      %1860 = vmatpush1.bf16.msra.mxu0 %v1824
      %1861 = vmatprep.subr.bf16.mxu0 0
      %1862 = vmatpush1.bf16.msra.mxu0 %v1825
      %1863 = vmatprep.subr.bf16.mxu0 0
      %1864 = vmatpush1.bf16.msra.mxu0 %v1826
      %1865 = vmatprep.subr.bf16.mxu0 0
      %1866 = vmatpush1.bf16.msra.mxu0 %v1827
      %1867 = vmatprep.subr.bf16.mxu0 0
      %1868 = vmatpush1.bf16.msra.mxu0 %v1828
      %1869 = vmatprep.subr.bf16.mxu0 0
      %1870 = vmatpush1.bf16.msra.mxu0 %v1829
      %1871 = vmatprep.subr.bf16.mxu0 0
      %1872 = vmatpush1.bf16.msra.mxu0 %v1830
      %1873 = vmatprep.subr.bf16.mxu0 0
      %1874 = vmatpush1.bf16.msra.mxu0 %v1831
      %1875 = vmatprep.subr.bf16.mxu0 0
      %1876 = vmatpush1.bf16.msra.mxu0 %v1832
      %1877 = vmatprep.subr.bf16.mxu0 0
      %1878 = vmatpush1.bf16.msra.mxu0 %v1833
      %1879 = vmatprep.subr.bf16.mxu0 0
      %1880 = vmatpush1.bf16.msra.mxu0 %v1834
      %1881 = vmatprep.subr.bf16.mxu0 0
      %1882 = vmatpush1.bf16.msra.mxu0 %v1835
      %1883 = vmatprep.subr.bf16.mxu0 0
      %1884 = vmatpush1.bf16.msra.mxu0 %v1836
      %1885 = vmatprep.mubr.bf16.mxu0 %v1754
      %1886 = vmatmul.mubr.bf16.gmra.mrb[0].mxu0 %v1753
      %v1887 = vpop.f32.mrb[0].mxu0
      %v1888 = vadd.f32 0.0, %v1887
      %v1889 = vpop.f32.mrb[0].mxu0
      %v1890 = vpop.f32.mrb[0].mxu0
      %v1891 = vpop.f32.mrb[0].mxu0
      %1892 = vdwg.mxu0
      %v1893 = vadd.f32 %v1719, %v1888
      %s1894 = scalar_lea.vmem %s3, 896
      %v1895 = vld [vmem:[%s1894] sm:$0xf]
      %v1896 = vld [vmem:[%s1894 + $0x4] sm:$0xf]
      %v1897 = vld [vmem:[%s1894 + $0x8] sm:$0xf]
      %v1898 = vld [vmem:[%s1894 + $0xc] sm:$0xf]
      %v1899 = vld [vmem:[%s1894 + $0x10] sm:$0xf]
      %v1900 = vld [vmem:[%s1894 + $0x14] sm:$0xf]
      %v1901 = vld [vmem:[%s1894 + $0x18] sm:$0xf]
      %v1902 = vld [vmem:[%s1894 + $0x1c] sm:$0xf]
      %v1903 = vld [vmem:[%s1894 + $0x20] sm:$0xf]
      %v1904 = vld [vmem:[%s1894 + $0x24] sm:$0xf]
      %v1905 = vld [vmem:[%s1894 + $0x28] sm:$0xf]
      %v1906 = vld [vmem:[%s1894 + $0x2c] sm:$0xf]
      %v1907 = vld [vmem:[%s1894 + $0x30] sm:$0xf]
      %v1908 = vld [vmem:[%s1894 + $0x34] sm:$0xf]
      %v1909 = vld [vmem:[%s1894 + $0x38] sm:$0xf]
      %v1910 = vld [vmem:[%s1894 + $0x3c] sm:$0xf]
      %v1911 = vld [vmem:[%s1894 + $0x40] sm:$0xf]
      %v1912 = vld [vmem:[%s1894 + $0x44] sm:$0xf]
      %v1913 = vld [vmem:[%s1894 + $0x48] sm:$0xf]
      %v1914 = vld [vmem:[%s1894 + $0x4c] sm:$0xf]
      %v1915 = vld [vmem:[%s1894 + $0x50] sm:$0xf]
      %v1916 = vld [vmem:[%s1894 + $0x54] sm:$0xf]
      %v1917 = vld [vmem:[%s1894 + $0x58] sm:$0xf]
      %v1918 = vld [vmem:[%s1894 + $0x5c] sm:$0xf]
      %v1919 = vld [vmem:[%s1894 + $0x60] sm:$0xf]
      %v1920 = vld [vmem:[%s1894 + $0x64] sm:$0xf]
      %v1921 = vld [vmem:[%s1894 + $0x68] sm:$0xf]
      %v1922 = vld [vmem:[%s1894 + $0x6c] sm:$0xf]
      %v1923 = vld [vmem:[%s1894 + $0x70] sm:$0xf]
      %v1924 = vld [vmem:[%s1894 + $0x74] sm:$0xf]
      %v1925 = vld [vmem:[%s1894 + $0x78] sm:$0xf]
      %v1926 = vld [vmem:[%s1894 + $0x7c] sm:$0xf]
      %v1927 = vrot.slane %v743, 3
      %v1928 = vrot.slane %v746, 3
      %v1963 = vunpack.c.l.b16 %v1895
      %v1964 = vunpack.c.l.b16 %v1896
      %v1965 = vunpack.c.l.b16 %v1897
      %v1966 = vunpack.c.l.b16 %v1898
      %v1967 = vunpack.c.l.b16 %v1899
      %v1968 = vunpack.c.l.b16 %v1900
      %v1969 = vunpack.c.l.b16 %v1901
      %v1970 = vunpack.c.l.b16 %v1902
      %v1971 = vunpack.c.l.b16 %v1903
      %v1972 = vunpack.c.l.b16 %v1904
      %v1973 = vunpack.c.l.b16 %v1905
      %v1974 = vunpack.c.l.b16 %v1906
      %v1975 = vunpack.c.l.b16 %v1907
      %v1976 = vunpack.c.l.b16 %v1908
      %v1977 = vunpack.c.l.b16 %v1909
      %v1978 = vunpack.c.l.b16 %v1910
      %v1979 = vunpack.c.l.b16 %v1911
      %v1980 = vunpack.c.l.b16 %v1912
      %v1981 = vunpack.c.l.b16 %v1913
      %v1982 = vunpack.c.l.b16 %v1914
      %v1983 = vunpack.c.l.b16 %v1915
      %v1984 = vunpack.c.l.b16 %v1916
      %v1985 = vunpack.c.l.b16 %v1917
      %v1986 = vunpack.c.l.b16 %v1918
      %v1987 = vunpack.c.l.b16 %v1919
      %v1988 = vunpack.c.l.b16 %v1920
      %v1989 = vunpack.c.l.b16 %v1921
      %v1990 = vunpack.c.l.b16 %v1922
      %v1991 = vunpack.c.l.b16 %v1923
      %v1992 = vunpack.c.l.b16 %v1924
      %v1993 = vunpack.c.l.b16 %v1925
      %v1994 = vunpack.c.l.b16 %v1926
      %v1995 = vpack.c.b16 %v1964, %v1963
      %v1996 = vpack.c.b16 %v1966, %v1965
      %v1997 = vpack.c.b16 %v1968, %v1967
      %v1998 = vpack.c.b16 %v1970, %v1969
      %v1999 = vpack.c.b16 %v1972, %v1971
      %v2000 = vpack.c.b16 %v1974, %v1973
      %v2001 = vpack.c.b16 %v1976, %v1975
      %v2002 = vpack.c.b16 %v1978, %v1977
      %v2003 = vpack.c.b16 %v1980, %v1979
      %v2004 = vpack.c.b16 %v1982, %v1981
      %v2005 = vpack.c.b16 %v1984, %v1983
      %v2006 = vpack.c.b16 %v1986, %v1985
      %v2007 = vpack.c.b16 %v1988, %v1987
      %v2008 = vpack.c.b16 %v1990, %v1989
      %v2009 = vpack.c.b16 %v1992, %v1991
      %v2010 = vpack.c.b16 %v1994, %v1993
      %2027 = vmatprep.subr.bf16.mxu0 0
      %2028 = vmatpush1.bf16.msra.mxu0 %v1995
      %2029 = vmatprep.subr.bf16.mxu0 0
      %2030 = vmatpush1.bf16.msra.mxu0 %v1996
      %2031 = vmatprep.subr.bf16.mxu0 0
      %2032 = vmatpush1.bf16.msra.mxu0 %v1997
      %2033 = vmatprep.subr.bf16.mxu0 0
      %2034 = vmatpush1.bf16.msra.mxu0 %v1998
      %2035 = vmatprep.subr.bf16.mxu0 0
      %2036 = vmatpush1.bf16.msra.mxu0 %v1999
      %2037 = vmatprep.subr.bf16.mxu0 0
      %2038 = vmatpush1.bf16.msra.mxu0 %v2000
      %2039 = vmatprep.subr.bf16.mxu0 0
      %2040 = vmatpush1.bf16.msra.mxu0 %v2001
      %2041 = vmatprep.subr.bf16.mxu0 0
      %2042 = vmatpush1.bf16.msra.mxu0 %v2002
      %2043 = vmatprep.subr.bf16.mxu0 0
      %2044 = vmatpush1.bf16.msra.mxu0 %v2003
      %2045 = vmatprep.subr.bf16.mxu0 0
      %2046 = vmatpush1.bf16.msra.mxu0 %v2004
      %2047 = vmatprep.subr.bf16.mxu0 0
      %2048 = vmatpush1.bf16.msra.mxu0 %v2005
      %2049 = vmatprep.subr.bf16.mxu0 0
      %2050 = vmatpush1.bf16.msra.mxu0 %v2006
      %2051 = vmatprep.subr.bf16.mxu0 0
      %2052 = vmatpush1.bf16.msra.mxu0 %v2007
      %2053 = vmatprep.subr.bf16.mxu0 0
      %2054 = vmatpush1.bf16.msra.mxu0 %v2008
      %2055 = vmatprep.subr.bf16.mxu0 0
      %2056 = vmatpush1.bf16.msra.mxu0 %v2009
      %2057 = vmatprep.subr.bf16.mxu0 0
      %2058 = vmatpush1.bf16.msra.mxu0 %v2010
      %2059 = vmatprep.mubr.bf16.mxu0 %v1928
      %2060 = vmatmul.mubr.bf16.gmra.mrb[0].mxu0 %v1927
      %v2061 = vpop.f32.mrb[0].mxu0
      %v2062 = vadd.f32 0.0, %v2061
      %v2063 = vpop.f32.mrb[0].mxu0
      %v2064 = vpop.f32.mrb[0].mxu0
      %v2065 = vpop.f32.mrb[0].mxu0
      %2066 = vdwg.mxu0
      %v2067 = vadd.f32 %v1893, %v2062
      %s2068 = scalar_lea.vmem %s3, 1024
      %v2069 = vld [vmem:[%s2068] sm:$0xf]
      %v2070 = vld [vmem:[%s2068 + $0x4] sm:$0xf]
      %v2071 = vld [vmem:[%s2068 + $0x8] sm:$0xf]
      %v2072 = vld [vmem:[%s2068 + $0xc] sm:$0xf]
      %v2073 = vld [vmem:[%s2068 + $0x10] sm:$0xf]
      %v2074 = vld [vmem:[%s2068 + $0x14] sm:$0xf]
      %v2075 = vld [vmem:[%s2068 + $0x18] sm:$0xf]
      %v2076 = vld [vmem:[%s2068 + $0x1c] sm:$0xf]
      %v2077 = vld [vmem:[%s2068 + $0x20] sm:$0xf]
      %v2078 = vld [vmem:[%s2068 + $0x24] sm:$0xf]
      %v2079 = vld [vmem:[%s2068 + $0x28] sm:$0xf]
      %v2080 = vld [vmem:[%s2068 + $0x2c] sm:$0xf]
      %v2081 = vld [vmem:[%s2068 + $0x30] sm:$0xf]
      %v2082 = vld [vmem:[%s2068 + $0x34] sm:$0xf]
      %v2083 = vld [vmem:[%s2068 + $0x38] sm:$0xf]
      %v2084 = vld [vmem:[%s2068 + $0x3c] sm:$0xf]
      %v2085 = vld [vmem:[%s2068 + $0x40] sm:$0xf]
      %v2086 = vld [vmem:[%s2068 + $0x44] sm:$0xf]
      %v2087 = vld [vmem:[%s2068 + $0x48] sm:$0xf]
      %v2088 = vld [vmem:[%s2068 + $0x4c] sm:$0xf]
      %v2089 = vld [vmem:[%s2068 + $0x50] sm:$0xf]
      %v2090 = vld [vmem:[%s2068 + $0x54] sm:$0xf]
      %v2091 = vld [vmem:[%s2068 + $0x58] sm:$0xf]
      %v2092 = vld [vmem:[%s2068 + $0x5c] sm:$0xf]
      %v2093 = vld [vmem:[%s2068 + $0x60] sm:$0xf]
      %v2094 = vld [vmem:[%s2068 + $0x64] sm:$0xf]
      %v2095 = vld [vmem:[%s2068 + $0x68] sm:$0xf]
      %v2096 = vld [vmem:[%s2068 + $0x6c] sm:$0xf]
      %v2097 = vld [vmem:[%s2068 + $0x70] sm:$0xf]
      %v2098 = vld [vmem:[%s2068 + $0x74] sm:$0xf]
      %v2099 = vld [vmem:[%s2068 + $0x78] sm:$0xf]
      %v2100 = vld [vmem:[%s2068 + $0x7c] sm:$0xf]
      %v2101 = vrot.slane %v673, 4
      %v2102 = vrot.slane %v674, 4
      %v2137 = vunpack.c.l.b16 %v2069
      %v2138 = vunpack.c.l.b16 %v2070
      %v2139 = vunpack.c.l.b16 %v2071
      %v2140 = vunpack.c.l.b16 %v2072
      %v2141 = vunpack.c.l.b16 %v2073
      %v2142 = vunpack.c.l.b16 %v2074
      %v2143 = vunpack.c.l.b16 %v2075
      %v2144 = vunpack.c.l.b16 %v2076
      %v2145 = vunpack.c.l.b16 %v2077
      %v2146 = vunpack.c.l.b16 %v2078
      %v2147 = vunpack.c.l.b16 %v2079
      %v2148 = vunpack.c.l.b16 %v2080
      %v2149 = vunpack.c.l.b16 %v2081
      %v2150 = vunpack.c.l.b16 %v2082
      %v2151 = vunpack.c.l.b16 %v2083
      %v2152 = vunpack.c.l.b16 %v2084
      %v2153 = vunpack.c.l.b16 %v2085
      %v2154 = vunpack.c.l.b16 %v2086
      %v2155 = vunpack.c.l.b16 %v2087
      %v2156 = vunpack.c.l.b16 %v2088
      %v2157 = vunpack.c.l.b16 %v2089
      %v2158 = vunpack.c.l.b16 %v2090
      %v2159 = vunpack.c.l.b16 %v2091
      %v2160 = vunpack.c.l.b16 %v2092
      %v2161 = vunpack.c.l.b16 %v2093
      %v2162 = vunpack.c.l.b16 %v2094
      %v2163 = vunpack.c.l.b16 %v2095
      %v2164 = vunpack.c.l.b16 %v2096
      %v2165 = vunpack.c.l.b16 %v2097
      %v2166 = vunpack.c.l.b16 %v2098
      %v2167 = vunpack.c.l.b16 %v2099
      %v2168 = vunpack.c.l.b16 %v2100
      %v2169 = vpack.c.b16 %v2138, %v2137
      %v2170 = vpack.c.b16 %v2140, %v2139
      %v2171 = vpack.c.b16 %v2142, %v2141
      %v2172 = vpack.c.b16 %v2144, %v2143
      %v2173 = vpack.c.b16 %v2146, %v2145
      %v2174 = vpack.c.b16 %v2148, %v2147
      %v2175 = vpack.c.b16 %v2150, %v2149
      %v2176 = vpack.c.b16 %v2152, %v2151
      %v2177 = vpack.c.b16 %v2154, %v2153
      %v2178 = vpack.c.b16 %v2156, %v2155
      %v2179 = vpack.c.b16 %v2158, %v2157
      %v2180 = vpack.c.b16 %v2160, %v2159
      %v2181 = vpack.c.b16 %v2162, %v2161
      %v2182 = vpack.c.b16 %v2164, %v2163
      %v2183 = vpack.c.b16 %v2166, %v2165
      %v2184 = vpack.c.b16 %v2168, %v2167
      %2201 = vmatprep.subr.bf16.mxu0 0
      %2202 = vmatpush1.bf16.msra.mxu0 %v2169
      %2203 = vmatprep.subr.bf16.mxu0 0
      %2204 = vmatpush1.bf16.msra.mxu0 %v2170
      %2205 = vmatprep.subr.bf16.mxu0 0
      %2206 = vmatpush1.bf16.msra.mxu0 %v2171
      %2207 = vmatprep.subr.bf16.mxu0 0
      %2208 = vmatpush1.bf16.msra.mxu0 %v2172
      %2209 = vmatprep.subr.bf16.mxu0 0
      %2210 = vmatpush1.bf16.msra.mxu0 %v2173
      %2211 = vmatprep.subr.bf16.mxu0 0
      %2212 = vmatpush1.bf16.msra.mxu0 %v2174
      %2213 = vmatprep.subr.bf16.mxu0 0
      %2214 = vmatpush1.bf16.msra.mxu0 %v2175
      %2215 = vmatprep.subr.bf16.mxu0 0
      %2216 = vmatpush1.bf16.msra.mxu0 %v2176
      %2217 = vmatprep.subr.bf16.mxu0 0
      %2218 = vmatpush1.bf16.msra.mxu0 %v2177
      %2219 = vmatprep.subr.bf16.mxu0 0
      %2220 = vmatpush1.bf16.msra.mxu0 %v2178
      %2221 = vmatprep.subr.bf16.mxu0 0
      %2222 = vmatpush1.bf16.msra.mxu0 %v2179
      %2223 = vmatprep.subr.bf16.mxu0 0
      %2224 = vmatpush1.bf16.msra.mxu0 %v2180
      %2225 = vmatprep.subr.bf16.mxu0 0
      %2226 = vmatpush1.bf16.msra.mxu0 %v2181
      %2227 = vmatprep.subr.bf16.mxu0 0
      %2228 = vmatpush1.bf16.msra.mxu0 %v2182
      %2229 = vmatprep.subr.bf16.mxu0 0
      %2230 = vmatpush1.bf16.msra.mxu0 %v2183
      %2231 = vmatprep.subr.bf16.mxu0 0
      %2232 = vmatpush1.bf16.msra.mxu0 %v2184
      %2233 = vmatprep.mubr.bf16.mxu0 %v2102
      %2234 = vmatmul.mubr.bf16.gmra.mrb[0].mxu0 %v2101
      %v2235 = vpop.f32.mrb[0].mxu0
      %v2236 = vadd.f32 0.0, %v2235
      %v2237 = vpop.f32.mrb[0].mxu0
      %v2238 = vpop.f32.mrb[0].mxu0
      %v2239 = vpop.f32.mrb[0].mxu0
      %2240 = vdwg.mxu0
      %v2241 = vadd.f32 %v2067, %v2236
      %s2242 = scalar_lea.vmem %s3, 1152
      %v2243 = vld [vmem:[%s2242] sm:$0xf]
      %v2244 = vld [vmem:[%s2242 + $0x4] sm:$0xf]
      %v2245 = vld [vmem:[%s2242 + $0x8] sm:$0xf]
      %v2246 = vld [vmem:[%s2242 + $0xc] sm:$0xf]
      %v2247 = vld [vmem:[%s2242 + $0x10] sm:$0xf]
      %v2248 = vld [vmem:[%s2242 + $0x14] sm:$0xf]
      %v2249 = vld [vmem:[%s2242 + $0x18] sm:$0xf]
      %v2250 = vld [vmem:[%s2242 + $0x1c] sm:$0xf]
      %v2251 = vld [vmem:[%s2242 + $0x20] sm:$0xf]
      %v2252 = vld [vmem:[%s2242 + $0x24] sm:$0xf]
      %v2253 = vld [vmem:[%s2242 + $0x28] sm:$0xf]
      %v2254 = vld [vmem:[%s2242 + $0x2c] sm:$0xf]
      %v2255 = vld [vmem:[%s2242 + $0x30] sm:$0xf]
      %v2256 = vld [vmem:[%s2242 + $0x34] sm:$0xf]
      %v2257 = vld [vmem:[%s2242 + $0x38] sm:$0xf]
      %v2258 = vld [vmem:[%s2242 + $0x3c] sm:$0xf]
      %v2259 = vld [vmem:[%s2242 + $0x40] sm:$0xf]
      %v2260 = vld [vmem:[%s2242 + $0x44] sm:$0xf]
      %v2261 = vld [vmem:[%s2242 + $0x48] sm:$0xf]
      %v2262 = vld [vmem:[%s2242 + $0x4c] sm:$0xf]
      %v2263 = vld [vmem:[%s2242 + $0x50] sm:$0xf]
      %v2264 = vld [vmem:[%s2242 + $0x54] sm:$0xf]
      %v2265 = vld [vmem:[%s2242 + $0x58] sm:$0xf]
      %v2266 = vld [vmem:[%s2242 + $0x5c] sm:$0xf]
      %v2267 = vld [vmem:[%s2242 + $0x60] sm:$0xf]
      %v2268 = vld [vmem:[%s2242 + $0x64] sm:$0xf]
      %v2269 = vld [vmem:[%s2242 + $0x68] sm:$0xf]
      %v2270 = vld [vmem:[%s2242 + $0x6c] sm:$0xf]
      %v2271 = vld [vmem:[%s2242 + $0x70] sm:$0xf]
      %v2272 = vld [vmem:[%s2242 + $0x74] sm:$0xf]
      %v2273 = vld [vmem:[%s2242 + $0x78] sm:$0xf]
      %v2274 = vld [vmem:[%s2242 + $0x7c] sm:$0xf]
      %v2275 = vrot.slane %v743, 4
      %v2276 = vrot.slane %v746, 4
      %v2311 = vunpack.c.l.b16 %v2243
      %v2312 = vunpack.c.l.b16 %v2244
      %v2313 = vunpack.c.l.b16 %v2245
      %v2314 = vunpack.c.l.b16 %v2246
      %v2315 = vunpack.c.l.b16 %v2247
      %v2316 = vunpack.c.l.b16 %v2248
      %v2317 = vunpack.c.l.b16 %v2249
      %v2318 = vunpack.c.l.b16 %v2250
      %v2319 = vunpack.c.l.b16 %v2251
      %v2320 = vunpack.c.l.b16 %v2252
      %v2321 = vunpack.c.l.b16 %v2253
      %v2322 = vunpack.c.l.b16 %v2254
      %v2323 = vunpack.c.l.b16 %v2255
      %v2324 = vunpack.c.l.b16 %v2256
      %v2325 = vunpack.c.l.b16 %v2257
      %v2326 = vunpack.c.l.b16 %v2258
      %v2327 = vunpack.c.l.b16 %v2259
      %v2328 = vunpack.c.l.b16 %v2260
      %v2329 = vunpack.c.l.b16 %v2261
      %v2330 = vunpack.c.l.b16 %v2262
      %v2331 = vunpack.c.l.b16 %v2263
      %v2332 = vunpack.c.l.b16 %v2264
      %v2333 = vunpack.c.l.b16 %v2265
      %v2334 = vunpack.c.l.b16 %v2266
      %v2335 = vunpack.c.l.b16 %v2267
      %v2336 = vunpack.c.l.b16 %v2268
      %v2337 = vunpack.c.l.b16 %v2269
      %v2338 = vunpack.c.l.b16 %v2270
      %v2339 = vunpack.c.l.b16 %v2271
      %v2340 = vunpack.c.l.b16 %v2272
      %v2341 = vunpack.c.l.b16 %v2273
      %v2342 = vunpack.c.l.b16 %v2274
      %v2343 = vpack.c.b16 %v2312, %v2311
      %v2344 = vpack.c.b16 %v2314, %v2313
      %v2345 = vpack.c.b16 %v2316, %v2315
      %v2346 = vpack.c.b16 %v2318, %v2317
      %v2347 = vpack.c.b16 %v2320, %v2319
      %v2348 = vpack.c.b16 %v2322, %v2321
      %v2349 = vpack.c.b16 %v2324, %v2323
      %v2350 = vpack.c.b16 %v2326, %v2325
      %v2351 = vpack.c.b16 %v2328, %v2327
      %v2352 = vpack.c.b16 %v2330, %v2329
      %v2353 = vpack.c.b16 %v2332, %v2331
      %v2354 = vpack.c.b16 %v2334, %v2333
      %v2355 = vpack.c.b16 %v2336, %v2335
      %v2356 = vpack.c.b16 %v2338, %v2337
      %v2357 = vpack.c.b16 %v2340, %v2339
      %v2358 = vpack.c.b16 %v2342, %v2341
      %2375 = vmatprep.subr.bf16.mxu0 0
      %2376 = vmatpush1.bf16.msra.mxu0 %v2343
      %2377 = vmatprep.subr.bf16.mxu0 0
      %2378 = vmatpush1.bf16.msra.mxu0 %v2344
      %2379 = vmatprep.subr.bf16.mxu0 0
      %2380 = vmatpush1.bf16.msra.mxu0 %v2345
      %2381 = vmatprep.subr.bf16.mxu0 0
      %2382 = vmatpush1.bf16.msra.mxu0 %v2346
      %2383 = vmatprep.subr.bf16.mxu0 0
      %2384 = vmatpush1.bf16.msra.mxu0 %v2347
      %2385 = vmatprep.subr.bf16.mxu0 0
      %2386 = vmatpush1.bf16.msra.mxu0 %v2348
      %2387 = vmatprep.subr.bf16.mxu0 0
      %2388 = vmatpush1.bf16.msra.mxu0 %v2349
      %2389 = vmatprep.subr.bf16.mxu0 0
      %2390 = vmatpush1.bf16.msra.mxu0 %v2350
      %2391 = vmatprep.subr.bf16.mxu0 0
      %2392 = vmatpush1.bf16.msra.mxu0 %v2351
      %2393 = vmatprep.subr.bf16.mxu0 0
      %2394 = vmatpush1.bf16.msra.mxu0 %v2352
      %2395 = vmatprep.subr.bf16.mxu0 0
      %2396 = vmatpush1.bf16.msra.mxu0 %v2353
      %2397 = vmatprep.subr.bf16.mxu0 0
      %2398 = vmatpush1.bf16.msra.mxu0 %v2354
      %2399 = vmatprep.subr.bf16.mxu0 0
      %2400 = vmatpush1.bf16.msra.mxu0 %v2355
      %2401 = vmatprep.subr.bf16.mxu0 0
      %2402 = vmatpush1.bf16.msra.mxu0 %v2356
      %2403 = vmatprep.subr.bf16.mxu0 0
      %2404 = vmatpush1.bf16.msra.mxu0 %v2357
      %2405 = vmatprep.subr.bf16.mxu0 0
      %2406 = vmatpush1.bf16.msra.mxu0 %v2358
      %2407 = vmatprep.mubr.bf16.mxu0 %v2276
      %2408 = vmatmul.mubr.bf16.gmra.mrb[0].mxu0 %v2275
      %v2409 = vpop.f32.mrb[0].mxu0
      %v2410 = vadd.f32 0.0, %v2409
      %v2411 = vpop.f32.mrb[0].mxu0
      %v2412 = vpop.f32.mrb[0].mxu0
      %v2413 = vpop.f32.mrb[0].mxu0
      %2414 = vdwg.mxu0
      %v2415 = vadd.f32 %v2241, %v2410
      %s2416 = scalar_lea.vmem %s3, 1280
      %v2417 = vld [vmem:[%s2416] sm:$0xf]
      %v2418 = vld [vmem:[%s2416 + $0x4] sm:$0xf]
      %v2419 = vld [vmem:[%s2416 + $0x8] sm:$0xf]
      %v2420 = vld [vmem:[%s2416 + $0xc] sm:$0xf]
      %v2421 = vld [vmem:[%s2416 + $0x10] sm:$0xf]
      %v2422 = vld [vmem:[%s2416 + $0x14] sm:$0xf]
      %v2423 = vld [vmem:[%s2416 + $0x18] sm:$0xf]
      %v2424 = vld [vmem:[%s2416 + $0x1c] sm:$0xf]
      %v2425 = vld [vmem:[%s2416 + $0x20] sm:$0xf]
      %v2426 = vld [vmem:[%s2416 + $0x24] sm:$0xf]
      %v2427 = vld [vmem:[%s2416 + $0x28] sm:$0xf]
      %v2428 = vld [vmem:[%s2416 + $0x2c] sm:$0xf]
      %v2429 = vld [vmem:[%s2416 + $0x30] sm:$0xf]
      %v2430 = vld [vmem:[%s2416 + $0x34] sm:$0xf]
      %v2431 = vld [vmem:[%s2416 + $0x38] sm:$0xf]
      %v2432 = vld [vmem:[%s2416 + $0x3c] sm:$0xf]
      %v2433 = vld [vmem:[%s2416 + $0x40] sm:$0xf]
      %v2434 = vld [vmem:[%s2416 + $0x44] sm:$0xf]
      %v2435 = vld [vmem:[%s2416 + $0x48] sm:$0xf]
      %v2436 = vld [vmem:[%s2416 + $0x4c] sm:$0xf]
      %v2437 = vld [vmem:[%s2416 + $0x50] sm:$0xf]
      %v2438 = vld [vmem:[%s2416 + $0x54] sm:$0xf]
      %v2439 = vld [vmem:[%s2416 + $0x58] sm:$0xf]
      %v2440 = vld [vmem:[%s2416 + $0x5c] sm:$0xf]
      %v2441 = vld [vmem:[%s2416 + $0x60] sm:$0xf]
      %v2442 = vld [vmem:[%s2416 + $0x64] sm:$0xf]
      %v2443 = vld [vmem:[%s2416 + $0x68] sm:$0xf]
      %v2444 = vld [vmem:[%s2416 + $0x6c] sm:$0xf]
      %v2445 = vld [vmem:[%s2416 + $0x70] sm:$0xf]
      %v2446 = vld [vmem:[%s2416 + $0x74] sm:$0xf]
      %v2447 = vld [vmem:[%s2416 + $0x78] sm:$0xf]
      %v2448 = vld [vmem:[%s2416 + $0x7c] sm:$0xf]
      %v2449 = vrot.slane %v673, 5
      %v2450 = vrot.slane %v674, 5
      %v2485 = vunpack.c.l.b16 %v2417
      %v2486 = vunpack.c.l.b16 %v2418
      %v2487 = vunpack.c.l.b16 %v2419
      %v2488 = vunpack.c.l.b16 %v2420
      %v2489 = vunpack.c.l.b16 %v2421
      %v2490 = vunpack.c.l.b16 %v2422
      %v2491 = vunpack.c.l.b16 %v2423
      %v2492 = vunpack.c.l.b16 %v2424
      %v2493 = vunpack.c.l.b16 %v2425
      %v2494 = vunpack.c.l.b16 %v2426
      %v2495 = vunpack.c.l.b16 %v2427
      %v2496 = vunpack.c.l.b16 %v2428
      %v2497 = vunpack.c.l.b16 %v2429
      %v2498 = vunpack.c.l.b16 %v2430
      %v2499 = vunpack.c.l.b16 %v2431
      %v2500 = vunpack.c.l.b16 %v2432
      %v2501 = vunpack.c.l.b16 %v2433
      %v2502 = vunpack.c.l.b16 %v2434
      %v2503 = vunpack.c.l.b16 %v2435
      %v2504 = vunpack.c.l.b16 %v2436
      %v2505 = vunpack.c.l.b16 %v2437
      %v2506 = vunpack.c.l.b16 %v2438
      %v2507 = vunpack.c.l.b16 %v2439
      %v2508 = vunpack.c.l.b16 %v2440
      %v2509 = vunpack.c.l.b16 %v2441
      %v2510 = vunpack.c.l.b16 %v2442
      %v2511 = vunpack.c.l.b16 %v2443
      %v2512 = vunpack.c.l.b16 %v2444
      %v2513 = vunpack.c.l.b16 %v2445
      %v2514 = vunpack.c.l.b16 %v2446
      %v2515 = vunpack.c.l.b16 %v2447
      %v2516 = vunpack.c.l.b16 %v2448
      %v2517 = vpack.c.b16 %v2486, %v2485
      %v2518 = vpack.c.b16 %v2488, %v2487
      %v2519 = vpack.c.b16 %v2490, %v2489
      %v2520 = vpack.c.b16 %v2492, %v2491
      %v2521 = vpack.c.b16 %v2494, %v2493
      %v2522 = vpack.c.b16 %v2496, %v2495
      %v2523 = vpack.c.b16 %v2498, %v2497
      %v2524 = vpack.c.b16 %v2500, %v2499
      %v2525 = vpack.c.b16 %v2502, %v2501
      %v2526 = vpack.c.b16 %v2504, %v2503
      %v2527 = vpack.c.b16 %v2506, %v2505
      %v2528 = vpack.c.b16 %v2508, %v2507
      %v2529 = vpack.c.b16 %v2510, %v2509
      %v2530 = vpack.c.b16 %v2512, %v2511
      %v2531 = vpack.c.b16 %v2514, %v2513
      %v2532 = vpack.c.b16 %v2516, %v2515
      %2549 = vmatprep.subr.bf16.mxu0 0
      %2550 = vmatpush1.bf16.msra.mxu0 %v2517
      %2551 = vmatprep.subr.bf16.mxu0 0
      %2552 = vmatpush1.bf16.msra.mxu0 %v2518
      %2553 = vmatprep.subr.bf16.mxu0 0
      %2554 = vmatpush1.bf16.msra.mxu0 %v2519
      %2555 = vmatprep.subr.bf16.mxu0 0
      %2556 = vmatpush1.bf16.msra.mxu0 %v2520
      %2557 = vmatprep.subr.bf16.mxu0 0
      %2558 = vmatpush1.bf16.msra.mxu0 %v2521
      %2559 = vmatprep.subr.bf16.mxu0 0
      %2560 = vmatpush1.bf16.msra.mxu0 %v2522
      %2561 = vmatprep.subr.bf16.mxu0 0
      %2562 = vmatpush1.bf16.msra.mxu0 %v2523
      %2563 = vmatprep.subr.bf16.mxu0 0
      %2564 = vmatpush1.bf16.msra.mxu0 %v2524
      %2565 = vmatprep.subr.bf16.mxu0 0
      %2566 = vmatpush1.bf16.msra.mxu0 %v2525
      %2567 = vmatprep.subr.bf16.mxu0 0
      %2568 = vmatpush1.bf16.msra.mxu0 %v2526
      %2569 = vmatprep.subr.bf16.mxu0 0
      %2570 = vmatpush1.bf16.msra.mxu0 %v2527
      %2571 = vmatprep.subr.bf16.mxu0 0
      %2572 = vmatpush1.bf16.msra.mxu0 %v2528
      %2573 = vmatprep.subr.bf16.mxu0 0
      %2574 = vmatpush1.bf16.msra.mxu0 %v2529
      %2575 = vmatprep.subr.bf16.mxu0 0
      %2576 = vmatpush1.bf16.msra.mxu0 %v2530
      %2577 = vmatprep.subr.bf16.mxu0 0
      %2578 = vmatpush1.bf16.msra.mxu0 %v2531
      %2579 = vmatprep.subr.bf16.mxu0 0
      %2580 = vmatpush1.bf16.msra.mxu0 %v2532
      %2581 = vmatprep.mubr.bf16.mxu0 %v2450
      %2582 = vmatmul.mubr.bf16.gmra.mrb[0].mxu0 %v2449
      %v2583 = vpop.f32.mrb[0].mxu0
      %v2584 = vadd.f32 0.0, %v2583
      %v2585 = vpop.f32.mrb[0].mxu0
      %v2586 = vpop.f32.mrb[0].mxu0
      %v2587 = vpop.f32.mrb[0].mxu0
      %2588 = vdwg.mxu0
      %v2589 = vadd.f32 %v2415, %v2584
      %s2590 = scalar_lea.vmem %s3, 1408
      %v2591 = vld [vmem:[%s2590] sm:$0xf]
      %v2592 = vld [vmem:[%s2590 + $0x4] sm:$0xf]
      %v2593 = vld [vmem:[%s2590 + $0x8] sm:$0xf]
      %v2594 = vld [vmem:[%s2590 + $0xc] sm:$0xf]
      %v2595 = vld [vmem:[%s2590 + $0x10] sm:$0xf]
      %v2596 = vld [vmem:[%s2590 + $0x14] sm:$0xf]
      %v2597 = vld [vmem:[%s2590 + $0x18] sm:$0xf]
      %v2598 = vld [vmem:[%s2590 + $0x1c] sm:$0xf]
      %v2599 = vld [vmem:[%s2590 + $0x20] sm:$0xf]
      %v2600 = vld [vmem:[%s2590 + $0x24] sm:$0xf]
      %v2601 = vld [vmem:[%s2590 + $0x28] sm:$0xf]
      %v2602 = vld [vmem:[%s2590 + $0x2c] sm:$0xf]
      %v2603 = vld [vmem:[%s2590 + $0x30] sm:$0xf]
      %v2604 = vld [vmem:[%s2590 + $0x34] sm:$0xf]
      %v2605 = vld [vmem:[%s2590 + $0x38] sm:$0xf]
      %v2606 = vld [vmem:[%s2590 + $0x3c] sm:$0xf]
      %v2607 = vld [vmem:[%s2590 + $0x40] sm:$0xf]
      %v2608 = vld [vmem:[%s2590 + $0x44] sm:$0xf]
      %v2609 = vld [vmem:[%s2590 + $0x48] sm:$0xf]
      %v2610 = vld [vmem:[%s2590 + $0x4c] sm:$0xf]
      %v2611 = vld [vmem:[%s2590 + $0x50] sm:$0xf]
      %v2612 = vld [vmem:[%s2590 + $0x54] sm:$0xf]
      %v2613 = vld [vmem:[%s2590 + $0x58] sm:$0xf]
      %v2614 = vld [vmem:[%s2590 + $0x5c] sm:$0xf]
      %v2615 = vld [vmem:[%s2590 + $0x60] sm:$0xf]
      %v2616 = vld [vmem:[%s2590 + $0x64] sm:$0xf]
      %v2617 = vld [vmem:[%s2590 + $0x68] sm:$0xf]
      %v2618 = vld [vmem:[%s2590 + $0x6c] sm:$0xf]
      %v2619 = vld [vmem:[%s2590 + $0x70] sm:$0xf]
      %v2620 = vld [vmem:[%s2590 + $0x74] sm:$0xf]
      %v2621 = vld [vmem:[%s2590 + $0x78] sm:$0xf]
      %v2622 = vld [vmem:[%s2590 + $0x7c] sm:$0xf]
      %v2623 = vrot.slane %v743, 5
      %v2624 = vrot.slane %v746, 5
      %v2659 = vunpack.c.l.b16 %v2591
      %v2660 = vunpack.c.l.b16 %v2592
      %v2661 = vunpack.c.l.b16 %v2593
      %v2662 = vunpack.c.l.b16 %v2594
      %v2663 = vunpack.c.l.b16 %v2595
      %v2664 = vunpack.c.l.b16 %v2596
      %v2665 = vunpack.c.l.b16 %v2597
      %v2666 = vunpack.c.l.b16 %v2598
      %v2667 = vunpack.c.l.b16 %v2599
      %v2668 = vunpack.c.l.b16 %v2600
      %v2669 = vunpack.c.l.b16 %v2601
      %v2670 = vunpack.c.l.b16 %v2602
      %v2671 = vunpack.c.l.b16 %v2603
      %v2672 = vunpack.c.l.b16 %v2604
      %v2673 = vunpack.c.l.b16 %v2605
      %v2674 = vunpack.c.l.b16 %v2606
      %v2675 = vunpack.c.l.b16 %v2607
      %v2676 = vunpack.c.l.b16 %v2608
      %v2677 = vunpack.c.l.b16 %v2609
      %v2678 = vunpack.c.l.b16 %v2610
      %v2679 = vunpack.c.l.b16 %v2611
      %v2680 = vunpack.c.l.b16 %v2612
      %v2681 = vunpack.c.l.b16 %v2613
      %v2682 = vunpack.c.l.b16 %v2614
      %v2683 = vunpack.c.l.b16 %v2615
      %v2684 = vunpack.c.l.b16 %v2616
      %v2685 = vunpack.c.l.b16 %v2617
      %v2686 = vunpack.c.l.b16 %v2618
      %v2687 = vunpack.c.l.b16 %v2619
      %v2688 = vunpack.c.l.b16 %v2620
      %v2689 = vunpack.c.l.b16 %v2621
      %v2690 = vunpack.c.l.b16 %v2622
      %v2691 = vpack.c.b16 %v2660, %v2659
      %v2692 = vpack.c.b16 %v2662, %v2661
      %v2693 = vpack.c.b16 %v2664, %v2663
      %v2694 = vpack.c.b16 %v2666, %v2665
      %v2695 = vpack.c.b16 %v2668, %v2667
      %v2696 = vpack.c.b16 %v2670, %v2669
      %v2697 = vpack.c.b16 %v2672, %v2671
      %v2698 = vpack.c.b16 %v2674, %v2673
      %v2699 = vpack.c.b16 %v2676, %v2675
      %v2700 = vpack.c.b16 %v2678, %v2677
      %v2701 = vpack.c.b16 %v2680, %v2679
      %v2702 = vpack.c.b16 %v2682, %v2681
      %v2703 = vpack.c.b16 %v2684, %v2683
      %v2704 = vpack.c.b16 %v2686, %v2685
      %v2705 = vpack.c.b16 %v2688, %v2687
      %v2706 = vpack.c.b16 %v2690, %v2689
      %2723 = vmatprep.subr.bf16.mxu0 0
      %2724 = vmatpush1.bf16.msra.mxu0 %v2691
      %2725 = vmatprep.subr.bf16.mxu0 0
      %2726 = vmatpush1.bf16.msra.mxu0 %v2692
      %2727 = vmatprep.subr.bf16.mxu0 0
      %2728 = vmatpush1.bf16.msra.mxu0 %v2693
      %2729 = vmatprep.subr.bf16.mxu0 0
      %2730 = vmatpush1.bf16.msra.mxu0 %v2694
      %2731 = vmatprep.subr.bf16.mxu0 0
      %2732 = vmatpush1.bf16.msra.mxu0 %v2695
      %2733 = vmatprep.subr.bf16.mxu0 0
      %2734 = vmatpush1.bf16.msra.mxu0 %v2696
      %2735 = vmatprep.subr.bf16.mxu0 0
      %2736 = vmatpush1.bf16.msra.mxu0 %v2697
      %2737 = vmatprep.subr.bf16.mxu0 0
      %2738 = vmatpush1.bf16.msra.mxu0 %v2698
      %2739 = vmatprep.subr.bf16.mxu0 0
      %2740 = vmatpush1.bf16.msra.mxu0 %v2699
      %2741 = vmatprep.subr.bf16.mxu0 0
      %2742 = vmatpush1.bf16.msra.mxu0 %v2700
      %2743 = vmatprep.subr.bf16.mxu0 0
      %2744 = vmatpush1.bf16.msra.mxu0 %v2701
      %2745 = vmatprep.subr.bf16.mxu0 0
      %2746 = vmatpush1.bf16.msra.mxu0 %v2702
      %2747 = vmatprep.subr.bf16.mxu0 0
      %2748 = vmatpush1.bf16.msra.mxu0 %v2703
      %2749 = vmatprep.subr.bf16.mxu0 0
      %2750 = vmatpush1.bf16.msra.mxu0 %v2704
      %2751 = vmatprep.subr.bf16.mxu0 0
      %2752 = vmatpush1.bf16.msra.mxu0 %v2705
      %2753 = vmatprep.subr.bf16.mxu0 0
      %2754 = vmatpush1.bf16.msra.mxu0 %v2706
      %2755 = vmatprep.mubr.bf16.mxu0 %v2624
      %2756 = vmatmul.mubr.bf16.gmra.mrb[0].mxu0 %v2623
      %v2757 = vpop.f32.mrb[0].mxu0
      %v2758 = vadd.f32 0.0, %v2757
      %v2759 = vpop.f32.mrb[0].mxu0
      %v2760 = vpop.f32.mrb[0].mxu0
      %v2761 = vpop.f32.mrb[0].mxu0
      %2762 = vdwg.mxu0
      %v2763 = vadd.f32 %v2589, %v2758
      %s2764 = scalar_lea.vmem %s3, 1536
      %v2765 = vld [vmem:[%s2764] sm:$0xf]
      %v2766 = vld [vmem:[%s2764 + $0x4] sm:$0xf]
      %v2767 = vld [vmem:[%s2764 + $0x8] sm:$0xf]
      %v2768 = vld [vmem:[%s2764 + $0xc] sm:$0xf]
      %v2769 = vld [vmem:[%s2764 + $0x10] sm:$0xf]
      %v2770 = vld [vmem:[%s2764 + $0x14] sm:$0xf]
      %v2771 = vld [vmem:[%s2764 + $0x18] sm:$0xf]
      %v2772 = vld [vmem:[%s2764 + $0x1c] sm:$0xf]
      %v2773 = vld [vmem:[%s2764 + $0x20] sm:$0xf]
      %v2774 = vld [vmem:[%s2764 + $0x24] sm:$0xf]
      %v2775 = vld [vmem:[%s2764 + $0x28] sm:$0xf]
      %v2776 = vld [vmem:[%s2764 + $0x2c] sm:$0xf]
      %v2777 = vld [vmem:[%s2764 + $0x30] sm:$0xf]
      %v2778 = vld [vmem:[%s2764 + $0x34] sm:$0xf]
      %v2779 = vld [vmem:[%s2764 + $0x38] sm:$0xf]
      %v2780 = vld [vmem:[%s2764 + $0x3c] sm:$0xf]
      %v2781 = vld [vmem:[%s2764 + $0x40] sm:$0xf]
      %v2782 = vld [vmem:[%s2764 + $0x44] sm:$0xf]
      %v2783 = vld [vmem:[%s2764 + $0x48] sm:$0xf]
      %v2784 = vld [vmem:[%s2764 + $0x4c] sm:$0xf]
      %v2785 = vld [vmem:[%s2764 + $0x50] sm:$0xf]
      %v2786 = vld [vmem:[%s2764 + $0x54] sm:$0xf]
      %v2787 = vld [vmem:[%s2764 + $0x58] sm:$0xf]
      %v2788 = vld [vmem:[%s2764 + $0x5c] sm:$0xf]
      %v2789 = vld [vmem:[%s2764 + $0x60] sm:$0xf]
      %v2790 = vld [vmem:[%s2764 + $0x64] sm:$0xf]
      %v2791 = vld [vmem:[%s2764 + $0x68] sm:$0xf]
      %v2792 = vld [vmem:[%s2764 + $0x6c] sm:$0xf]
      %v2793 = vld [vmem:[%s2764 + $0x70] sm:$0xf]
      %v2794 = vld [vmem:[%s2764 + $0x74] sm:$0xf]
      %v2795 = vld [vmem:[%s2764 + $0x78] sm:$0xf]
      %v2796 = vld [vmem:[%s2764 + $0x7c] sm:$0xf]
      %v2797 = vrot.slane %v673, 6
      %v2798 = vrot.slane %v674, 6
      %v2833 = vunpack.c.l.b16 %v2765
      %v2834 = vunpack.c.l.b16 %v2766
      %v2835 = vunpack.c.l.b16 %v2767
      %v2836 = vunpack.c.l.b16 %v2768
      %v2837 = vunpack.c.l.b16 %v2769
      %v2838 = vunpack.c.l.b16 %v2770
      %v2839 = vunpack.c.l.b16 %v2771
      %v2840 = vunpack.c.l.b16 %v2772
      %v2841 = vunpack.c.l.b16 %v2773
      %v2842 = vunpack.c.l.b16 %v2774
      %v2843 = vunpack.c.l.b16 %v2775
      %v2844 = vunpack.c.l.b16 %v2776
      %v2845 = vunpack.c.l.b16 %v2777
      %v2846 = vunpack.c.l.b16 %v2778
      %v2847 = vunpack.c.l.b16 %v2779
      %v2848 = vunpack.c.l.b16 %v2780
      %v2849 = vunpack.c.l.b16 %v2781
      %v2850 = vunpack.c.l.b16 %v2782
      %v2851 = vunpack.c.l.b16 %v2783
      %v2852 = vunpack.c.l.b16 %v2784
      %v2853 = vunpack.c.l.b16 %v2785
      %v2854 = vunpack.c.l.b16 %v2786
      %v2855 = vunpack.c.l.b16 %v2787
      %v2856 = vunpack.c.l.b16 %v2788
      %v2857 = vunpack.c.l.b16 %v2789
      %v2858 = vunpack.c.l.b16 %v2790
      %v2859 = vunpack.c.l.b16 %v2791
      %v2860 = vunpack.c.l.b16 %v2792
      %v2861 = vunpack.c.l.b16 %v2793
      %v2862 = vunpack.c.l.b16 %v2794
      %v2863 = vunpack.c.l.b16 %v2795
      %v2864 = vunpack.c.l.b16 %v2796
      %v2865 = vpack.c.b16 %v2834, %v2833
      %v2866 = vpack.c.b16 %v2836, %v2835
      %v2867 = vpack.c.b16 %v2838, %v2837
      %v2868 = vpack.c.b16 %v2840, %v2839
      %v2869 = vpack.c.b16 %v2842, %v2841
      %v2870 = vpack.c.b16 %v2844, %v2843
      %v2871 = vpack.c.b16 %v2846, %v2845
      %v2872 = vpack.c.b16 %v2848, %v2847
      %v2873 = vpack.c.b16 %v2850, %v2849
      %v2874 = vpack.c.b16 %v2852, %v2851
      %v2875 = vpack.c.b16 %v2854, %v2853
      %v2876 = vpack.c.b16 %v2856, %v2855
      %v2877 = vpack.c.b16 %v2858, %v2857
      %v2878 = vpack.c.b16 %v2860, %v2859
      %v2879 = vpack.c.b16 %v2862, %v2861
      %v2880 = vpack.c.b16 %v2864, %v2863
      %2897 = vmatprep.subr.bf16.mxu0 0
      %2898 = vmatpush1.bf16.msra.mxu0 %v2865
      %2899 = vmatprep.subr.bf16.mxu0 0
      %2900 = vmatpush1.bf16.msra.mxu0 %v2866
      %2901 = vmatprep.subr.bf16.mxu0 0
      %2902 = vmatpush1.bf16.msra.mxu0 %v2867
      %2903 = vmatprep.subr.bf16.mxu0 0
      %2904 = vmatpush1.bf16.msra.mxu0 %v2868
      %2905 = vmatprep.subr.bf16.mxu0 0
      %2906 = vmatpush1.bf16.msra.mxu0 %v2869
      %2907 = vmatprep.subr.bf16.mxu0 0
      %2908 = vmatpush1.bf16.msra.mxu0 %v2870
      %2909 = vmatprep.subr.bf16.mxu0 0
      %2910 = vmatpush1.bf16.msra.mxu0 %v2871
      %2911 = vmatprep.subr.bf16.mxu0 0
      %2912 = vmatpush1.bf16.msra.mxu0 %v2872
      %2913 = vmatprep.subr.bf16.mxu0 0
      %2914 = vmatpush1.bf16.msra.mxu0 %v2873
      %2915 = vmatprep.subr.bf16.mxu0 0
      %2916 = vmatpush1.bf16.msra.mxu0 %v2874
      %2917 = vmatprep.subr.bf16.mxu0 0
      %2918 = vmatpush1.bf16.msra.mxu0 %v2875
      %2919 = vmatprep.subr.bf16.mxu0 0
      %2920 = vmatpush1.bf16.msra.mxu0 %v2876
      %2921 = vmatprep.subr.bf16.mxu0 0
      %2922 = vmatpush1.bf16.msra.mxu0 %v2877
      %2923 = vmatprep.subr.bf16.mxu0 0
      %2924 = vmatpush1.bf16.msra.mxu0 %v2878
      %2925 = vmatprep.subr.bf16.mxu0 0
      %2926 = vmatpush1.bf16.msra.mxu0 %v2879
      %2927 = vmatprep.subr.bf16.mxu0 0
      %2928 = vmatpush1.bf16.msra.mxu0 %v2880
      %2929 = vmatprep.mubr.bf16.mxu0 %v2798
      %2930 = vmatmul.mubr.bf16.gmra.mrb[0].mxu0 %v2797
      %v2931 = vpop.f32.mrb[0].mxu0
      %v2932 = vadd.f32 0.0, %v2931
      %v2933 = vpop.f32.mrb[0].mxu0
      %v2934 = vpop.f32.mrb[0].mxu0
      %v2935 = vpop.f32.mrb[0].mxu0
      %2936 = vdwg.mxu0
      %v2937 = vadd.f32 %v2763, %v2932
      %s2938 = scalar_lea.vmem %s3, 1664
      %v2939 = vld [vmem:[%s2938] sm:$0xf]
      %v2940 = vld [vmem:[%s2938 + $0x4] sm:$0xf]
      %v2941 = vld [vmem:[%s2938 + $0x8] sm:$0xf]
      %v2942 = vld [vmem:[%s2938 + $0xc] sm:$0xf]
      %v2943 = vld [vmem:[%s2938 + $0x10] sm:$0xf]
      %v2944 = vld [vmem:[%s2938 + $0x14] sm:$0xf]
      %v2945 = vld [vmem:[%s2938 + $0x18] sm:$0xf]
      %v2946 = vld [vmem:[%s2938 + $0x1c] sm:$0xf]
      %v2947 = vld [vmem:[%s2938 + $0x20] sm:$0xf]
      %v2948 = vld [vmem:[%s2938 + $0x24] sm:$0xf]
      %v2949 = vld [vmem:[%s2938 + $0x28] sm:$0xf]
      %v2950 = vld [vmem:[%s2938 + $0x2c] sm:$0xf]
      %v2951 = vld [vmem:[%s2938 + $0x30] sm:$0xf]
      %v2952 = vld [vmem:[%s2938 + $0x34] sm:$0xf]
      %v2953 = vld [vmem:[%s2938 + $0x38] sm:$0xf]
      %v2954 = vld [vmem:[%s2938 + $0x3c] sm:$0xf]
      %v2955 = vld [vmem:[%s2938 + $0x40] sm:$0xf]
      %v2956 = vld [vmem:[%s2938 + $0x44] sm:$0xf]
      %v2957 = vld [vmem:[%s2938 + $0x48] sm:$0xf]
      %v2958 = vld [vmem:[%s2938 + $0x4c] sm:$0xf]
      %v2959 = vld [vmem:[%s2938 + $0x50] sm:$0xf]
      %v2960 = vld [vmem:[%s2938 + $0x54] sm:$0xf]
      %v2961 = vld [vmem:[%s2938 + $0x58] sm:$0xf]
      %v2962 = vld [vmem:[%s2938 + $0x5c] sm:$0xf]
      %v2963 = vld [vmem:[%s2938 + $0x60] sm:$0xf]
      %v2964 = vld [vmem:[%s2938 + $0x64] sm:$0xf]
      %v2965 = vld [vmem:[%s2938 + $0x68] sm:$0xf]
      %v2966 = vld [vmem:[%s2938 + $0x6c] sm:$0xf]
      %v2967 = vld [vmem:[%s2938 + $0x70] sm:$0xf]
      %v2968 = vld [vmem:[%s2938 + $0x74] sm:$0xf]
      %v2969 = vld [vmem:[%s2938 + $0x78] sm:$0xf]
      %v2970 = vld [vmem:[%s2938 + $0x7c] sm:$0xf]
      %v2971 = vrot.slane %v743, 6
      %v2972 = vrot.slane %v746, 6
      %v3007 = vunpack.c.l.b16 %v2939
      %v3008 = vunpack.c.l.b16 %v2940
      %v3009 = vunpack.c.l.b16 %v2941
      %v3010 = vunpack.c.l.b16 %v2942
      %v3011 = vunpack.c.l.b16 %v2943
      %v3012 = vunpack.c.l.b16 %v2944
      %v3013 = vunpack.c.l.b16 %v2945
      %v3014 = vunpack.c.l.b16 %v2946
      %v3015 = vunpack.c.l.b16 %v2947
      %v3016 = vunpack.c.l.b16 %v2948
      %v3017 = vunpack.c.l.b16 %v2949
      %v3018 = vunpack.c.l.b16 %v2950
      %v3019 = vunpack.c.l.b16 %v2951
      %v3020 = vunpack.c.l.b16 %v2952
      %v3021 = vunpack.c.l.b16 %v2953
      %v3022 = vunpack.c.l.b16 %v2954
      %v3023 = vunpack.c.l.b16 %v2955
      %v3024 = vunpack.c.l.b16 %v2956
      %v3025 = vunpack.c.l.b16 %v2957
      %v3026 = vunpack.c.l.b16 %v2958
      %v3027 = vunpack.c.l.b16 %v2959
      %v3028 = vunpack.c.l.b16 %v2960
      %v3029 = vunpack.c.l.b16 %v2961
      %v3030 = vunpack.c.l.b16 %v2962
      %v3031 = vunpack.c.l.b16 %v2963
      %v3032 = vunpack.c.l.b16 %v2964
      %v3033 = vunpack.c.l.b16 %v2965
      %v3034 = vunpack.c.l.b16 %v2966
      %v3035 = vunpack.c.l.b16 %v2967
      %v3036 = vunpack.c.l.b16 %v2968
      %v3037 = vunpack.c.l.b16 %v2969
      %v3038 = vunpack.c.l.b16 %v2970
      %v3039 = vpack.c.b16 %v3008, %v3007
      %v3040 = vpack.c.b16 %v3010, %v3009
      %v3041 = vpack.c.b16 %v3012, %v3011
      %v3042 = vpack.c.b16 %v3014, %v3013
      %v3043 = vpack.c.b16 %v3016, %v3015
      %v3044 = vpack.c.b16 %v3018, %v3017
      %v3045 = vpack.c.b16 %v3020, %v3019
      %v3046 = vpack.c.b16 %v3022, %v3021
      %v3047 = vpack.c.b16 %v3024, %v3023
      %v3048 = vpack.c.b16 %v3026, %v3025
      %v3049 = vpack.c.b16 %v3028, %v3027
      %v3050 = vpack.c.b16 %v3030, %v3029
      %v3051 = vpack.c.b16 %v3032, %v3031
      %v3052 = vpack.c.b16 %v3034, %v3033
      %v3053 = vpack.c.b16 %v3036, %v3035
      %v3054 = vpack.c.b16 %v3038, %v3037
      %3071 = vmatprep.subr.bf16.mxu0 0
      %3072 = vmatpush1.bf16.msra.mxu0 %v3039
      %3073 = vmatprep.subr.bf16.mxu0 0
      %3074 = vmatpush1.bf16.msra.mxu0 %v3040
      %3075 = vmatprep.subr.bf16.mxu0 0
      %3076 = vmatpush1.bf16.msra.mxu0 %v3041
      %3077 = vmatprep.subr.bf16.mxu0 0
      %3078 = vmatpush1.bf16.msra.mxu0 %v3042
      %3079 = vmatprep.subr.bf16.mxu0 0
      %3080 = vmatpush1.bf16.msra.mxu0 %v3043
      %3081 = vmatprep.subr.bf16.mxu0 0
      %3082 = vmatpush1.bf16.msra.mxu0 %v3044
      %3083 = vmatprep.subr.bf16.mxu0 0
      %3084 = vmatpush1.bf16.msra.mxu0 %v3045
      %3085 = vmatprep.subr.bf16.mxu0 0
      %3086 = vmatpush1.bf16.msra.mxu0 %v3046
      %3087 = vmatprep.subr.bf16.mxu0 0
      %3088 = vmatpush1.bf16.msra.mxu0 %v3047
      %3089 = vmatprep.subr.bf16.mxu0 0
      %3090 = vmatpush1.bf16.msra.mxu0 %v3048
      %3091 = vmatprep.subr.bf16.mxu0 0
      %3092 = vmatpush1.bf16.msra.mxu0 %v3049
      %3093 = vmatprep.subr.bf16.mxu0 0
      %3094 = vmatpush1.bf16.msra.mxu0 %v3050
      %3095 = vmatprep.subr.bf16.mxu0 0
      %3096 = vmatpush1.bf16.msra.mxu0 %v3051
      %3097 = vmatprep.subr.bf16.mxu0 0
      %3098 = vmatpush1.bf16.msra.mxu0 %v3052
      %3099 = vmatprep.subr.bf16.mxu0 0
      %3100 = vmatpush1.bf16.msra.mxu0 %v3053
      %3101 = vmatprep.subr.bf16.mxu0 0
      %3102 = vmatpush1.bf16.msra.mxu0 %v3054
      %3103 = vmatprep.mubr.bf16.mxu0 %v2972
      %3104 = vmatmul.mubr.bf16.gmra.mrb[0].mxu0 %v2971
      %v3105 = vpop.f32.mrb[0].mxu0
      %v3106 = vadd.f32 0.0, %v3105
      %v3107 = vpop.f32.mrb[0].mxu0
      %v3108 = vpop.f32.mrb[0].mxu0
      %v3109 = vpop.f32.mrb[0].mxu0
      %3110 = vdwg.mxu0
      %v3111 = vadd.f32 %v2937, %v3106
      %s3112 = scalar_lea.vmem %s3, 1792
      %v3113 = vld [vmem:[%s3112] sm:$0xf]
      %v3114 = vld [vmem:[%s3112 + $0x4] sm:$0xf]
      %v3115 = vld [vmem:[%s3112 + $0x8] sm:$0xf]
      %v3116 = vld [vmem:[%s3112 + $0xc] sm:$0xf]
      %v3117 = vld [vmem:[%s3112 + $0x10] sm:$0xf]
      %v3118 = vld [vmem:[%s3112 + $0x14] sm:$0xf]
      %v3119 = vld [vmem:[%s3112 + $0x18] sm:$0xf]
      %v3120 = vld [vmem:[%s3112 + $0x1c] sm:$0xf]
      %v3121 = vld [vmem:[%s3112 + $0x20] sm:$0xf]
      %v3122 = vld [vmem:[%s3112 + $0x24] sm:$0xf]
      %v3123 = vld [vmem:[%s3112 + $0x28] sm:$0xf]
      %v3124 = vld [vmem:[%s3112 + $0x2c] sm:$0xf]
      %v3125 = vld [vmem:[%s3112 + $0x30] sm:$0xf]
      %v3126 = vld [vmem:[%s3112 + $0x34] sm:$0xf]
      %v3127 = vld [vmem:[%s3112 + $0x38] sm:$0xf]
      %v3128 = vld [vmem:[%s3112 + $0x3c] sm:$0xf]
      %v3129 = vld [vmem:[%s3112 + $0x40] sm:$0xf]
      %v3130 = vld [vmem:[%s3112 + $0x44] sm:$0xf]
      %v3131 = vld [vmem:[%s3112 + $0x48] sm:$0xf]
      %v3132 = vld [vmem:[%s3112 + $0x4c] sm:$0xf]
      %v3133 = vld [vmem:[%s3112 + $0x50] sm:$0xf]
      %v3134 = vld [vmem:[%s3112 + $0x54] sm:$0xf]
      %v3135 = vld [vmem:[%s3112 + $0x58] sm:$0xf]
      %v3136 = vld [vmem:[%s3112 + $0x5c] sm:$0xf]
      %v3137 = vld [vmem:[%s3112 + $0x60] sm:$0xf]
      %v3138 = vld [vmem:[%s3112 + $0x64] sm:$0xf]
      %v3139 = vld [vmem:[%s3112 + $0x68] sm:$0xf]
      %v3140 = vld [vmem:[%s3112 + $0x6c] sm:$0xf]
      %v3141 = vld [vmem:[%s3112 + $0x70] sm:$0xf]
      %v3142 = vld [vmem:[%s3112 + $0x74] sm:$0xf]
      %v3143 = vld [vmem:[%s3112 + $0x78] sm:$0xf]
      %v3144 = vld [vmem:[%s3112 + $0x7c] sm:$0xf]
      %v3145 = vrot.slane %v673, 7
      %v3146 = vrot.slane %v674, 7
      %v3181 = vunpack.c.l.b16 %v3113
      %v3182 = vunpack.c.l.b16 %v3114
      %v3183 = vunpack.c.l.b16 %v3115
      %v3184 = vunpack.c.l.b16 %v3116
      %v3185 = vunpack.c.l.b16 %v3117
      %v3186 = vunpack.c.l.b16 %v3118
      %v3187 = vunpack.c.l.b16 %v3119
      %v3188 = vunpack.c.l.b16 %v3120
      %v3189 = vunpack.c.l.b16 %v3121
      %v3190 = vunpack.c.l.b16 %v3122
      %v3191 = vunpack.c.l.b16 %v3123
      %v3192 = vunpack.c.l.b16 %v3124
      %v3193 = vunpack.c.l.b16 %v3125
      %v3194 = vunpack.c.l.b16 %v3126
      %v3195 = vunpack.c.l.b16 %v3127
      %v3196 = vunpack.c.l.b16 %v3128
      %v3197 = vunpack.c.l.b16 %v3129
      %v3198 = vunpack.c.l.b16 %v3130
      %v3199 = vunpack.c.l.b16 %v3131
      %v3200 = vunpack.c.l.b16 %v3132
      %v3201 = vunpack.c.l.b16 %v3133
      %v3202 = vunpack.c.l.b16 %v3134
      %v3203 = vunpack.c.l.b16 %v3135
      %v3204 = vunpack.c.l.b16 %v3136
      %v3205 = vunpack.c.l.b16 %v3137
      %v3206 = vunpack.c.l.b16 %v3138
      %v3207 = vunpack.c.l.b16 %v3139
      %v3208 = vunpack.c.l.b16 %v3140
      %v3209 = vunpack.c.l.b16 %v3141
      %v3210 = vunpack.c.l.b16 %v3142
      %v3211 = vunpack.c.l.b16 %v3143
      %v3212 = vunpack.c.l.b16 %v3144
      %v3213 = vpack.c.b16 %v3182, %v3181
      %v3214 = vpack.c.b16 %v3184, %v3183
      %v3215 = vpack.c.b16 %v3186, %v3185
      %v3216 = vpack.c.b16 %v3188, %v3187
      %v3217 = vpack.c.b16 %v3190, %v3189
      %v3218 = vpack.c.b16 %v3192, %v3191
      %v3219 = vpack.c.b16 %v3194, %v3193
      %v3220 = vpack.c.b16 %v3196, %v3195
      %v3221 = vpack.c.b16 %v3198, %v3197
      %v3222 = vpack.c.b16 %v3200, %v3199
      %v3223 = vpack.c.b16 %v3202, %v3201
      %v3224 = vpack.c.b16 %v3204, %v3203
      %v3225 = vpack.c.b16 %v3206, %v3205
      %v3226 = vpack.c.b16 %v3208, %v3207
      %v3227 = vpack.c.b16 %v3210, %v3209
      %v3228 = vpack.c.b16 %v3212, %v3211
      %3245 = vmatprep.subr.bf16.mxu0 0
      %3246 = vmatpush1.bf16.msra.mxu0 %v3213
      %3247 = vmatprep.subr.bf16.mxu0 0
      %3248 = vmatpush1.bf16.msra.mxu0 %v3214
      %3249 = vmatprep.subr.bf16.mxu0 0
      %3250 = vmatpush1.bf16.msra.mxu0 %v3215
      %3251 = vmatprep.subr.bf16.mxu0 0
      %3252 = vmatpush1.bf16.msra.mxu0 %v3216
      %3253 = vmatprep.subr.bf16.mxu0 0
      %3254 = vmatpush1.bf16.msra.mxu0 %v3217
      %3255 = vmatprep.subr.bf16.mxu0 0
      %3256 = vmatpush1.bf16.msra.mxu0 %v3218
      %3257 = vmatprep.subr.bf16.mxu0 0
      %3258 = vmatpush1.bf16.msra.mxu0 %v3219
      %3259 = vmatprep.subr.bf16.mxu0 0
      %3260 = vmatpush1.bf16.msra.mxu0 %v3220
      %3261 = vmatprep.subr.bf16.mxu0 0
      %3262 = vmatpush1.bf16.msra.mxu0 %v3221
      %3263 = vmatprep.subr.bf16.mxu0 0
      %3264 = vmatpush1.bf16.msra.mxu0 %v3222
      %3265 = vmatprep.subr.bf16.mxu0 0
      %3266 = vmatpush1.bf16.msra.mxu0 %v3223
      %3267 = vmatprep.subr.bf16.mxu0 0
      %3268 = vmatpush1.bf16.msra.mxu0 %v3224
      %3269 = vmatprep.subr.bf16.mxu0 0
      %3270 = vmatpush1.bf16.msra.mxu0 %v3225
      %3271 = vmatprep.subr.bf16.mxu0 0
      %3272 = vmatpush1.bf16.msra.mxu0 %v3226
      %3273 = vmatprep.subr.bf16.mxu0 0
      %3274 = vmatpush1.bf16.msra.mxu0 %v3227
      %3275 = vmatprep.subr.bf16.mxu0 0
      %3276 = vmatpush1.bf16.msra.mxu0 %v3228
      %3277 = vmatprep.mubr.bf16.mxu0 %v3146
      %3278 = vmatmul.mubr.bf16.gmra.mrb[0].mxu0 %v3145
      %v3279 = vpop.f32.mrb[0].mxu0
      %v3280 = vadd.f32 0.0, %v3279
      %v3281 = vpop.f32.mrb[0].mxu0
      %v3282 = vpop.f32.mrb[0].mxu0
      %v3283 = vpop.f32.mrb[0].mxu0
      %3284 = vdwg.mxu0
      %v3285 = vadd.f32 %v3111, %v3280
      %s3286 = scalar_lea.vmem %s3, 1920
      %v3287 = vld [vmem:[%s3286] sm:$0xf]
      %v3288 = vld [vmem:[%s3286 + $0x4] sm:$0xf]
      %v3289 = vld [vmem:[%s3286 + $0x8] sm:$0xf]
      %v3290 = vld [vmem:[%s3286 + $0xc] sm:$0xf]
      %v3291 = vld [vmem:[%s3286 + $0x10] sm:$0xf]
      %v3292 = vld [vmem:[%s3286 + $0x14] sm:$0xf]
      %v3293 = vld [vmem:[%s3286 + $0x18] sm:$0xf]
      %v3294 = vld [vmem:[%s3286 + $0x1c] sm:$0xf]
      %v3295 = vld [vmem:[%s3286 + $0x20] sm:$0xf]
      %v3296 = vld [vmem:[%s3286 + $0x24] sm:$0xf]
      %v3297 = vld [vmem:[%s3286 + $0x28] sm:$0xf]
      %v3298 = vld [vmem:[%s3286 + $0x2c] sm:$0xf]
      %v3299 = vld [vmem:[%s3286 + $0x30] sm:$0xf]
      %v3300 = vld [vmem:[%s3286 + $0x34] sm:$0xf]
      %v3301 = vld [vmem:[%s3286 + $0x38] sm:$0xf]
      %v3302 = vld [vmem:[%s3286 + $0x3c] sm:$0xf]
      %v3303 = vld [vmem:[%s3286 + $0x40] sm:$0xf]
      %v3304 = vld [vmem:[%s3286 + $0x44] sm:$0xf]
      %v3305 = vld [vmem:[%s3286 + $0x48] sm:$0xf]
      %v3306 = vld [vmem:[%s3286 + $0x4c] sm:$0xf]
      %v3307 = vld [vmem:[%s3286 + $0x50] sm:$0xf]
      %v3308 = vld [vmem:[%s3286 + $0x54] sm:$0xf]
      %v3309 = vld [vmem:[%s3286 + $0x58] sm:$0xf]
      %v3310 = vld [vmem:[%s3286 + $0x5c] sm:$0xf]
      %v3311 = vld [vmem:[%s3286 + $0x60] sm:$0xf]
      %v3312 = vld [vmem:[%s3286 + $0x64] sm:$0xf]
      %v3313 = vld [vmem:[%s3286 + $0x68] sm:$0xf]
      %v3314 = vld [vmem:[%s3286 + $0x6c] sm:$0xf]
      %v3315 = vld [vmem:[%s3286 + $0x70] sm:$0xf]
      %v3316 = vld [vmem:[%s3286 + $0x74] sm:$0xf]
      %v3317 = vld [vmem:[%s3286 + $0x78] sm:$0xf]
      %v3318 = vld [vmem:[%s3286 + $0x7c] sm:$0xf]
      %v3319 = vrot.slane %v743, 7
      %v3320 = vrot.slane %v746, 7
      %v3355 = vunpack.c.l.b16 %v3287
      %v3356 = vunpack.c.l.b16 %v3288
      %v3357 = vunpack.c.l.b16 %v3289
      %v3358 = vunpack.c.l.b16 %v3290
      %v3359 = vunpack.c.l.b16 %v3291
      %v3360 = vunpack.c.l.b16 %v3292
      %v3361 = vunpack.c.l.b16 %v3293
      %v3362 = vunpack.c.l.b16 %v3294
      %v3363 = vunpack.c.l.b16 %v3295
      %v3364 = vunpack.c.l.b16 %v3296
      %v3365 = vunpack.c.l.b16 %v3297
      %v3366 = vunpack.c.l.b16 %v3298
      %v3367 = vunpack.c.l.b16 %v3299
      %v3368 = vunpack.c.l.b16 %v3300
      %v3369 = vunpack.c.l.b16 %v3301
      %v3370 = vunpack.c.l.b16 %v3302
      %v3371 = vunpack.c.l.b16 %v3303
      %v3372 = vunpack.c.l.b16 %v3304
      %v3373 = vunpack.c.l.b16 %v3305
      %v3374 = vunpack.c.l.b16 %v3306
      %v3375 = vunpack.c.l.b16 %v3307
      %v3376 = vunpack.c.l.b16 %v3308
      %v3377 = vunpack.c.l.b16 %v3309
      %v3378 = vunpack.c.l.b16 %v3310
      %v3379 = vunpack.c.l.b16 %v3311
      %v3380 = vunpack.c.l.b16 %v3312
      %v3381 = vunpack.c.l.b16 %v3313
      %v3382 = vunpack.c.l.b16 %v3314
      %v3383 = vunpack.c.l.b16 %v3315
      %v3384 = vunpack.c.l.b16 %v3316
      %v3385 = vunpack.c.l.b16 %v3317
      %v3386 = vunpack.c.l.b16 %v3318
      %v3387 = vpack.c.b16 %v3356, %v3355
      %v3388 = vpack.c.b16 %v3358, %v3357
      %v3389 = vpack.c.b16 %v3360, %v3359
      %v3390 = vpack.c.b16 %v3362, %v3361
      %v3391 = vpack.c.b16 %v3364, %v3363
      %v3392 = vpack.c.b16 %v3366, %v3365
      %v3393 = vpack.c.b16 %v3368, %v3367
      %v3394 = vpack.c.b16 %v3370, %v3369
      %v3395 = vpack.c.b16 %v3372, %v3371
      %v3396 = vpack.c.b16 %v3374, %v3373
      %v3397 = vpack.c.b16 %v3376, %v3375
      %v3398 = vpack.c.b16 %v3378, %v3377
      %v3399 = vpack.c.b16 %v3380, %v3379
      %v3400 = vpack.c.b16 %v3382, %v3381
      %v3401 = vpack.c.b16 %v3384, %v3383
      %v3402 = vpack.c.b16 %v3386, %v3385
      %3419 = vmatprep.subr.bf16.mxu0 0
      %3420 = vmatpush1.bf16.msra.mxu0 %v3387
      %3421 = vmatprep.subr.bf16.mxu0 0
      %3422 = vmatpush1.bf16.msra.mxu0 %v3388
      %3423 = vmatprep.subr.bf16.mxu0 0
      %3424 = vmatpush1.bf16.msra.mxu0 %v3389
      %3425 = vmatprep.subr.bf16.mxu0 0
      %3426 = vmatpush1.bf16.msra.mxu0 %v3390
      %3427 = vmatprep.subr.bf16.mxu0 0
      %3428 = vmatpush1.bf16.msra.mxu0 %v3391
      %3429 = vmatprep.subr.bf16.mxu0 0
      %3430 = vmatpush1.bf16.msra.mxu0 %v3392
      %3431 = vmatprep.subr.bf16.mxu0 0
      %3432 = vmatpush1.bf16.msra.mxu0 %v3393
      %3433 = vmatprep.subr.bf16.mxu0 0
      %3434 = vmatpush1.bf16.msra.mxu0 %v3394
      %3435 = vmatprep.subr.bf16.mxu0 0
      %3436 = vmatpush1.bf16.msra.mxu0 %v3395
      %3437 = vmatprep.subr.bf16.mxu0 0
      %3438 = vmatpush1.bf16.msra.mxu0 %v3396
      %3439 = vmatprep.subr.bf16.mxu0 0
      %3440 = vmatpush1.bf16.msra.mxu0 %v3397
      %3441 = vmatprep.subr.bf16.mxu0 0
      %3442 = vmatpush1.bf16.msra.mxu0 %v3398
      %3443 = vmatprep.subr.bf16.mxu0 0
      %3444 = vmatpush1.bf16.msra.mxu0 %v3399
      %3445 = vmatprep.subr.bf16.mxu0 0
      %3446 = vmatpush1.bf16.msra.mxu0 %v3400
      %3447 = vmatprep.subr.bf16.mxu0 0
      %3448 = vmatpush1.bf16.msra.mxu0 %v3401
      %3449 = vmatprep.subr.bf16.mxu0 0
      %3450 = vmatpush1.bf16.msra.mxu0 %v3402
      %3451 = vmatprep.mubr.bf16.mxu0 %v3320
      %3452 = vmatmul.mubr.bf16.gmra.mrb[0].mxu0 %v3319
      %v3453 = vpop.f32.mrb[0].mxu0
      %v3454 = vadd.f32 0.0, %v3453
      %v3455 = vpop.f32.mrb[0].mxu0
      %v3456 = vpop.f32.mrb[0].mxu0
      %v3457 = vpop.f32.mrb[0].mxu0
      %3458 = vdwg.mxu0
      %v3459 = vadd.f32 %v3285, %v3454
      %s3460 = scalar_lea.vmem %s3, 2048
      %v3461 = vld [vmem:[%s3460] sm:$0xf]
      %v3462 = vld [vmem:[%s3460 + $0x4] sm:$0xf]
      %v3463 = vld [vmem:[%s3460 + $0x8] sm:$0xf]
      %v3464 = vld [vmem:[%s3460 + $0xc] sm:$0xf]
      %v3465 = vld [vmem:[%s3460 + $0x10] sm:$0xf]
      %v3466 = vld [vmem:[%s3460 + $0x14] sm:$0xf]
      %v3467 = vld [vmem:[%s3460 + $0x18] sm:$0xf]
      %v3468 = vld [vmem:[%s3460 + $0x1c] sm:$0xf]
      %v3469 = vld [vmem:[%s3460 + $0x20] sm:$0xf]
      %v3470 = vld [vmem:[%s3460 + $0x24] sm:$0xf]
      %v3471 = vld [vmem:[%s3460 + $0x28] sm:$0xf]
      %v3472 = vld [vmem:[%s3460 + $0x2c] sm:$0xf]
      %v3473 = vld [vmem:[%s3460 + $0x30] sm:$0xf]
      %v3474 = vld [vmem:[%s3460 + $0x34] sm:$0xf]
      %v3475 = vld [vmem:[%s3460 + $0x38] sm:$0xf]
      %v3476 = vld [vmem:[%s3460 + $0x3c] sm:$0xf]
      %v3477 = vld [vmem:[%s3460 + $0x40] sm:$0xf]
      %v3478 = vld [vmem:[%s3460 + $0x44] sm:$0xf]
      %v3479 = vld [vmem:[%s3460 + $0x48] sm:$0xf]
      %v3480 = vld [vmem:[%s3460 + $0x4c] sm:$0xf]
      %v3481 = vld [vmem:[%s3460 + $0x50] sm:$0xf]
      %v3482 = vld [vmem:[%s3460 + $0x54] sm:$0xf]
      %v3483 = vld [vmem:[%s3460 + $0x58] sm:$0xf]
      %v3484 = vld [vmem:[%s3460 + $0x5c] sm:$0xf]
      %v3485 = vld [vmem:[%s3460 + $0x60] sm:$0xf]
      %v3486 = vld [vmem:[%s3460 + $0x64] sm:$0xf]
      %v3487 = vld [vmem:[%s3460 + $0x68] sm:$0xf]
      %v3488 = vld [vmem:[%s3460 + $0x6c] sm:$0xf]
      %v3489 = vld [vmem:[%s3460 + $0x70] sm:$0xf]
      %v3490 = vld [vmem:[%s3460 + $0x74] sm:$0xf]
      %v3491 = vld [vmem:[%s3460 + $0x78] sm:$0xf]
      %v3492 = vld [vmem:[%s3460 + $0x7c] sm:$0xf]
      %v3525 = vunpack.c.l.b16 %v3461
      %v3526 = vunpack.c.l.b16 %v3462
      %v3527 = vunpack.c.l.b16 %v3463
      %v3528 = vunpack.c.l.b16 %v3464
      %v3529 = vunpack.c.l.b16 %v3465
      %v3530 = vunpack.c.l.b16 %v3466
      %v3531 = vunpack.c.l.b16 %v3467
      %v3532 = vunpack.c.l.b16 %v3468
      %v3533 = vunpack.c.l.b16 %v3469
      %v3534 = vunpack.c.l.b16 %v3470
      %v3535 = vunpack.c.l.b16 %v3471
      %v3536 = vunpack.c.l.b16 %v3472
      %v3537 = vunpack.c.l.b16 %v3473
      %v3538 = vunpack.c.l.b16 %v3474
      %v3539 = vunpack.c.l.b16 %v3475
      %v3540 = vunpack.c.l.b16 %v3476
      %v3541 = vunpack.c.l.b16 %v3477
      %v3542 = vunpack.c.l.b16 %v3478
      %v3543 = vunpack.c.l.b16 %v3479
      %v3544 = vunpack.c.l.b16 %v3480
      %v3545 = vunpack.c.l.b16 %v3481
      %v3546 = vunpack.c.l.b16 %v3482
      %v3547 = vunpack.c.l.b16 %v3483
      %v3548 = vunpack.c.l.b16 %v3484
      %v3549 = vunpack.c.l.b16 %v3485
      %v3550 = vunpack.c.l.b16 %v3486
      %v3551 = vunpack.c.l.b16 %v3487
      %v3552 = vunpack.c.l.b16 %v3488
      %v3553 = vunpack.c.l.b16 %v3489
      %v3554 = vunpack.c.l.b16 %v3490
      %v3555 = vunpack.c.l.b16 %v3491
      %v3556 = vunpack.c.l.b16 %v3492
      %v3557 = vpack.c.b16 %v3526, %v3525
      %v3558 = vpack.c.b16 %v3528, %v3527
      %v3559 = vpack.c.b16 %v3530, %v3529
      %v3560 = vpack.c.b16 %v3532, %v3531
      %v3561 = vpack.c.b16 %v3534, %v3533
      %v3562 = vpack.c.b16 %v3536, %v3535
      %v3563 = vpack.c.b16 %v3538, %v3537
      %v3564 = vpack.c.b16 %v3540, %v3539
      %v3565 = vpack.c.b16 %v3542, %v3541
      %v3566 = vpack.c.b16 %v3544, %v3543
      %v3567 = vpack.c.b16 %v3546, %v3545
      %v3568 = vpack.c.b16 %v3548, %v3547
      %v3569 = vpack.c.b16 %v3550, %v3549
      %v3570 = vpack.c.b16 %v3552, %v3551
      %v3571 = vpack.c.b16 %v3554, %v3553
      %v3572 = vpack.c.b16 %v3556, %v3555
      %3589 = vmatprep.subr.bf16.mxu0 0
      %3590 = vmatpush1.bf16.msra.mxu0 %v3557
      %3591 = vmatprep.subr.bf16.mxu0 0
      %3592 = vmatpush1.bf16.msra.mxu0 %v3558
      %3593 = vmatprep.subr.bf16.mxu0 0
      %3594 = vmatpush1.bf16.msra.mxu0 %v3559
      %3595 = vmatprep.subr.bf16.mxu0 0
      %3596 = vmatpush1.bf16.msra.mxu0 %v3560
      %3597 = vmatprep.subr.bf16.mxu0 0
      %3598 = vmatpush1.bf16.msra.mxu0 %v3561
      %3599 = vmatprep.subr.bf16.mxu0 0
      %3600 = vmatpush1.bf16.msra.mxu0 %v3562
      %3601 = vmatprep.subr.bf16.mxu0 0
      %3602 = vmatpush1.bf16.msra.mxu0 %v3563
      %3603 = vmatprep.subr.bf16.mxu0 0
      %3604 = vmatpush1.bf16.msra.mxu0 %v3564
      %3605 = vmatprep.subr.bf16.mxu0 0
      %3606 = vmatpush1.bf16.msra.mxu0 %v3565
      %3607 = vmatprep.subr.bf16.mxu0 0
      %3608 = vmatpush1.bf16.msra.mxu0 %v3566
      %3609 = vmatprep.subr.bf16.mxu0 0
      %3610 = vmatpush1.bf16.msra.mxu0 %v3567
      %3611 = vmatprep.subr.bf16.mxu0 0
      %3612 = vmatpush1.bf16.msra.mxu0 %v3568
      %3613 = vmatprep.subr.bf16.mxu0 0
      %3614 = vmatpush1.bf16.msra.mxu0 %v3569
      %3615 = vmatprep.subr.bf16.mxu0 0
      %3616 = vmatpush1.bf16.msra.mxu0 %v3570
      %3617 = vmatprep.subr.bf16.mxu0 0
      %3618 = vmatpush1.bf16.msra.mxu0 %v3571
      %3619 = vmatprep.subr.bf16.mxu0 0
      %3620 = vmatpush1.bf16.msra.mxu0 %v3572
      %3621 = vmatprep.mubr.bf16.mxu0 %v676
      %3622 = vmatmul.mubr.bf16.gmra.mrb[0].mxu0 %v675
      %v3623 = vpop.f32.mrb[0].mxu0
      %v3624 = vadd.f32 0.0, %v3623
      %v3625 = vpop.f32.mrb[0].mxu0
      %v3626 = vpop.f32.mrb[0].mxu0
      %v3627 = vpop.f32.mrb[0].mxu0
      %3628 = vdwg.mxu0
      %v3629 = vadd.f32 %v3459, %v3624
      %s3630 = scalar_lea.vmem %s3, 2176
      %v3631 = vld [vmem:[%s3630] sm:$0xf]
      %v3632 = vld [vmem:[%s3630 + $0x4] sm:$0xf]
      %v3633 = vld [vmem:[%s3630 + $0x8] sm:$0xf]
      %v3634 = vld [vmem:[%s3630 + $0xc] sm:$0xf]
      %v3635 = vld [vmem:[%s3630 + $0x10] sm:$0xf]
      %v3636 = vld [vmem:[%s3630 + $0x14] sm:$0xf]
      %v3637 = vld [vmem:[%s3630 + $0x18] sm:$0xf]
      %v3638 = vld [vmem:[%s3630 + $0x1c] sm:$0xf]
      %v3639 = vld [vmem:[%s3630 + $0x20] sm:$0xf]
      %v3640 = vld [vmem:[%s3630 + $0x24] sm:$0xf]
      %v3641 = vld [vmem:[%s3630 + $0x28] sm:$0xf]
      %v3642 = vld [vmem:[%s3630 + $0x2c] sm:$0xf]
      %v3643 = vld [vmem:[%s3630 + $0x30] sm:$0xf]
      %v3644 = vld [vmem:[%s3630 + $0x34] sm:$0xf]
      %v3645 = vld [vmem:[%s3630 + $0x38] sm:$0xf]
      %v3646 = vld [vmem:[%s3630 + $0x3c] sm:$0xf]
      %v3647 = vld [vmem:[%s3630 + $0x40] sm:$0xf]
      %v3648 = vld [vmem:[%s3630 + $0x44] sm:$0xf]
      %v3649 = vld [vmem:[%s3630 + $0x48] sm:$0xf]
      %v3650 = vld [vmem:[%s3630 + $0x4c] sm:$0xf]
      %v3651 = vld [vmem:[%s3630 + $0x50] sm:$0xf]
      %v3652 = vld [vmem:[%s3630 + $0x54] sm:$0xf]
      %v3653 = vld [vmem:[%s3630 + $0x58] sm:$0xf]
      %v3654 = vld [vmem:[%s3630 + $0x5c] sm:$0xf]
      %v3655 = vld [vmem:[%s3630 + $0x60] sm:$0xf]
      %v3656 = vld [vmem:[%s3630 + $0x64] sm:$0xf]
      %v3657 = vld [vmem:[%s3630 + $0x68] sm:$0xf]
      %v3658 = vld [vmem:[%s3630 + $0x6c] sm:$0xf]
      %v3659 = vld [vmem:[%s3630 + $0x70] sm:$0xf]
      %v3660 = vld [vmem:[%s3630 + $0x74] sm:$0xf]
      %v3661 = vld [vmem:[%s3630 + $0x78] sm:$0xf]
      %v3662 = vld [vmem:[%s3630 + $0x7c] sm:$0xf]
      %v3664 = vshrl.u32 %v675, 16
      %v3667 = vshrl.u32 %v676, 16
      %v3703 = vunpack.c.l.b16 %v3631
      %v3704 = vunpack.c.l.b16 %v3632
      %v3705 = vunpack.c.l.b16 %v3633
      %v3706 = vunpack.c.l.b16 %v3634
      %v3707 = vunpack.c.l.b16 %v3635
      %v3708 = vunpack.c.l.b16 %v3636
      %v3709 = vunpack.c.l.b16 %v3637
      %v3710 = vunpack.c.l.b16 %v3638
      %v3711 = vunpack.c.l.b16 %v3639
      %v3712 = vunpack.c.l.b16 %v3640
      %v3713 = vunpack.c.l.b16 %v3641
      %v3714 = vunpack.c.l.b16 %v3642
      %v3715 = vunpack.c.l.b16 %v3643
      %v3716 = vunpack.c.l.b16 %v3644
      %v3717 = vunpack.c.l.b16 %v3645
      %v3718 = vunpack.c.l.b16 %v3646
      %v3719 = vunpack.c.l.b16 %v3647
      %v3720 = vunpack.c.l.b16 %v3648
      %v3721 = vunpack.c.l.b16 %v3649
      %v3722 = vunpack.c.l.b16 %v3650
      %v3723 = vunpack.c.l.b16 %v3651
      %v3724 = vunpack.c.l.b16 %v3652
      %v3725 = vunpack.c.l.b16 %v3653
      %v3726 = vunpack.c.l.b16 %v3654
      %v3727 = vunpack.c.l.b16 %v3655
      %v3728 = vunpack.c.l.b16 %v3656
      %v3729 = vunpack.c.l.b16 %v3657
      %v3730 = vunpack.c.l.b16 %v3658
      %v3731 = vunpack.c.l.b16 %v3659
      %v3732 = vunpack.c.l.b16 %v3660
      %v3733 = vunpack.c.l.b16 %v3661
      %v3734 = vunpack.c.l.b16 %v3662
      %v3735 = vpack.c.b16 %v3704, %v3703
      %v3736 = vpack.c.b16 %v3706, %v3705
      %v3737 = vpack.c.b16 %v3708, %v3707
      %v3738 = vpack.c.b16 %v3710, %v3709
      %v3739 = vpack.c.b16 %v3712, %v3711
      %v3740 = vpack.c.b16 %v3714, %v3713
      %v3741 = vpack.c.b16 %v3716, %v3715
      %v3742 = vpack.c.b16 %v3718, %v3717
      %v3743 = vpack.c.b16 %v3720, %v3719
      %v3744 = vpack.c.b16 %v3722, %v3721
      %v3745 = vpack.c.b16 %v3724, %v3723
      %v3746 = vpack.c.b16 %v3726, %v3725
      %v3747 = vpack.c.b16 %v3728, %v3727
      %v3748 = vpack.c.b16 %v3730, %v3729
      %v3749 = vpack.c.b16 %v3732, %v3731
      %v3750 = vpack.c.b16 %v3734, %v3733
      %3767 = vmatprep.subr.bf16.mxu0 0
      %3768 = vmatpush1.bf16.msra.mxu0 %v3735
      %3769 = vmatprep.subr.bf16.mxu0 0
      %3770 = vmatpush1.bf16.msra.mxu0 %v3736
      %3771 = vmatprep.subr.bf16.mxu0 0
      %3772 = vmatpush1.bf16.msra.mxu0 %v3737
      %3773 = vmatprep.subr.bf16.mxu0 0
      %3774 = vmatpush1.bf16.msra.mxu0 %v3738
      %3775 = vmatprep.subr.bf16.mxu0 0
      %3776 = vmatpush1.bf16.msra.mxu0 %v3739
      %3777 = vmatprep.subr.bf16.mxu0 0
      %3778 = vmatpush1.bf16.msra.mxu0 %v3740
      %3779 = vmatprep.subr.bf16.mxu0 0
      %3780 = vmatpush1.bf16.msra.mxu0 %v3741
      %3781 = vmatprep.subr.bf16.mxu0 0
      %3782 = vmatpush1.bf16.msra.mxu0 %v3742
      %3783 = vmatprep.subr.bf16.mxu0 0
      %3784 = vmatpush1.bf16.msra.mxu0 %v3743
      %3785 = vmatprep.subr.bf16.mxu0 0
      %3786 = vmatpush1.bf16.msra.mxu0 %v3744
      %3787 = vmatprep.subr.bf16.mxu0 0
      %3788 = vmatpush1.bf16.msra.mxu0 %v3745
      %3789 = vmatprep.subr.bf16.mxu0 0
      %3790 = vmatpush1.bf16.msra.mxu0 %v3746
      %3791 = vmatprep.subr.bf16.mxu0 0
      %3792 = vmatpush1.bf16.msra.mxu0 %v3747
      %3793 = vmatprep.subr.bf16.mxu0 0
      %3794 = vmatpush1.bf16.msra.mxu0 %v3748
      %3795 = vmatprep.subr.bf16.mxu0 0
      %3796 = vmatpush1.bf16.msra.mxu0 %v3749
      %3797 = vmatprep.subr.bf16.mxu0 0
      %3798 = vmatpush1.bf16.msra.mxu0 %v3750
      %3799 = vmatprep.mubr.bf16.mxu0 %v3667
      %3800 = vmatmul.mubr.bf16.gmra.mrb[0].mxu0 %v3664
      %v3801 = vpop.f32.mrb[0].mxu0
      %v3802 = vadd.f32 0.0, %v3801
      %v3803 = vpop.f32.mrb[0].mxu0
      %v3804 = vpop.f32.mrb[0].mxu0
      %v3805 = vpop.f32.mrb[0].mxu0
      %3806 = vdwg.mxu0
      %v3807 = vadd.f32 %v3629, %v3802
      %s3808 = scalar_lea.vmem %s3, 2304
      %v3809 = vld [vmem:[%s3808] sm:$0xf]
      %v3810 = vld [vmem:[%s3808 + $0x4] sm:$0xf]
      %v3811 = vld [vmem:[%s3808 + $0x8] sm:$0xf]
      %v3812 = vld [vmem:[%s3808 + $0xc] sm:$0xf]
      %v3813 = vld [vmem:[%s3808 + $0x10] sm:$0xf]
      %v3814 = vld [vmem:[%s3808 + $0x14] sm:$0xf]
      %v3815 = vld [vmem:[%s3808 + $0x18] sm:$0xf]
      %v3816 = vld [vmem:[%s3808 + $0x1c] sm:$0xf]
      %v3817 = vld [vmem:[%s3808 + $0x20] sm:$0xf]
      %v3818 = vld [vmem:[%s3808 + $0x24] sm:$0xf]
      %v3819 = vld [vmem:[%s3808 + $0x28] sm:$0xf]
      %v3820 = vld [vmem:[%s3808 + $0x2c] sm:$0xf]
      %v3821 = vld [vmem:[%s3808 + $0x30] sm:$0xf]
      %v3822 = vld [vmem:[%s3808 + $0x34] sm:$0xf]
      %v3823 = vld [vmem:[%s3808 + $0x38] sm:$0xf]
      %v3824 = vld [vmem:[%s3808 + $0x3c] sm:$0xf]
      %v3825 = vld [vmem:[%s3808 + $0x40] sm:$0xf]
      %v3826 = vld [vmem:[%s3808 + $0x44] sm:$0xf]
      %v3827 = vld [vmem:[%s3808 + $0x48] sm:$0xf]
      %v3828 = vld [vmem:[%s3808 + $0x4c] sm:$0xf]
      %v3829 = vld [vmem:[%s3808 + $0x50] sm:$0xf]
      %v3830 = vld [vmem:[%s3808 + $0x54] sm:$0xf]
      %v3831 = vld [vmem:[%s3808 + $0x58] sm:$0xf]
      %v3832 = vld [vmem:[%s3808 + $0x5c] sm:$0xf]
      %v3833 = vld [vmem:[%s3808 + $0x60] sm:$0xf]
      %v3834 = vld [vmem:[%s3808 + $0x64] sm:$0xf]
      %v3835 = vld [vmem:[%s3808 + $0x68] sm:$0xf]
      %v3836 = vld [vmem:[%s3808 + $0x6c] sm:$0xf]
      %v3837 = vld [vmem:[%s3808 + $0x70] sm:$0xf]
      %v3838 = vld [vmem:[%s3808 + $0x74] sm:$0xf]
      %v3839 = vld [vmem:[%s3808 + $0x78] sm:$0xf]
      %v3840 = vld [vmem:[%s3808 + $0x7c] sm:$0xf]
      %v3843 = vrot.slane %v675, 1
      %v3844 = vrot.slane %v676, 1
      %v3879 = vunpack.c.l.b16 %v3809
      %v3880 = vunpack.c.l.b16 %v3810
      %v3881 = vunpack.c.l.b16 %v3811
      %v3882 = vunpack.c.l.b16 %v3812
      %v3883 = vunpack.c.l.b16 %v3813
      %v3884 = vunpack.c.l.b16 %v3814
      %v3885 = vunpack.c.l.b16 %v3815
      %v3886 = vunpack.c.l.b16 %v3816
      %v3887 = vunpack.c.l.b16 %v3817
      %v3888 = vunpack.c.l.b16 %v3818
      %v3889 = vunpack.c.l.b16 %v3819
      %v3890 = vunpack.c.l.b16 %v3820
      %v3891 = vunpack.c.l.b16 %v3821
      %v3892 = vunpack.c.l.b16 %v3822
      %v3893 = vunpack.c.l.b16 %v3823
      %v3894 = vunpack.c.l.b16 %v3824
      %v3895 = vunpack.c.l.b16 %v3825
      %v3896 = vunpack.c.l.b16 %v3826
      %v3897 = vunpack.c.l.b16 %v3827
      %v3898 = vunpack.c.l.b16 %v3828
      %v3899 = vunpack.c.l.b16 %v3829
      %v3900 = vunpack.c.l.b16 %v3830
      %v3901 = vunpack.c.l.b16 %v3831
      %v3902 = vunpack.c.l.b16 %v3832
      %v3903 = vunpack.c.l.b16 %v3833
      %v3904 = vunpack.c.l.b16 %v3834
      %v3905 = vunpack.c.l.b16 %v3835
      %v3906 = vunpack.c.l.b16 %v3836
      %v3907 = vunpack.c.l.b16 %v3837
      %v3908 = vunpack.c.l.b16 %v3838
      %v3909 = vunpack.c.l.b16 %v3839
      %v3910 = vunpack.c.l.b16 %v3840
      %v3911 = vpack.c.b16 %v3880, %v3879
      %v3912 = vpack.c.b16 %v3882, %v3881
      %v3913 = vpack.c.b16 %v3884, %v3883
      %v3914 = vpack.c.b16 %v3886, %v3885
      %v3915 = vpack.c.b16 %v3888, %v3887
      %v3916 = vpack.c.b16 %v3890, %v3889
      %v3917 = vpack.c.b16 %v3892, %v3891
      %v3918 = vpack.c.b16 %v3894, %v3893
      %v3919 = vpack.c.b16 %v3896, %v3895
      %v3920 = vpack.c.b16 %v3898, %v3897
      %v3921 = vpack.c.b16 %v3900, %v3899
      %v3922 = vpack.c.b16 %v3902, %v3901
      %v3923 = vpack.c.b16 %v3904, %v3903
      %v3924 = vpack.c.b16 %v3906, %v3905
      %v3925 = vpack.c.b16 %v3908, %v3907
      %v3926 = vpack.c.b16 %v3910, %v3909
      %3943 = vmatprep.subr.bf16.mxu0 0
      %3944 = vmatpush1.bf16.msra.mxu0 %v3911
      %3945 = vmatprep.subr.bf16.mxu0 0
      %3946 = vmatpush1.bf16.msra.mxu0 %v3912
      %3947 = vmatprep.subr.bf16.mxu0 0
      %3948 = vmatpush1.bf16.msra.mxu0 %v3913
      %3949 = vmatprep.subr.bf16.mxu0 0
      %3950 = vmatpush1.bf16.msra.mxu0 %v3914
      %3951 = vmatprep.subr.bf16.mxu0 0
      %3952 = vmatpush1.bf16.msra.mxu0 %v3915
      %3953 = vmatprep.subr.bf16.mxu0 0
      %3954 = vmatpush1.bf16.msra.mxu0 %v3916
      %3955 = vmatprep.subr.bf16.mxu0 0
      %3956 = vmatpush1.bf16.msra.mxu0 %v3917
      %3957 = vmatprep.subr.bf16.mxu0 0
      %3958 = vmatpush1.bf16.msra.mxu0 %v3918
      %3959 = vmatprep.subr.bf16.mxu0 0
      %3960 = vmatpush1.bf16.msra.mxu0 %v3919
      %3961 = vmatprep.subr.bf16.mxu0 0
      %3962 = vmatpush1.bf16.msra.mxu0 %v3920
      %3963 = vmatprep.subr.bf16.mxu0 0
      %3964 = vmatpush1.bf16.msra.mxu0 %v3921
      %3965 = vmatprep.subr.bf16.mxu0 0
      %3966 = vmatpush1.bf16.msra.mxu0 %v3922
      %3967 = vmatprep.subr.bf16.mxu0 0
      %3968 = vmatpush1.bf16.msra.mxu0 %v3923
      %3969 = vmatprep.subr.bf16.mxu0 0
      %3970 = vmatpush1.bf16.msra.mxu0 %v3924
      %3971 = vmatprep.subr.bf16.mxu0 0
      %3972 = vmatpush1.bf16.msra.mxu0 %v3925
      %3973 = vmatprep.subr.bf16.mxu0 0
      %3974 = vmatpush1.bf16.msra.mxu0 %v3926
      %3975 = vmatprep.mubr.bf16.mxu0 %v3844
      %3976 = vmatmul.mubr.bf16.gmra.mrb[0].mxu0 %v3843
      %v3977 = vpop.f32.mrb[0].mxu0
      %v3978 = vadd.f32 0.0, %v3977
      %v3979 = vpop.f32.mrb[0].mxu0
      %v3980 = vpop.f32.mrb[0].mxu0
      %v3981 = vpop.f32.mrb[0].mxu0
      %3982 = vdwg.mxu0
      %v3983 = vadd.f32 %v3807, %v3978
      %s3984 = scalar_lea.vmem %s3, 2432
      %v3985 = vld [vmem:[%s3984] sm:$0xf]
      %v3986 = vld [vmem:[%s3984 + $0x4] sm:$0xf]
      %v3987 = vld [vmem:[%s3984 + $0x8] sm:$0xf]
      %v3988 = vld [vmem:[%s3984 + $0xc] sm:$0xf]
      %v3989 = vld [vmem:[%s3984 + $0x10] sm:$0xf]
      %v3990 = vld [vmem:[%s3984 + $0x14] sm:$0xf]
      %v3991 = vld [vmem:[%s3984 + $0x18] sm:$0xf]
      %v3992 = vld [vmem:[%s3984 + $0x1c] sm:$0xf]
      %v3993 = vld [vmem:[%s3984 + $0x20] sm:$0xf]
      %v3994 = vld [vmem:[%s3984 + $0x24] sm:$0xf]
      %v3995 = vld [vmem:[%s3984 + $0x28] sm:$0xf]
      %v3996 = vld [vmem:[%s3984 + $0x2c] sm:$0xf]
      %v3997 = vld [vmem:[%s3984 + $0x30] sm:$0xf]
      %v3998 = vld [vmem:[%s3984 + $0x34] sm:$0xf]
      %v3999 = vld [vmem:[%s3984 + $0x38] sm:$0xf]
      %v4000 = vld [vmem:[%s3984 + $0x3c] sm:$0xf]
      %v4001 = vld [vmem:[%s3984 + $0x40] sm:$0xf]
      %v4002 = vld [vmem:[%s3984 + $0x44] sm:$0xf]
      %v4003 = vld [vmem:[%s3984 + $0x48] sm:$0xf]
      %v4004 = vld [vmem:[%s3984 + $0x4c] sm:$0xf]
      %v4005 = vld [vmem:[%s3984 + $0x50] sm:$0xf]
      %v4006 = vld [vmem:[%s3984 + $0x54] sm:$0xf]
      %v4007 = vld [vmem:[%s3984 + $0x58] sm:$0xf]
      %v4008 = vld [vmem:[%s3984 + $0x5c] sm:$0xf]
      %v4009 = vld [vmem:[%s3984 + $0x60] sm:$0xf]
      %v4010 = vld [vmem:[%s3984 + $0x64] sm:$0xf]
      %v4011 = vld [vmem:[%s3984 + $0x68] sm:$0xf]
      %v4012 = vld [vmem:[%s3984 + $0x6c] sm:$0xf]
      %v4013 = vld [vmem:[%s3984 + $0x70] sm:$0xf]
      %v4014 = vld [vmem:[%s3984 + $0x74] sm:$0xf]
      %v4015 = vld [vmem:[%s3984 + $0x78] sm:$0xf]
      %v4016 = vld [vmem:[%s3984 + $0x7c] sm:$0xf]
      %v4017 = vrot.slane %v3664, 1
      %v4018 = vrot.slane %v3667, 1
      %v4053 = vunpack.c.l.b16 %v3985
      %v4054 = vunpack.c.l.b16 %v3986
      %v4055 = vunpack.c.l.b16 %v3987
      %v4056 = vunpack.c.l.b16 %v3988
      %v4057 = vunpack.c.l.b16 %v3989
      %v4058 = vunpack.c.l.b16 %v3990
      %v4059 = vunpack.c.l.b16 %v3991
      %v4060 = vunpack.c.l.b16 %v3992
      %v4061 = vunpack.c.l.b16 %v3993
      %v4062 = vunpack.c.l.b16 %v3994
      %v4063 = vunpack.c.l.b16 %v3995
      %v4064 = vunpack.c.l.b16 %v3996
      %v4065 = vunpack.c.l.b16 %v3997
      %v4066 = vunpack.c.l.b16 %v3998
      %v4067 = vunpack.c.l.b16 %v3999
      %v4068 = vunpack.c.l.b16 %v4000
      %v4069 = vunpack.c.l.b16 %v4001
      %v4070 = vunpack.c.l.b16 %v4002
      %v4071 = vunpack.c.l.b16 %v4003
      %v4072 = vunpack.c.l.b16 %v4004
      %v4073 = vunpack.c.l.b16 %v4005
      %v4074 = vunpack.c.l.b16 %v4006
      %v4075 = vunpack.c.l.b16 %v4007
      %v4076 = vunpack.c.l.b16 %v4008
      %v4077 = vunpack.c.l.b16 %v4009
      %v4078 = vunpack.c.l.b16 %v4010
      %v4079 = vunpack.c.l.b16 %v4011
      %v4080 = vunpack.c.l.b16 %v4012
      %v4081 = vunpack.c.l.b16 %v4013
      %v4082 = vunpack.c.l.b16 %v4014
      %v4083 = vunpack.c.l.b16 %v4015
      %v4084 = vunpack.c.l.b16 %v4016
      %v4085 = vpack.c.b16 %v4054, %v4053
      %v4086 = vpack.c.b16 %v4056, %v4055
      %v4087 = vpack.c.b16 %v4058, %v4057
      %v4088 = vpack.c.b16 %v4060, %v4059
      %v4089 = vpack.c.b16 %v4062, %v4061
      %v4090 = vpack.c.b16 %v4064, %v4063
      %v4091 = vpack.c.b16 %v4066, %v4065
      %v4092 = vpack.c.b16 %v4068, %v4067
      %v4093 = vpack.c.b16 %v4070, %v4069
      %v4094 = vpack.c.b16 %v4072, %v4071
      %v4095 = vpack.c.b16 %v4074, %v4073
      %v4096 = vpack.c.b16 %v4076, %v4075
      %v4097 = vpack.c.b16 %v4078, %v4077
      %v4098 = vpack.c.b16 %v4080, %v4079
      %v4099 = vpack.c.b16 %v4082, %v4081
      %v4100 = vpack.c.b16 %v4084, %v4083
      %4117 = vmatprep.subr.bf16.mxu0 0
      %4118 = vmatpush1.bf16.msra.mxu0 %v4085
      %4119 = vmatprep.subr.bf16.mxu0 0
      %4120 = vmatpush1.bf16.msra.mxu0 %v4086
      %4121 = vmatprep.subr.bf16.mxu0 0
      %4122 = vmatpush1.bf16.msra.mxu0 %v4087
      %4123 = vmatprep.subr.bf16.mxu0 0
      %4124 = vmatpush1.bf16.msra.mxu0 %v4088
      %4125 = vmatprep.subr.bf16.mxu0 0
      %4126 = vmatpush1.bf16.msra.mxu0 %v4089
      %4127 = vmatprep.subr.bf16.mxu0 0
      %4128 = vmatpush1.bf16.msra.mxu0 %v4090
      %4129 = vmatprep.subr.bf16.mxu0 0
      %4130 = vmatpush1.bf16.msra.mxu0 %v4091
      %4131 = vmatprep.subr.bf16.mxu0 0
      %4132 = vmatpush1.bf16.msra.mxu0 %v4092
      %4133 = vmatprep.subr.bf16.mxu0 0
      %4134 = vmatpush1.bf16.msra.mxu0 %v4093
      %4135 = vmatprep.subr.bf16.mxu0 0
      %4136 = vmatpush1.bf16.msra.mxu0 %v4094
      %4137 = vmatprep.subr.bf16.mxu0 0
      %4138 = vmatpush1.bf16.msra.mxu0 %v4095
      %4139 = vmatprep.subr.bf16.mxu0 0
      %4140 = vmatpush1.bf16.msra.mxu0 %v4096
      %4141 = vmatprep.subr.bf16.mxu0 0
      %4142 = vmatpush1.bf16.msra.mxu0 %v4097
      %4143 = vmatprep.subr.bf16.mxu0 0
      %4144 = vmatpush1.bf16.msra.mxu0 %v4098
      %4145 = vmatprep.subr.bf16.mxu0 0
      %4146 = vmatpush1.bf16.msra.mxu0 %v4099
      %4147 = vmatprep.subr.bf16.mxu0 0
      %4148 = vmatpush1.bf16.msra.mxu0 %v4100
      %4149 = vmatprep.mubr.bf16.mxu0 %v4018
      %4150 = vmatmul.mubr.bf16.gmra.mrb[0].mxu0 %v4017
      %v4151 = vpop.f32.mrb[0].mxu0
      %v4152 = vadd.f32 0.0, %v4151
      %v4153 = vpop.f32.mrb[0].mxu0
      %v4154 = vpop.f32.mrb[0].mxu0
      %v4155 = vpop.f32.mrb[0].mxu0
      %4156 = vdwg.mxu0
      %v4157 = vadd.f32 %v3983, %v4152
      %s4158 = scalar_lea.vmem %s3, 2560
      %v4159 = vld [vmem:[%s4158] sm:$0xf]
      %v4160 = vld [vmem:[%s4158 + $0x4] sm:$0xf]
      %v4161 = vld [vmem:[%s4158 + $0x8] sm:$0xf]
      %v4162 = vld [vmem:[%s4158 + $0xc] sm:$0xf]
      %v4163 = vld [vmem:[%s4158 + $0x10] sm:$0xf]
      %v4164 = vld [vmem:[%s4158 + $0x14] sm:$0xf]
      %v4165 = vld [vmem:[%s4158 + $0x18] sm:$0xf]
      %v4166 = vld [vmem:[%s4158 + $0x1c] sm:$0xf]
      %v4167 = vld [vmem:[%s4158 + $0x20] sm:$0xf]
      %v4168 = vld [vmem:[%s4158 + $0x24] sm:$0xf]
      %v4169 = vld [vmem:[%s4158 + $0x28] sm:$0xf]
      %v4170 = vld [vmem:[%s4158 + $0x2c] sm:$0xf]
      %v4171 = vld [vmem:[%s4158 + $0x30] sm:$0xf]
      %v4172 = vld [vmem:[%s4158 + $0x34] sm:$0xf]
      %v4173 = vld [vmem:[%s4158 + $0x38] sm:$0xf]
      %v4174 = vld [vmem:[%s4158 + $0x3c] sm:$0xf]
      %v4175 = vld [vmem:[%s4158 + $0x40] sm:$0xf]
      %v4176 = vld [vmem:[%s4158 + $0x44] sm:$0xf]
      %v4177 = vld [vmem:[%s4158 + $0x48] sm:$0xf]
      %v4178 = vld [vmem:[%s4158 + $0x4c] sm:$0xf]
      %v4179 = vld [vmem:[%s4158 + $0x50] sm:$0xf]
      %v4180 = vld [vmem:[%s4158 + $0x54] sm:$0xf]
      %v4181 = vld [vmem:[%s4158 + $0x58] sm:$0xf]
      %v4182 = vld [vmem:[%s4158 + $0x5c] sm:$0xf]
      %v4183 = vld [vmem:[%s4158 + $0x60] sm:$0xf]
      %v4184 = vld [vmem:[%s4158 + $0x64] sm:$0xf]
      %v4185 = vld [vmem:[%s4158 + $0x68] sm:$0xf]
      %v4186 = vld [vmem:[%s4158 + $0x6c] sm:$0xf]
      %v4187 = vld [vmem:[%s4158 + $0x70] sm:$0xf]
      %v4188 = vld [vmem:[%s4158 + $0x74] sm:$0xf]
      %v4189 = vld [vmem:[%s4158 + $0x78] sm:$0xf]
      %v4190 = vld [vmem:[%s4158 + $0x7c] sm:$0xf]
      %v4191 = vrot.slane %v675, 2
      %v4192 = vrot.slane %v676, 2
      %v4227 = vunpack.c.l.b16 %v4159
      %v4228 = vunpack.c.l.b16 %v4160
      %v4229 = vunpack.c.l.b16 %v4161
      %v4230 = vunpack.c.l.b16 %v4162
      %v4231 = vunpack.c.l.b16 %v4163
      %v4232 = vunpack.c.l.b16 %v4164
      %v4233 = vunpack.c.l.b16 %v4165
      %v4234 = vunpack.c.l.b16 %v4166
      %v4235 = vunpack.c.l.b16 %v4167
      %v4236 = vunpack.c.l.b16 %v4168
      %v4237 = vunpack.c.l.b16 %v4169
      %v4238 = vunpack.c.l.b16 %v4170
      %v4239 = vunpack.c.l.b16 %v4171
      %v4240 = vunpack.c.l.b16 %v4172
      %v4241 = vunpack.c.l.b16 %v4173
      %v4242 = vunpack.c.l.b16 %v4174
      %v4243 = vunpack.c.l.b16 %v4175
      %v4244 = vunpack.c.l.b16 %v4176
      %v4245 = vunpack.c.l.b16 %v4177
      %v4246 = vunpack.c.l.b16 %v4178
      %v4247 = vunpack.c.l.b16 %v4179
      %v4248 = vunpack.c.l.b16 %v4180
      %v4249 = vunpack.c.l.b16 %v4181
      %v4250 = vunpack.c.l.b16 %v4182
      %v4251 = vunpack.c.l.b16 %v4183
      %v4252 = vunpack.c.l.b16 %v4184
      %v4253 = vunpack.c.l.b16 %v4185
      %v4254 = vunpack.c.l.b16 %v4186
      %v4255 = vunpack.c.l.b16 %v4187
      %v4256 = vunpack.c.l.b16 %v4188
      %v4257 = vunpack.c.l.b16 %v4189
      %v4258 = vunpack.c.l.b16 %v4190
      %v4259 = vpack.c.b16 %v4228, %v4227
      %v4260 = vpack.c.b16 %v4230, %v4229
      %v4261 = vpack.c.b16 %v4232, %v4231
      %v4262 = vpack.c.b16 %v4234, %v4233
      %v4263 = vpack.c.b16 %v4236, %v4235
      %v4264 = vpack.c.b16 %v4238, %v4237
      %v4265 = vpack.c.b16 %v4240, %v4239
      %v4266 = vpack.c.b16 %v4242, %v4241
      %v4267 = vpack.c.b16 %v4244, %v4243
      %v4268 = vpack.c.b16 %v4246, %v4245
      %v4269 = vpack.c.b16 %v4248, %v4247
      %v4270 = vpack.c.b16 %v4250, %v4249
      %v4271 = vpack.c.b16 %v4252, %v4251
      %v4272 = vpack.c.b16 %v4254, %v4253
      %v4273 = vpack.c.b16 %v4256, %v4255
      %v4274 = vpack.c.b16 %v4258, %v4257
      %4291 = vmatprep.subr.bf16.mxu0 0
      %4292 = vmatpush1.bf16.msra.mxu0 %v4259
      %4293 = vmatprep.subr.bf16.mxu0 0
      %4294 = vmatpush1.bf16.msra.mxu0 %v4260
      %4295 = vmatprep.subr.bf16.mxu0 0
      %4296 = vmatpush1.bf16.msra.mxu0 %v4261
      %4297 = vmatprep.subr.bf16.mxu0 0
      %4298 = vmatpush1.bf16.msra.mxu0 %v4262
      %4299 = vmatprep.subr.bf16.mxu0 0
      %4300 = vmatpush1.bf16.msra.mxu0 %v4263
      %4301 = vmatprep.subr.bf16.mxu0 0
      %4302 = vmatpush1.bf16.msra.mxu0 %v4264
      %4303 = vmatprep.subr.bf16.mxu0 0
      %4304 = vmatpush1.bf16.msra.mxu0 %v4265
      %4305 = vmatprep.subr.bf16.mxu0 0
      %4306 = vmatpush1.bf16.msra.mxu0 %v4266
      %4307 = vmatprep.subr.bf16.mxu0 0
      %4308 = vmatpush1.bf16.msra.mxu0 %v4267
      %4309 = vmatprep.subr.bf16.mxu0 0
      %4310 = vmatpush1.bf16.msra.mxu0 %v4268
      %4311 = vmatprep.subr.bf16.mxu0 0
      %4312 = vmatpush1.bf16.msra.mxu0 %v4269
      %4313 = vmatprep.subr.bf16.mxu0 0
      %4314 = vmatpush1.bf16.msra.mxu0 %v4270
      %4315 = vmatprep.subr.bf16.mxu0 0
      %4316 = vmatpush1.bf16.msra.mxu0 %v4271
      %4317 = vmatprep.subr.bf16.mxu0 0
      %4318 = vmatpush1.bf16.msra.mxu0 %v4272
      %4319 = vmatprep.subr.bf16.mxu0 0
      %4320 = vmatpush1.bf16.msra.mxu0 %v4273
      %4321 = vmatprep.subr.bf16.mxu0 0
      %4322 = vmatpush1.bf16.msra.mxu0 %v4274
      %4323 = vmatprep.mubr.bf16.mxu0 %v4192
      %4324 = vmatmul.mubr.bf16.gmra.mrb[0].mxu0 %v4191
      %v4325 = vpop.f32.mrb[0].mxu0
      %v4326 = vadd.f32 0.0, %v4325
      %v4327 = vpop.f32.mrb[0].mxu0
      %v4328 = vpop.f32.mrb[0].mxu0
      %v4329 = vpop.f32.mrb[0].mxu0
      %4330 = vdwg.mxu0
      %v4331 = vadd.f32 %v4157, %v4326
      %s4332 = scalar_lea.vmem %s3, 2688
      %v4333 = vld [vmem:[%s4332] sm:$0xf]
      %v4334 = vld [vmem:[%s4332 + $0x4] sm:$0xf]
      %v4335 = vld [vmem:[%s4332 + $0x8] sm:$0xf]
      %v4336 = vld [vmem:[%s4332 + $0xc] sm:$0xf]
      %v4337 = vld [vmem:[%s4332 + $0x10] sm:$0xf]
      %v4338 = vld [vmem:[%s4332 + $0x14] sm:$0xf]
      %v4339 = vld [vmem:[%s4332 + $0x18] sm:$0xf]
      %v4340 = vld [vmem:[%s4332 + $0x1c] sm:$0xf]
      %v4341 = vld [vmem:[%s4332 + $0x20] sm:$0xf]
      %v4342 = vld [vmem:[%s4332 + $0x24] sm:$0xf]
      %v4343 = vld [vmem:[%s4332 + $0x28] sm:$0xf]
      %v4344 = vld [vmem:[%s4332 + $0x2c] sm:$0xf]
      %v4345 = vld [vmem:[%s4332 + $0x30] sm:$0xf]
      %v4346 = vld [vmem:[%s4332 + $0x34] sm:$0xf]
      %v4347 = vld [vmem:[%s4332 + $0x38] sm:$0xf]
      %v4348 = vld [vmem:[%s4332 + $0x3c] sm:$0xf]
      %v4349 = vld [vmem:[%s4332 + $0x40] sm:$0xf]
      %v4350 = vld [vmem:[%s4332 + $0x44] sm:$0xf]
      %v4351 = vld [vmem:[%s4332 + $0x48] sm:$0xf]
      %v4352 = vld [vmem:[%s4332 + $0x4c] sm:$0xf]
      %v4353 = vld [vmem:[%s4332 + $0x50] sm:$0xf]
      %v4354 = vld [vmem:[%s4332 + $0x54] sm:$0xf]
      %v4355 = vld [vmem:[%s4332 + $0x58] sm:$0xf]
      %v4356 = vld [vmem:[%s4332 + $0x5c] sm:$0xf]
      %v4357 = vld [vmem:[%s4332 + $0x60] sm:$0xf]
      %v4358 = vld [vmem:[%s4332 + $0x64] sm:$0xf]
      %v4359 = vld [vmem:[%s4332 + $0x68] sm:$0xf]
      %v4360 = vld [vmem:[%s4332 + $0x6c] sm:$0xf]
      %v4361 = vld [vmem:[%s4332 + $0x70] sm:$0xf]
      %v4362 = vld [vmem:[%s4332 + $0x74] sm:$0xf]
      %v4363 = vld [vmem:[%s4332 + $0x78] sm:$0xf]
      %v4364 = vld [vmem:[%s4332 + $0x7c] sm:$0xf]
      %v4365 = vrot.slane %v3664, 2
      %v4366 = vrot.slane %v3667, 2
      %v4401 = vunpack.c.l.b16 %v4333
      %v4402 = vunpack.c.l.b16 %v4334
      %v4403 = vunpack.c.l.b16 %v4335
      %v4404 = vunpack.c.l.b16 %v4336
      %v4405 = vunpack.c.l.b16 %v4337
      %v4406 = vunpack.c.l.b16 %v4338
      %v4407 = vunpack.c.l.b16 %v4339
      %v4408 = vunpack.c.l.b16 %v4340
      %v4409 = vunpack.c.l.b16 %v4341
      %v4410 = vunpack.c.l.b16 %v4342
      %v4411 = vunpack.c.l.b16 %v4343
      %v4412 = vunpack.c.l.b16 %v4344
      %v4413 = vunpack.c.l.b16 %v4345
      %v4414 = vunpack.c.l.b16 %v4346
      %v4415 = vunpack.c.l.b16 %v4347
      %v4416 = vunpack.c.l.b16 %v4348
      %v4417 = vunpack.c.l.b16 %v4349
      %v4418 = vunpack.c.l.b16 %v4350
      %v4419 = vunpack.c.l.b16 %v4351
      %v4420 = vunpack.c.l.b16 %v4352
      %v4421 = vunpack.c.l.b16 %v4353
      %v4422 = vunpack.c.l.b16 %v4354
      %v4423 = vunpack.c.l.b16 %v4355
      %v4424 = vunpack.c.l.b16 %v4356
      %v4425 = vunpack.c.l.b16 %v4357
      %v4426 = vunpack.c.l.b16 %v4358
      %v4427 = vunpack.c.l.b16 %v4359
      %v4428 = vunpack.c.l.b16 %v4360
      %v4429 = vunpack.c.l.b16 %v4361
      %v4430 = vunpack.c.l.b16 %v4362
      %v4431 = vunpack.c.l.b16 %v4363
      %v4432 = vunpack.c.l.b16 %v4364
      %v4433 = vpack.c.b16 %v4402, %v4401
      %v4434 = vpack.c.b16 %v4404, %v4403
      %v4435 = vpack.c.b16 %v4406, %v4405
      %v4436 = vpack.c.b16 %v4408, %v4407
      %v4437 = vpack.c.b16 %v4410, %v4409
      %v4438 = vpack.c.b16 %v4412, %v4411
      %v4439 = vpack.c.b16 %v4414, %v4413
      %v4440 = vpack.c.b16 %v4416, %v4415
      %v4441 = vpack.c.b16 %v4418, %v4417
      %v4442 = vpack.c.b16 %v4420, %v4419
      %v4443 = vpack.c.b16 %v4422, %v4421
      %v4444 = vpack.c.b16 %v4424, %v4423
      %v4445 = vpack.c.b16 %v4426, %v4425
      %v4446 = vpack.c.b16 %v4428, %v4427
      %v4447 = vpack.c.b16 %v4430, %v4429
      %v4448 = vpack.c.b16 %v4432, %v4431
      %4465 = vmatprep.subr.bf16.mxu0 0
      %4466 = vmatpush1.bf16.msra.mxu0 %v4433
      %4467 = vmatprep.subr.bf16.mxu0 0
      %4468 = vmatpush1.bf16.msra.mxu0 %v4434
      %4469 = vmatprep.subr.bf16.mxu0 0
      %4470 = vmatpush1.bf16.msra.mxu0 %v4435
      %4471 = vmatprep.subr.bf16.mxu0 0
      %4472 = vmatpush1.bf16.msra.mxu0 %v4436
      %4473 = vmatprep.subr.bf16.mxu0 0
      %4474 = vmatpush1.bf16.msra.mxu0 %v4437
      %4475 = vmatprep.subr.bf16.mxu0 0
      %4476 = vmatpush1.bf16.msra.mxu0 %v4438
      %4477 = vmatprep.subr.bf16.mxu0 0
      %4478 = vmatpush1.bf16.msra.mxu0 %v4439
      %4479 = vmatprep.subr.bf16.mxu0 0
      %4480 = vmatpush1.bf16.msra.mxu0 %v4440
      %4481 = vmatprep.subr.bf16.mxu0 0
      %4482 = vmatpush1.bf16.msra.mxu0 %v4441
      %4483 = vmatprep.subr.bf16.mxu0 0
      %4484 = vmatpush1.bf16.msra.mxu0 %v4442
      %4485 = vmatprep.subr.bf16.mxu0 0
      %4486 = vmatpush1.bf16.msra.mxu0 %v4443
      %4487 = vmatprep.subr.bf16.mxu0 0
      %4488 = vmatpush1.bf16.msra.mxu0 %v4444
      %4489 = vmatprep.subr.bf16.mxu0 0
      %4490 = vmatpush1.bf16.msra.mxu0 %v4445
      %4491 = vmatprep.subr.bf16.mxu0 0
      %4492 = vmatpush1.bf16.msra.mxu0 %v4446
      %4493 = vmatprep.subr.bf16.mxu0 0
      %4494 = vmatpush1.bf16.msra.mxu0 %v4447
      %4495 = vmatprep.subr.bf16.mxu0 0
      %4496 = vmatpush1.bf16.msra.mxu0 %v4448
      %4497 = vmatprep.mubr.bf16.mxu0 %v4366
      %4498 = vmatmul.mubr.bf16.gmra.mrb[0].mxu0 %v4365
      %v4499 = vpop.f32.mrb[0].mxu0
      %v4500 = vadd.f32 0.0, %v4499
      %v4501 = vpop.f32.mrb[0].mxu0
      %v4502 = vpop.f32.mrb[0].mxu0
      %v4503 = vpop.f32.mrb[0].mxu0
      %4504 = vdwg.mxu0
      %v4505 = vadd.f32 %v4331, %v4500
      %s4506 = scalar_lea.vmem %s3, 2816
      %v4507 = vld [vmem:[%s4506] sm:$0xf]
      %v4508 = vld [vmem:[%s4506 + $0x4] sm:$0xf]
      %v4509 = vld [vmem:[%s4506 + $0x8] sm:$0xf]
      %v4510 = vld [vmem:[%s4506 + $0xc] sm:$0xf]
      %v4511 = vld [vmem:[%s4506 + $0x10] sm:$0xf]
      %v4512 = vld [vmem:[%s4506 + $0x14] sm:$0xf]
      %v4513 = vld [vmem:[%s4506 + $0x18] sm:$0xf]
      %v4514 = vld [vmem:[%s4506 + $0x1c] sm:$0xf]
      %v4515 = vld [vmem:[%s4506 + $0x20] sm:$0xf]
      %v4516 = vld [vmem:[%s4506 + $0x24] sm:$0xf]
      %v4517 = vld [vmem:[%s4506 + $0x28] sm:$0xf]
      %v4518 = vld [vmem:[%s4506 + $0x2c] sm:$0xf]
      %v4519 = vld [vmem:[%s4506 + $0x30] sm:$0xf]
      %v4520 = vld [vmem:[%s4506 + $0x34] sm:$0xf]
      %v4521 = vld [vmem:[%s4506 + $0x38] sm:$0xf]
      %v4522 = vld [vmem:[%s4506 + $0x3c] sm:$0xf]
      %v4523 = vld [vmem:[%s4506 + $0x40] sm:$0xf]
      %v4524 = vld [vmem:[%s4506 + $0x44] sm:$0xf]
      %v4525 = vld [vmem:[%s4506 + $0x48] sm:$0xf]
      %v4526 = vld [vmem:[%s4506 + $0x4c] sm:$0xf]
      %v4527 = vld [vmem:[%s4506 + $0x50] sm:$0xf]
      %v4528 = vld [vmem:[%s4506 + $0x54] sm:$0xf]
      %v4529 = vld [vmem:[%s4506 + $0x58] sm:$0xf]
      %v4530 = vld [vmem:[%s4506 + $0x5c] sm:$0xf]
      %v4531 = vld [vmem:[%s4506 + $0x60] sm:$0xf]
      %v4532 = vld [vmem:[%s4506 + $0x64] sm:$0xf]
      %v4533 = vld [vmem:[%s4506 + $0x68] sm:$0xf]
      %v4534 = vld [vmem:[%s4506 + $0x6c] sm:$0xf]
      %v4535 = vld [vmem:[%s4506 + $0x70] sm:$0xf]
      %v4536 = vld [vmem:[%s4506 + $0x74] sm:$0xf]
      %v4537 = vld [vmem:[%s4506 + $0x78] sm:$0xf]
      %v4538 = vld [vmem:[%s4506 + $0x7c] sm:$0xf]
      %v4539 = vrot.slane %v675, 3
      %v4540 = vrot.slane %v676, 3
      %v4575 = vunpack.c.l.b16 %v4507
      %v4576 = vunpack.c.l.b16 %v4508
      %v4577 = vunpack.c.l.b16 %v4509
      %v4578 = vunpack.c.l.b16 %v4510
      %v4579 = vunpack.c.l.b16 %v4511
      %v4580 = vunpack.c.l.b16 %v4512
      %v4581 = vunpack.c.l.b16 %v4513
      %v4582 = vunpack.c.l.b16 %v4514
      %v4583 = vunpack.c.l.b16 %v4515
      %v4584 = vunpack.c.l.b16 %v4516
      %v4585 = vunpack.c.l.b16 %v4517
      %v4586 = vunpack.c.l.b16 %v4518
      %v4587 = vunpack.c.l.b16 %v4519
      %v4588 = vunpack.c.l.b16 %v4520
      %v4589 = vunpack.c.l.b16 %v4521
      %v4590 = vunpack.c.l.b16 %v4522
      %v4591 = vunpack.c.l.b16 %v4523
      %v4592 = vunpack.c.l.b16 %v4524
      %v4593 = vunpack.c.l.b16 %v4525
      %v4594 = vunpack.c.l.b16 %v4526
      %v4595 = vunpack.c.l.b16 %v4527
      %v4596 = vunpack.c.l.b16 %v4528
      %v4597 = vunpack.c.l.b16 %v4529
      %v4598 = vunpack.c.l.b16 %v4530
      %v4599 = vunpack.c.l.b16 %v4531
      %v4600 = vunpack.c.l.b16 %v4532
      %v4601 = vunpack.c.l.b16 %v4533
      %v4602 = vunpack.c.l.b16 %v4534
      %v4603 = vunpack.c.l.b16 %v4535
      %v4604 = vunpack.c.l.b16 %v4536
      %v4605 = vunpack.c.l.b16 %v4537
      %v4606 = vunpack.c.l.b16 %v4538
      %v4607 = vpack.c.b16 %v4576, %v4575
      %v4608 = vpack.c.b16 %v4578, %v4577
      %v4609 = vpack.c.b16 %v4580, %v4579
      %v4610 = vpack.c.b16 %v4582, %v4581
      %v4611 = vpack.c.b16 %v4584, %v4583
      %v4612 = vpack.c.b16 %v4586, %v4585
      %v4613 = vpack.c.b16 %v4588, %v4587
      %v4614 = vpack.c.b16 %v4590, %v4589
      %v4615 = vpack.c.b16 %v4592, %v4591
      %v4616 = vpack.c.b16 %v4594, %v4593
      %v4617 = vpack.c.b16 %v4596, %v4595
      %v4618 = vpack.c.b16 %v4598, %v4597
      %v4619 = vpack.c.b16 %v4600, %v4599
      %v4620 = vpack.c.b16 %v4602, %v4601
      %v4621 = vpack.c.b16 %v4604, %v4603
      %v4622 = vpack.c.b16 %v4606, %v4605
      %4639 = vmatprep.subr.bf16.mxu0 0
      %4640 = vmatpush1.bf16.msra.mxu0 %v4607
      %4641 = vmatprep.subr.bf16.mxu0 0
      %4642 = vmatpush1.bf16.msra.mxu0 %v4608
      %4643 = vmatprep.subr.bf16.mxu0 0
      %4644 = vmatpush1.bf16.msra.mxu0 %v4609
      %4645 = vmatprep.subr.bf16.mxu0 0
      %4646 = vmatpush1.bf16.msra.mxu0 %v4610
      %4647 = vmatprep.subr.bf16.mxu0 0
      %4648 = vmatpush1.bf16.msra.mxu0 %v4611
      %4649 = vmatprep.subr.bf16.mxu0 0
      %4650 = vmatpush1.bf16.msra.mxu0 %v4612
      %4651 = vmatprep.subr.bf16.mxu0 0
      %4652 = vmatpush1.bf16.msra.mxu0 %v4613
      %4653 = vmatprep.subr.bf16.mxu0 0
      %4654 = vmatpush1.bf16.msra.mxu0 %v4614
      %4655 = vmatprep.subr.bf16.mxu0 0
      %4656 = vmatpush1.bf16.msra.mxu0 %v4615
      %4657 = vmatprep.subr.bf16.mxu0 0
      %4658 = vmatpush1.bf16.msra.mxu0 %v4616
      %4659 = vmatprep.subr.bf16.mxu0 0
      %4660 = vmatpush1.bf16.msra.mxu0 %v4617
      %4661 = vmatprep.subr.bf16.mxu0 0
      %4662 = vmatpush1.bf16.msra.mxu0 %v4618
      %4663 = vmatprep.subr.bf16.mxu0 0
      %4664 = vmatpush1.bf16.msra.mxu0 %v4619
      %4665 = vmatprep.subr.bf16.mxu0 0
      %4666 = vmatpush1.bf16.msra.mxu0 %v4620
      %4667 = vmatprep.subr.bf16.mxu0 0
      %4668 = vmatpush1.bf16.msra.mxu0 %v4621
      %4669 = vmatprep.subr.bf16.mxu0 0
      %4670 = vmatpush1.bf16.msra.mxu0 %v4622
      %4671 = vmatprep.mubr.bf16.mxu0 %v4540
      %4672 = vmatmul.mubr.bf16.gmra.mrb[0].mxu0 %v4539
      %v4673 = vpop.f32.mrb[0].mxu0
      %v4674 = vadd.f32 0.0, %v4673
      %v4675 = vpop.f32.mrb[0].mxu0
      %v4676 = vpop.f32.mrb[0].mxu0
      %v4677 = vpop.f32.mrb[0].mxu0
      %4678 = vdwg.mxu0
      %v4679 = vadd.f32 %v4505, %v4674
      %s4680 = scalar_lea.vmem %s3, 2944
      %v4681 = vld [vmem:[%s4680] sm:$0xf]
      %v4682 = vld [vmem:[%s4680 + $0x4] sm:$0xf]
      %v4683 = vld [vmem:[%s4680 + $0x8] sm:$0xf]
      %v4684 = vld [vmem:[%s4680 + $0xc] sm:$0xf]
      %v4685 = vld [vmem:[%s4680 + $0x10] sm:$0xf]
      %v4686 = vld [vmem:[%s4680 + $0x14] sm:$0xf]
      %v4687 = vld [vmem:[%s4680 + $0x18] sm:$0xf]
      %v4688 = vld [vmem:[%s4680 + $0x1c] sm:$0xf]
      %v4689 = vld [vmem:[%s4680 + $0x20] sm:$0xf]
      %v4690 = vld [vmem:[%s4680 + $0x24] sm:$0xf]
      %v4691 = vld [vmem:[%s4680 + $0x28] sm:$0xf]
      %v4692 = vld [vmem:[%s4680 + $0x2c] sm:$0xf]
      %v4693 = vld [vmem:[%s4680 + $0x30] sm:$0xf]
      %v4694 = vld [vmem:[%s4680 + $0x34] sm:$0xf]
      %v4695 = vld [vmem:[%s4680 + $0x38] sm:$0xf]
      %v4696 = vld [vmem:[%s4680 + $0x3c] sm:$0xf]
      %v4697 = vld [vmem:[%s4680 + $0x40] sm:$0xf]
      %v4698 = vld [vmem:[%s4680 + $0x44] sm:$0xf]
      %v4699 = vld [vmem:[%s4680 + $0x48] sm:$0xf]
      %v4700 = vld [vmem:[%s4680 + $0x4c] sm:$0xf]
      %v4701 = vld [vmem:[%s4680 + $0x50] sm:$0xf]
      %v4702 = vld [vmem:[%s4680 + $0x54] sm:$0xf]
      %v4703 = vld [vmem:[%s4680 + $0x58] sm:$0xf]
      %v4704 = vld [vmem:[%s4680 + $0x5c] sm:$0xf]
      %v4705 = vld [vmem:[%s4680 + $0x60] sm:$0xf]
      %v4706 = vld [vmem:[%s4680 + $0x64] sm:$0xf]
      %v4707 = vld [vmem:[%s4680 + $0x68] sm:$0xf]
      %v4708 = vld [vmem:[%s4680 + $0x6c] sm:$0xf]
      %v4709 = vld [vmem:[%s4680 + $0x70] sm:$0xf]
      %v4710 = vld [vmem:[%s4680 + $0x74] sm:$0xf]
      %v4711 = vld [vmem:[%s4680 + $0x78] sm:$0xf]
      %v4712 = vld [vmem:[%s4680 + $0x7c] sm:$0xf]
      %v4713 = vrot.slane %v3664, 3
      %v4714 = vrot.slane %v3667, 3
      %v4749 = vunpack.c.l.b16 %v4681
      %v4750 = vunpack.c.l.b16 %v4682
      %v4751 = vunpack.c.l.b16 %v4683
      %v4752 = vunpack.c.l.b16 %v4684
      %v4753 = vunpack.c.l.b16 %v4685
      %v4754 = vunpack.c.l.b16 %v4686
      %v4755 = vunpack.c.l.b16 %v4687
      %v4756 = vunpack.c.l.b16 %v4688
      %v4757 = vunpack.c.l.b16 %v4689
      %v4758 = vunpack.c.l.b16 %v4690
      %v4759 = vunpack.c.l.b16 %v4691
      %v4760 = vunpack.c.l.b16 %v4692
      %v4761 = vunpack.c.l.b16 %v4693
      %v4762 = vunpack.c.l.b16 %v4694
      %v4763 = vunpack.c.l.b16 %v4695
      %v4764 = vunpack.c.l.b16 %v4696
      %v4765 = vunpack.c.l.b16 %v4697
      %v4766 = vunpack.c.l.b16 %v4698
      %v4767 = vunpack.c.l.b16 %v4699
      %v4768 = vunpack.c.l.b16 %v4700
      %v4769 = vunpack.c.l.b16 %v4701
      %v4770 = vunpack.c.l.b16 %v4702
      %v4771 = vunpack.c.l.b16 %v4703
      %v4772 = vunpack.c.l.b16 %v4704
      %v4773 = vunpack.c.l.b16 %v4705
      %v4774 = vunpack.c.l.b16 %v4706
      %v4775 = vunpack.c.l.b16 %v4707
      %v4776 = vunpack.c.l.b16 %v4708
      %v4777 = vunpack.c.l.b16 %v4709
      %v4778 = vunpack.c.l.b16 %v4710
      %v4779 = vunpack.c.l.b16 %v4711
      %v4780 = vunpack.c.l.b16 %v4712
      %v4781 = vpack.c.b16 %v4750, %v4749
      %v4782 = vpack.c.b16 %v4752, %v4751
      %v4783 = vpack.c.b16 %v4754, %v4753
      %v4784 = vpack.c.b16 %v4756, %v4755
      %v4785 = vpack.c.b16 %v4758, %v4757
      %v4786 = vpack.c.b16 %v4760, %v4759
      %v4787 = vpack.c.b16 %v4762, %v4761
      %v4788 = vpack.c.b16 %v4764, %v4763
      %v4789 = vpack.c.b16 %v4766, %v4765
      %v4790 = vpack.c.b16 %v4768, %v4767
      %v4791 = vpack.c.b16 %v4770, %v4769
      %v4792 = vpack.c.b16 %v4772, %v4771
      %v4793 = vpack.c.b16 %v4774, %v4773
      %v4794 = vpack.c.b16 %v4776, %v4775
      %v4795 = vpack.c.b16 %v4778, %v4777
      %v4796 = vpack.c.b16 %v4780, %v4779
      %4813 = vmatprep.subr.bf16.mxu0 0
      %4814 = vmatpush1.bf16.msra.mxu0 %v4781
      %4815 = vmatprep.subr.bf16.mxu0 0
      %4816 = vmatpush1.bf16.msra.mxu0 %v4782
      %4817 = vmatprep.subr.bf16.mxu0 0
      %4818 = vmatpush1.bf16.msra.mxu0 %v4783
      %4819 = vmatprep.subr.bf16.mxu0 0
      %4820 = vmatpush1.bf16.msra.mxu0 %v4784
      %4821 = vmatprep.subr.bf16.mxu0 0
      %4822 = vmatpush1.bf16.msra.mxu0 %v4785
      %4823 = vmatprep.subr.bf16.mxu0 0
      %4824 = vmatpush1.bf16.msra.mxu0 %v4786
      %4825 = vmatprep.subr.bf16.mxu0 0
      %4826 = vmatpush1.bf16.msra.mxu0 %v4787
      %4827 = vmatprep.subr.bf16.mxu0 0
      %4828 = vmatpush1.bf16.msra.mxu0 %v4788
      %4829 = vmatprep.subr.bf16.mxu0 0
      %4830 = vmatpush1.bf16.msra.mxu0 %v4789
      %4831 = vmatprep.subr.bf16.mxu0 0
      %4832 = vmatpush1.bf16.msra.mxu0 %v4790
      %4833 = vmatprep.subr.bf16.mxu0 0
      %4834 = vmatpush1.bf16.msra.mxu0 %v4791
      %4835 = vmatprep.subr.bf16.mxu0 0
      %4836 = vmatpush1.bf16.msra.mxu0 %v4792
      %4837 = vmatprep.subr.bf16.mxu0 0
      %4838 = vmatpush1.bf16.msra.mxu0 %v4793
      %4839 = vmatprep.subr.bf16.mxu0 0
      %4840 = vmatpush1.bf16.msra.mxu0 %v4794
      %4841 = vmatprep.subr.bf16.mxu0 0
      %4842 = vmatpush1.bf16.msra.mxu0 %v4795
      %4843 = vmatprep.subr.bf16.mxu0 0
      %4844 = vmatpush1.bf16.msra.mxu0 %v4796
      %4845 = vmatprep.mubr.bf16.mxu0 %v4714
      %4846 = vmatmul.mubr.bf16.gmra.mrb[0].mxu0 %v4713
      %v4847 = vpop.f32.mrb[0].mxu0
      %v4848 = vadd.f32 0.0, %v4847
      %v4849 = vpop.f32.mrb[0].mxu0
      %v4850 = vpop.f32.mrb[0].mxu0
      %v4851 = vpop.f32.mrb[0].mxu0
      %4852 = vdwg.mxu0
      %v4853 = vadd.f32 %v4679, %v4848
      %s4854 = scalar_lea.vmem %s3, 3072
      %v4855 = vld [vmem:[%s4854] sm:$0xf]
      %v4856 = vld [vmem:[%s4854 + $0x4] sm:$0xf]
      %v4857 = vld [vmem:[%s4854 + $0x8] sm:$0xf]
      %v4858 = vld [vmem:[%s4854 + $0xc] sm:$0xf]
      %v4859 = vld [vmem:[%s4854 + $0x10] sm:$0xf]
      %v4860 = vld [vmem:[%s4854 + $0x14] sm:$0xf]
      %v4861 = vld [vmem:[%s4854 + $0x18] sm:$0xf]
      %v4862 = vld [vmem:[%s4854 + $0x1c] sm:$0xf]
      %v4863 = vld [vmem:[%s4854 + $0x20] sm:$0xf]
      %v4864 = vld [vmem:[%s4854 + $0x24] sm:$0xf]
      %v4865 = vld [vmem:[%s4854 + $0x28] sm:$0xf]
      %v4866 = vld [vmem:[%s4854 + $0x2c] sm:$0xf]
      %v4867 = vld [vmem:[%s4854 + $0x30] sm:$0xf]
      %v4868 = vld [vmem:[%s4854 + $0x34] sm:$0xf]
      %v4869 = vld [vmem:[%s4854 + $0x38] sm:$0xf]
      %v4870 = vld [vmem:[%s4854 + $0x3c] sm:$0xf]
      %v4871 = vld [vmem:[%s4854 + $0x40] sm:$0xf]
      %v4872 = vld [vmem:[%s4854 + $0x44] sm:$0xf]
      %v4873 = vld [vmem:[%s4854 + $0x48] sm:$0xf]
      %v4874 = vld [vmem:[%s4854 + $0x4c] sm:$0xf]
      %v4875 = vld [vmem:[%s4854 + $0x50] sm:$0xf]
      %v4876 = vld [vmem:[%s4854 + $0x54] sm:$0xf]
      %v4877 = vld [vmem:[%s4854 + $0x58] sm:$0xf]
      %v4878 = vld [vmem:[%s4854 + $0x5c] sm:$0xf]
      %v4879 = vld [vmem:[%s4854 + $0x60] sm:$0xf]
      %v4880 = vld [vmem:[%s4854 + $0x64] sm:$0xf]
      %v4881 = vld [vmem:[%s4854 + $0x68] sm:$0xf]
      %v4882 = vld [vmem:[%s4854 + $0x6c] sm:$0xf]
      %v4883 = vld [vmem:[%s4854 + $0x70] sm:$0xf]
      %v4884 = vld [vmem:[%s4854 + $0x74] sm:$0xf]
      %v4885 = vld [vmem:[%s4854 + $0x78] sm:$0xf]
      %v4886 = vld [vmem:[%s4854 + $0x7c] sm:$0xf]
      %v4887 = vrot.slane %v675, 4
      %v4888 = vrot.slane %v676, 4
      %v4923 = vunpack.c.l.b16 %v4855
      %v4924 = vunpack.c.l.b16 %v4856
      %v4925 = vunpack.c.l.b16 %v4857
      %v4926 = vunpack.c.l.b16 %v4858
      %v4927 = vunpack.c.l.b16 %v4859
      %v4928 = vunpack.c.l.b16 %v4860
      %v4929 = vunpack.c.l.b16 %v4861
      %v4930 = vunpack.c.l.b16 %v4862
      %v4931 = vunpack.c.l.b16 %v4863
      %v4932 = vunpack.c.l.b16 %v4864
      %v4933 = vunpack.c.l.b16 %v4865
      %v4934 = vunpack.c.l.b16 %v4866
      %v4935 = vunpack.c.l.b16 %v4867
      %v4936 = vunpack.c.l.b16 %v4868
      %v4937 = vunpack.c.l.b16 %v4869
      %v4938 = vunpack.c.l.b16 %v4870
      %v4939 = vunpack.c.l.b16 %v4871
      %v4940 = vunpack.c.l.b16 %v4872
      %v4941 = vunpack.c.l.b16 %v4873
      %v4942 = vunpack.c.l.b16 %v4874
      %v4943 = vunpack.c.l.b16 %v4875
      %v4944 = vunpack.c.l.b16 %v4876
      %v4945 = vunpack.c.l.b16 %v4877
      %v4946 = vunpack.c.l.b16 %v4878
      %v4947 = vunpack.c.l.b16 %v4879
      %v4948 = vunpack.c.l.b16 %v4880
      %v4949 = vunpack.c.l.b16 %v4881
      %v4950 = vunpack.c.l.b16 %v4882
      %v4951 = vunpack.c.l.b16 %v4883
      %v4952 = vunpack.c.l.b16 %v4884
      %v4953 = vunpack.c.l.b16 %v4885
      %v4954 = vunpack.c.l.b16 %v4886
      %v4955 = vpack.c.b16 %v4924, %v4923
      %v4956 = vpack.c.b16 %v4926, %v4925
      %v4957 = vpack.c.b16 %v4928, %v4927
      %v4958 = vpack.c.b16 %v4930, %v4929
      %v4959 = vpack.c.b16 %v4932, %v4931
      %v4960 = vpack.c.b16 %v4934, %v4933
      %v4961 = vpack.c.b16 %v4936, %v4935
      %v4962 = vpack.c.b16 %v4938, %v4937
      %v4963 = vpack.c.b16 %v4940, %v4939
      %v4964 = vpack.c.b16 %v4942, %v4941
      %v4965 = vpack.c.b16 %v4944, %v4943
      %v4966 = vpack.c.b16 %v4946, %v4945
      %v4967 = vpack.c.b16 %v4948, %v4947
      %v4968 = vpack.c.b16 %v4950, %v4949
      %v4969 = vpack.c.b16 %v4952, %v4951
      %v4970 = vpack.c.b16 %v4954, %v4953
      %4987 = vmatprep.subr.bf16.mxu0 0
      %4988 = vmatpush1.bf16.msra.mxu0 %v4955
      %4989 = vmatprep.subr.bf16.mxu0 0
      %4990 = vmatpush1.bf16.msra.mxu0 %v4956
      %4991 = vmatprep.subr.bf16.mxu0 0
      %4992 = vmatpush1.bf16.msra.mxu0 %v4957
      %4993 = vmatprep.subr.bf16.mxu0 0
      %4994 = vmatpush1.bf16.msra.mxu0 %v4958
      %4995 = vmatprep.subr.bf16.mxu0 0
      %4996 = vmatpush1.bf16.msra.mxu0 %v4959
      %4997 = vmatprep.subr.bf16.mxu0 0
      %4998 = vmatpush1.bf16.msra.mxu0 %v4960
      %4999 = vmatprep.subr.bf16.mxu0 0
      %5000 = vmatpush1.bf16.msra.mxu0 %v4961
      %5001 = vmatprep.subr.bf16.mxu0 0
      %5002 = vmatpush1.bf16.msra.mxu0 %v4962
      %5003 = vmatprep.subr.bf16.mxu0 0
      %5004 = vmatpush1.bf16.msra.mxu0 %v4963
      %5005 = vmatprep.subr.bf16.mxu0 0
      %5006 = vmatpush1.bf16.msra.mxu0 %v4964
      %5007 = vmatprep.subr.bf16.mxu0 0
      %5008 = vmatpush1.bf16.msra.mxu0 %v4965
      %5009 = vmatprep.subr.bf16.mxu0 0
      %5010 = vmatpush1.bf16.msra.mxu0 %v4966
      %5011 = vmatprep.subr.bf16.mxu0 0
      %5012 = vmatpush1.bf16.msra.mxu0 %v4967
      %5013 = vmatprep.subr.bf16.mxu0 0
      %5014 = vmatpush1.bf16.msra.mxu0 %v4968
      %5015 = vmatprep.subr.bf16.mxu0 0
      %5016 = vmatpush1.bf16.msra.mxu0 %v4969
      %5017 = vmatprep.subr.bf16.mxu0 0
      %5018 = vmatpush1.bf16.msra.mxu0 %v4970
      %5019 = vmatprep.mubr.bf16.mxu0 %v4888
      %5020 = vmatmul.mubr.bf16.gmra.mrb[0].mxu0 %v4887
      %v5021 = vpop.f32.mrb[0].mxu0
      %v5022 = vadd.f32 0.0, %v5021
      %v5023 = vpop.f32.mrb[0].mxu0
      %v5024 = vpop.f32.mrb[0].mxu0
      %v5025 = vpop.f32.mrb[0].mxu0
      %5026 = vdwg.mxu0
      %v5027 = vadd.f32 %v4853, %v5022
      %s5028 = scalar_lea.vmem %s3, 3200
      %v5029 = vld [vmem:[%s5028] sm:$0xf]
      %v5030 = vld [vmem:[%s5028 + $0x4] sm:$0xf]
      %v5031 = vld [vmem:[%s5028 + $0x8] sm:$0xf]
      %v5032 = vld [vmem:[%s5028 + $0xc] sm:$0xf]
      %v5033 = vld [vmem:[%s5028 + $0x10] sm:$0xf]
      %v5034 = vld [vmem:[%s5028 + $0x14] sm:$0xf]
      %v5035 = vld [vmem:[%s5028 + $0x18] sm:$0xf]
      %v5036 = vld [vmem:[%s5028 + $0x1c] sm:$0xf]
      %v5037 = vld [vmem:[%s5028 + $0x20] sm:$0xf]
      %v5038 = vld [vmem:[%s5028 + $0x24] sm:$0xf]
      %v5039 = vld [vmem:[%s5028 + $0x28] sm:$0xf]
      %v5040 = vld [vmem:[%s5028 + $0x2c] sm:$0xf]
      %v5041 = vld [vmem:[%s5028 + $0x30] sm:$0xf]
      %v5042 = vld [vmem:[%s5028 + $0x34] sm:$0xf]
      %v5043 = vld [vmem:[%s5028 + $0x38] sm:$0xf]
      %v5044 = vld [vmem:[%s5028 + $0x3c] sm:$0xf]
      %v5045 = vld [vmem:[%s5028 + $0x40] sm:$0xf]
      %v5046 = vld [vmem:[%s5028 + $0x44] sm:$0xf]
      %v5047 = vld [vmem:[%s5028 + $0x48] sm:$0xf]
      %v5048 = vld [vmem:[%s5028 + $0x4c] sm:$0xf]
      %v5049 = vld [vmem:[%s5028 + $0x50] sm:$0xf]
      %v5050 = vld [vmem:[%s5028 + $0x54] sm:$0xf]
      %v5051 = vld [vmem:[%s5028 + $0x58] sm:$0xf]
      %v5052 = vld [vmem:[%s5028 + $0x5c] sm:$0xf]
      %v5053 = vld [vmem:[%s5028 + $0x60] sm:$0xf]
      %v5054 = vld [vmem:[%s5028 + $0x64] sm:$0xf]
      %v5055 = vld [vmem:[%s5028 + $0x68] sm:$0xf]
      %v5056 = vld [vmem:[%s5028 + $0x6c] sm:$0xf]
      %v5057 = vld [vmem:[%s5028 + $0x70] sm:$0xf]
      %v5058 = vld [vmem:[%s5028 + $0x74] sm:$0xf]
      %v5059 = vld [vmem:[%s5028 + $0x78] sm:$0xf]
      %v5060 = vld [vmem:[%s5028 + $0x7c] sm:$0xf]
      %v5061 = vrot.slane %v3664, 4
      %v5062 = vrot.slane %v3667, 4
      %v5097 = vunpack.c.l.b16 %v5029
      %v5098 = vunpack.c.l.b16 %v5030
      %v5099 = vunpack.c.l.b16 %v5031
      %v5100 = vunpack.c.l.b16 %v5032
      %v5101 = vunpack.c.l.b16 %v5033
      %v5102 = vunpack.c.l.b16 %v5034
      %v5103 = vunpack.c.l.b16 %v5035
      %v5104 = vunpack.c.l.b16 %v5036
      %v5105 = vunpack.c.l.b16 %v5037
      %v5106 = vunpack.c.l.b16 %v5038
      %v5107 = vunpack.c.l.b16 %v5039
      %v5108 = vunpack.c.l.b16 %v5040
      %v5109 = vunpack.c.l.b16 %v5041
      %v5110 = vunpack.c.l.b16 %v5042
      %v5111 = vunpack.c.l.b16 %v5043
      %v5112 = vunpack.c.l.b16 %v5044
      %v5113 = vunpack.c.l.b16 %v5045
      %v5114 = vunpack.c.l.b16 %v5046
      %v5115 = vunpack.c.l.b16 %v5047
      %v5116 = vunpack.c.l.b16 %v5048
      %v5117 = vunpack.c.l.b16 %v5049
      %v5118 = vunpack.c.l.b16 %v5050
      %v5119 = vunpack.c.l.b16 %v5051
      %v5120 = vunpack.c.l.b16 %v5052
      %v5121 = vunpack.c.l.b16 %v5053
      %v5122 = vunpack.c.l.b16 %v5054
      %v5123 = vunpack.c.l.b16 %v5055
      %v5124 = vunpack.c.l.b16 %v5056
      %v5125 = vunpack.c.l.b16 %v5057
      %v5126 = vunpack.c.l.b16 %v5058
      %v5127 = vunpack.c.l.b16 %v5059
      %v5128 = vunpack.c.l.b16 %v5060
      %v5129 = vpack.c.b16 %v5098, %v5097
      %v5130 = vpack.c.b16 %v5100, %v5099
      %v5131 = vpack.c.b16 %v5102, %v5101
      %v5132 = vpack.c.b16 %v5104, %v5103
      %v5133 = vpack.c.b16 %v5106, %v5105
      %v5134 = vpack.c.b16 %v5108, %v5107
      %v5135 = vpack.c.b16 %v5110, %v5109
      %v5136 = vpack.c.b16 %v5112, %v5111
      %v5137 = vpack.c.b16 %v5114, %v5113
      %v5138 = vpack.c.b16 %v5116, %v5115
      %v5139 = vpack.c.b16 %v5118, %v5117
      %v5140 = vpack.c.b16 %v5120, %v5119
      %v5141 = vpack.c.b16 %v5122, %v5121
      %v5142 = vpack.c.b16 %v5124, %v5123
      %v5143 = vpack.c.b16 %v5126, %v5125
      %v5144 = vpack.c.b16 %v5128, %v5127
      %5161 = vmatprep.subr.bf16.mxu0 0
      %5162 = vmatpush1.bf16.msra.mxu0 %v5129
      %5163 = vmatprep.subr.bf16.mxu0 0
      %5164 = vmatpush1.bf16.msra.mxu0 %v5130
      %5165 = vmatprep.subr.bf16.mxu0 0
      %5166 = vmatpush1.bf16.msra.mxu0 %v5131
      %5167 = vmatprep.subr.bf16.mxu0 0
      %5168 = vmatpush1.bf16.msra.mxu0 %v5132
      %5169 = vmatprep.subr.bf16.mxu0 0
      %5170 = vmatpush1.bf16.msra.mxu0 %v5133
      %5171 = vmatprep.subr.bf16.mxu0 0
      %5172 = vmatpush1.bf16.msra.mxu0 %v5134
      %5173 = vmatprep.subr.bf16.mxu0 0
      %5174 = vmatpush1.bf16.msra.mxu0 %v5135
      %5175 = vmatprep.subr.bf16.mxu0 0
      %5176 = vmatpush1.bf16.msra.mxu0 %v5136
      %5177 = vmatprep.subr.bf16.mxu0 0
      %5178 = vmatpush1.bf16.msra.mxu0 %v5137
      %5179 = vmatprep.subr.bf16.mxu0 0
      %5180 = vmatpush1.bf16.msra.mxu0 %v5138
      %5181 = vmatprep.subr.bf16.mxu0 0
      %5182 = vmatpush1.bf16.msra.mxu0 %v5139
      %5183 = vmatprep.subr.bf16.mxu0 0
      %5184 = vmatpush1.bf16.msra.mxu0 %v5140
      %5185 = vmatprep.subr.bf16.mxu0 0
      %5186 = vmatpush1.bf16.msra.mxu0 %v5141
      %5187 = vmatprep.subr.bf16.mxu0 0
      %5188 = vmatpush1.bf16.msra.mxu0 %v5142
      %5189 = vmatprep.subr.bf16.mxu0 0
      %5190 = vmatpush1.bf16.msra.mxu0 %v5143
      %5191 = vmatprep.subr.bf16.mxu0 0
      %5192 = vmatpush1.bf16.msra.mxu0 %v5144
      %5193 = vmatprep.mubr.bf16.mxu0 %v5062
      %5194 = vmatmul.mubr.bf16.gmra.mrb[0].mxu0 %v5061
      %v5195 = vpop.f32.mrb[0].mxu0
      %v5196 = vadd.f32 0.0, %v5195
      %v5197 = vpop.f32.mrb[0].mxu0
      %v5198 = vpop.f32.mrb[0].mxu0
      %v5199 = vpop.f32.mrb[0].mxu0
      %5200 = vdwg.mxu0
      %v5201 = vadd.f32 %v5027, %v5196
      %s5202 = scalar_lea.vmem %s3, 3328
      %v5203 = vld [vmem:[%s5202] sm:$0xf]
      %v5204 = vld [vmem:[%s5202 + $0x4] sm:$0xf]
      %v5205 = vld [vmem:[%s5202 + $0x8] sm:$0xf]
      %v5206 = vld [vmem:[%s5202 + $0xc] sm:$0xf]
      %v5207 = vld [vmem:[%s5202 + $0x10] sm:$0xf]
      %v5208 = vld [vmem:[%s5202 + $0x14] sm:$0xf]
      %v5209 = vld [vmem:[%s5202 + $0x18] sm:$0xf]
      %v5210 = vld [vmem:[%s5202 + $0x1c] sm:$0xf]
      %v5211 = vld [vmem:[%s5202 + $0x20] sm:$0xf]
      %v5212 = vld [vmem:[%s5202 + $0x24] sm:$0xf]
      %v5213 = vld [vmem:[%s5202 + $0x28] sm:$0xf]
      %v5214 = vld [vmem:[%s5202 + $0x2c] sm:$0xf]
      %v5215 = vld [vmem:[%s5202 + $0x30] sm:$0xf]
      %v5216 = vld [vmem:[%s5202 + $0x34] sm:$0xf]
      %v5217 = vld [vmem:[%s5202 + $0x38] sm:$0xf]
      %v5218 = vld [vmem:[%s5202 + $0x3c] sm:$0xf]
      %v5219 = vld [vmem:[%s5202 + $0x40] sm:$0xf]
      %v5220 = vld [vmem:[%s5202 + $0x44] sm:$0xf]
      %v5221 = vld [vmem:[%s5202 + $0x48] sm:$0xf]
      %v5222 = vld [vmem:[%s5202 + $0x4c] sm:$0xf]
      %v5223 = vld [vmem:[%s5202 + $0x50] sm:$0xf]
      %v5224 = vld [vmem:[%s5202 + $0x54] sm:$0xf]
      %v5225 = vld [vmem:[%s5202 + $0x58] sm:$0xf]
      %v5226 = vld [vmem:[%s5202 + $0x5c] sm:$0xf]
      %v5227 = vld [vmem:[%s5202 + $0x60] sm:$0xf]
      %v5228 = vld [vmem:[%s5202 + $0x64] sm:$0xf]
      %v5229 = vld [vmem:[%s5202 + $0x68] sm:$0xf]
      %v5230 = vld [vmem:[%s5202 + $0x6c] sm:$0xf]
      %v5231 = vld [vmem:[%s5202 + $0x70] sm:$0xf]
      %v5232 = vld [vmem:[%s5202 + $0x74] sm:$0xf]
      %v5233 = vld [vmem:[%s5202 + $0x78] sm:$0xf]
      %v5234 = vld [vmem:[%s5202 + $0x7c] sm:$0xf]
      %v5235 = vrot.slane %v675, 5
      %v5236 = vrot.slane %v676, 5
      %v5271 = vunpack.c.l.b16 %v5203
      %v5272 = vunpack.c.l.b16 %v5204
      %v5273 = vunpack.c.l.b16 %v5205
      %v5274 = vunpack.c.l.b16 %v5206
      %v5275 = vunpack.c.l.b16 %v5207
      %v5276 = vunpack.c.l.b16 %v5208
      %v5277 = vunpack.c.l.b16 %v5209
      %v5278 = vunpack.c.l.b16 %v5210
      %v5279 = vunpack.c.l.b16 %v5211
      %v5280 = vunpack.c.l.b16 %v5212
      %v5281 = vunpack.c.l.b16 %v5213
      %v5282 = vunpack.c.l.b16 %v5214
      %v5283 = vunpack.c.l.b16 %v5215
      %v5284 = vunpack.c.l.b16 %v5216
      %v5285 = vunpack.c.l.b16 %v5217
      %v5286 = vunpack.c.l.b16 %v5218
      %v5287 = vunpack.c.l.b16 %v5219
      %v5288 = vunpack.c.l.b16 %v5220
      %v5289 = vunpack.c.l.b16 %v5221
      %v5290 = vunpack.c.l.b16 %v5222
      %v5291 = vunpack.c.l.b16 %v5223
      %v5292 = vunpack.c.l.b16 %v5224
      %v5293 = vunpack.c.l.b16 %v5225
      %v5294 = vunpack.c.l.b16 %v5226
      %v5295 = vunpack.c.l.b16 %v5227
      %v5296 = vunpack.c.l.b16 %v5228
      %v5297 = vunpack.c.l.b16 %v5229
      %v5298 = vunpack.c.l.b16 %v5230
      %v5299 = vunpack.c.l.b16 %v5231
      %v5300 = vunpack.c.l.b16 %v5232
      %v5301 = vunpack.c.l.b16 %v5233
      %v5302 = vunpack.c.l.b16 %v5234
      %v5303 = vpack.c.b16 %v5272, %v5271
      %v5304 = vpack.c.b16 %v5274, %v5273
      %v5305 = vpack.c.b16 %v5276, %v5275
      %v5306 = vpack.c.b16 %v5278, %v5277
      %v5307 = vpack.c.b16 %v5280, %v5279
      %v5308 = vpack.c.b16 %v5282, %v5281
      %v5309 = vpack.c.b16 %v5284, %v5283
      %v5310 = vpack.c.b16 %v5286, %v5285
      %v5311 = vpack.c.b16 %v5288, %v5287
      %v5312 = vpack.c.b16 %v5290, %v5289
      %v5313 = vpack.c.b16 %v5292, %v5291
      %v5314 = vpack.c.b16 %v5294, %v5293
      %v5315 = vpack.c.b16 %v5296, %v5295
      %v5316 = vpack.c.b16 %v5298, %v5297
      %v5317 = vpack.c.b16 %v5300, %v5299
      %v5318 = vpack.c.b16 %v5302, %v5301
      %5335 = vmatprep.subr.bf16.mxu0 0
      %5336 = vmatpush1.bf16.msra.mxu0 %v5303
      %5337 = vmatprep.subr.bf16.mxu0 0
      %5338 = vmatpush1.bf16.msra.mxu0 %v5304
      %5339 = vmatprep.subr.bf16.mxu0 0
      %5340 = vmatpush1.bf16.msra.mxu0 %v5305
      %5341 = vmatprep.subr.bf16.mxu0 0
      %5342 = vmatpush1.bf16.msra.mxu0 %v5306
      %5343 = vmatprep.subr.bf16.mxu0 0
      %5344 = vmatpush1.bf16.msra.mxu0 %v5307
      %5345 = vmatprep.subr.bf16.mxu0 0
      %5346 = vmatpush1.bf16.msra.mxu0 %v5308
      %5347 = vmatprep.subr.bf16.mxu0 0
      %5348 = vmatpush1.bf16.msra.mxu0 %v5309
      %5349 = vmatprep.subr.bf16.mxu0 0
      %5350 = vmatpush1.bf16.msra.mxu0 %v5310
      %5351 = vmatprep.subr.bf16.mxu0 0
      %5352 = vmatpush1.bf16.msra.mxu0 %v5311
      %5353 = vmatprep.subr.bf16.mxu0 0
      %5354 = vmatpush1.bf16.msra.mxu0 %v5312
      %5355 = vmatprep.subr.bf16.mxu0 0
      %5356 = vmatpush1.bf16.msra.mxu0 %v5313
      %5357 = vmatprep.subr.bf16.mxu0 0
      %5358 = vmatpush1.bf16.msra.mxu0 %v5314
      %5359 = vmatprep.subr.bf16.mxu0 0
      %5360 = vmatpush1.bf16.msra.mxu0 %v5315
      %5361 = vmatprep.subr.bf16.mxu0 0
      %5362 = vmatpush1.bf16.msra.mxu0 %v5316
      %5363 = vmatprep.subr.bf16.mxu0 0
      %5364 = vmatpush1.bf16.msra.mxu0 %v5317
      %5365 = vmatprep.subr.bf16.mxu0 0
      %5366 = vmatpush1.bf16.msra.mxu0 %v5318
      %5367 = vmatprep.mubr.bf16.mxu0 %v5236
      %5368 = vmatmul.mubr.bf16.gmra.mrb[0].mxu0 %v5235
      %v5369 = vpop.f32.mrb[0].mxu0
      %v5370 = vadd.f32 0.0, %v5369
      %v5371 = vpop.f32.mrb[0].mxu0
      %v5372 = vpop.f32.mrb[0].mxu0
      %v5373 = vpop.f32.mrb[0].mxu0
      %5374 = vdwg.mxu0
      %v5375 = vadd.f32 %v5201, %v5370
      %s5376 = scalar_lea.vmem %s3, 3456
      %v5377 = vld [vmem:[%s5376] sm:$0xf]
      %v5378 = vld [vmem:[%s5376 + $0x4] sm:$0xf]
      %v5379 = vld [vmem:[%s5376 + $0x8] sm:$0xf]
      %v5380 = vld [vmem:[%s5376 + $0xc] sm:$0xf]
      %v5381 = vld [vmem:[%s5376 + $0x10] sm:$0xf]
      %v5382 = vld [vmem:[%s5376 + $0x14] sm:$0xf]
      %v5383 = vld [vmem:[%s5376 + $0x18] sm:$0xf]
      %v5384 = vld [vmem:[%s5376 + $0x1c] sm:$0xf]
      %v5385 = vld [vmem:[%s5376 + $0x20] sm:$0xf]
      %v5386 = vld [vmem:[%s5376 + $0x24] sm:$0xf]
      %v5387 = vld [vmem:[%s5376 + $0x28] sm:$0xf]
      %v5388 = vld [vmem:[%s5376 + $0x2c] sm:$0xf]
      %v5389 = vld [vmem:[%s5376 + $0x30] sm:$0xf]
      %v5390 = vld [vmem:[%s5376 + $0x34] sm:$0xf]
      %v5391 = vld [vmem:[%s5376 + $0x38] sm:$0xf]
      %v5392 = vld [vmem:[%s5376 + $0x3c] sm:$0xf]
      %v5393 = vld [vmem:[%s5376 + $0x40] sm:$0xf]
      %v5394 = vld [vmem:[%s5376 + $0x44] sm:$0xf]
      %v5395 = vld [vmem:[%s5376 + $0x48] sm:$0xf]
      %v5396 = vld [vmem:[%s5376 + $0x4c] sm:$0xf]
      %v5397 = vld [vmem:[%s5376 + $0x50] sm:$0xf]
      %v5398 = vld [vmem:[%s5376 + $0x54] sm:$0xf]
      %v5399 = vld [vmem:[%s5376 + $0x58] sm:$0xf]
      %v5400 = vld [vmem:[%s5376 + $0x5c] sm:$0xf]
      %v5401 = vld [vmem:[%s5376 + $0x60] sm:$0xf]
      %v5402 = vld [vmem:[%s5376 + $0x64] sm:$0xf]
      %v5403 = vld [vmem:[%s5376 + $0x68] sm:$0xf]
      %v5404 = vld [vmem:[%s5376 + $0x6c] sm:$0xf]
      %v5405 = vld [vmem:[%s5376 + $0x70] sm:$0xf]
      %v5406 = vld [vmem:[%s5376 + $0x74] sm:$0xf]
      %v5407 = vld [vmem:[%s5376 + $0x78] sm:$0xf]
      %v5408 = vld [vmem:[%s5376 + $0x7c] sm:$0xf]
      %v5409 = vrot.slane %v3664, 5
      %v5410 = vrot.slane %v3667, 5
      %v5445 = vunpack.c.l.b16 %v5377
      %v5446 = vunpack.c.l.b16 %v5378
      %v5447 = vunpack.c.l.b16 %v5379
      %v5448 = vunpack.c.l.b16 %v5380
      %v5449 = vunpack.c.l.b16 %v5381
      %v5450 = vunpack.c.l.b16 %v5382
      %v5451 = vunpack.c.l.b16 %v5383
      %v5452 = vunpack.c.l.b16 %v5384
      %v5453 = vunpack.c.l.b16 %v5385
      %v5454 = vunpack.c.l.b16 %v5386
      %v5455 = vunpack.c.l.b16 %v5387
      %v5456 = vunpack.c.l.b16 %v5388
      %v5457 = vunpack.c.l.b16 %v5389
      %v5458 = vunpack.c.l.b16 %v5390
      %v5459 = vunpack.c.l.b16 %v5391
      %v5460 = vunpack.c.l.b16 %v5392
      %v5461 = vunpack.c.l.b16 %v5393
      %v5462 = vunpack.c.l.b16 %v5394
      %v5463 = vunpack.c.l.b16 %v5395
      %v5464 = vunpack.c.l.b16 %v5396
      %v5465 = vunpack.c.l.b16 %v5397
      %v5466 = vunpack.c.l.b16 %v5398
      %v5467 = vunpack.c.l.b16 %v5399
      %v5468 = vunpack.c.l.b16 %v5400
      %v5469 = vunpack.c.l.b16 %v5401
      %v5470 = vunpack.c.l.b16 %v5402
      %v5471 = vunpack.c.l.b16 %v5403
      %v5472 = vunpack.c.l.b16 %v5404
      %v5473 = vunpack.c.l.b16 %v5405
      %v5474 = vunpack.c.l.b16 %v5406
      %v5475 = vunpack.c.l.b16 %v5407
      %v5476 = vunpack.c.l.b16 %v5408
      %v5477 = vpack.c.b16 %v5446, %v5445
      %v5478 = vpack.c.b16 %v5448, %v5447
      %v5479 = vpack.c.b16 %v5450, %v5449
      %v5480 = vpack.c.b16 %v5452, %v5451
      %v5481 = vpack.c.b16 %v5454, %v5453
      %v5482 = vpack.c.b16 %v5456, %v5455
      %v5483 = vpack.c.b16 %v5458, %v5457
      %v5484 = vpack.c.b16 %v5460, %v5459
      %v5485 = vpack.c.b16 %v5462, %v5461
      %v5486 = vpack.c.b16 %v5464, %v5463
      %v5487 = vpack.c.b16 %v5466, %v5465
      %v5488 = vpack.c.b16 %v5468, %v5467
      %v5489 = vpack.c.b16 %v5470, %v5469
      %v5490 = vpack.c.b16 %v5472, %v5471
      %v5491 = vpack.c.b16 %v5474, %v5473
      %v5492 = vpack.c.b16 %v5476, %v5475
      %5509 = vmatprep.subr.bf16.mxu0 0
      %5510 = vmatpush1.bf16.msra.mxu0 %v5477
      %5511 = vmatprep.subr.bf16.mxu0 0
      %5512 = vmatpush1.bf16.msra.mxu0 %v5478
      %5513 = vmatprep.subr.bf16.mxu0 0
      %5514 = vmatpush1.bf16.msra.mxu0 %v5479
      %5515 = vmatprep.subr.bf16.mxu0 0
      %5516 = vmatpush1.bf16.msra.mxu0 %v5480
      %5517 = vmatprep.subr.bf16.mxu0 0
      %5518 = vmatpush1.bf16.msra.mxu0 %v5481
      %5519 = vmatprep.subr.bf16.mxu0 0
      %5520 = vmatpush1.bf16.msra.mxu0 %v5482
      %5521 = vmatprep.subr.bf16.mxu0 0
      %5522 = vmatpush1.bf16.msra.mxu0 %v5483
      %5523 = vmatprep.subr.bf16.mxu0 0
      %5524 = vmatpush1.bf16.msra.mxu0 %v5484
      %5525 = vmatprep.subr.bf16.mxu0 0
      %5526 = vmatpush1.bf16.msra.mxu0 %v5485
      %5527 = vmatprep.subr.bf16.mxu0 0
      %5528 = vmatpush1.bf16.msra.mxu0 %v5486
      %5529 = vmatprep.subr.bf16.mxu0 0
      %5530 = vmatpush1.bf16.msra.mxu0 %v5487
      %5531 = vmatprep.subr.bf16.mxu0 0
      %5532 = vmatpush1.bf16.msra.mxu0 %v5488
      %5533 = vmatprep.subr.bf16.mxu0 0
      %5534 = vmatpush1.bf16.msra.mxu0 %v5489
      %5535 = vmatprep.subr.bf16.mxu0 0
      %5536 = vmatpush1.bf16.msra.mxu0 %v5490
      %5537 = vmatprep.subr.bf16.mxu0 0
      %5538 = vmatpush1.bf16.msra.mxu0 %v5491
      %5539 = vmatprep.subr.bf16.mxu0 0
      %5540 = vmatpush1.bf16.msra.mxu0 %v5492
      %5541 = vmatprep.mubr.bf16.mxu0 %v5410
      %5542 = vmatmul.mubr.bf16.gmra.mrb[0].mxu0 %v5409
      %v5543 = vpop.f32.mrb[0].mxu0
      %v5544 = vadd.f32 0.0, %v5543
      %v5545 = vpop.f32.mrb[0].mxu0
      %v5546 = vpop.f32.mrb[0].mxu0
      %v5547 = vpop.f32.mrb[0].mxu0
      %5548 = vdwg.mxu0
      %v5549 = vadd.f32 %v5375, %v5544
      %s5550 = scalar_lea.vmem %s3, 3584
      %v5551 = vld [vmem:[%s5550] sm:$0xf]
      %v5552 = vld [vmem:[%s5550 + $0x4] sm:$0xf]
      %v5553 = vld [vmem:[%s5550 + $0x8] sm:$0xf]
      %v5554 = vld [vmem:[%s5550 + $0xc] sm:$0xf]
      %v5555 = vld [vmem:[%s5550 + $0x10] sm:$0xf]
      %v5556 = vld [vmem:[%s5550 + $0x14] sm:$0xf]
      %v5557 = vld [vmem:[%s5550 + $0x18] sm:$0xf]
      %v5558 = vld [vmem:[%s5550 + $0x1c] sm:$0xf]
      %v5559 = vld [vmem:[%s5550 + $0x20] sm:$0xf]
      %v5560 = vld [vmem:[%s5550 + $0x24] sm:$0xf]
      %v5561 = vld [vmem:[%s5550 + $0x28] sm:$0xf]
      %v5562 = vld [vmem:[%s5550 + $0x2c] sm:$0xf]
      %v5563 = vld [vmem:[%s5550 + $0x30] sm:$0xf]
      %v5564 = vld [vmem:[%s5550 + $0x34] sm:$0xf]
      %v5565 = vld [vmem:[%s5550 + $0x38] sm:$0xf]
      %v5566 = vld [vmem:[%s5550 + $0x3c] sm:$0xf]
      %v5567 = vld [vmem:[%s5550 + $0x40] sm:$0xf]
      %v5568 = vld [vmem:[%s5550 + $0x44] sm:$0xf]
      %v5569 = vld [vmem:[%s5550 + $0x48] sm:$0xf]
      %v5570 = vld [vmem:[%s5550 + $0x4c] sm:$0xf]
      %v5571 = vld [vmem:[%s5550 + $0x50] sm:$0xf]
      %v5572 = vld [vmem:[%s5550 + $0x54] sm:$0xf]
      %v5573 = vld [vmem:[%s5550 + $0x58] sm:$0xf]
      %v5574 = vld [vmem:[%s5550 + $0x5c] sm:$0xf]
      %v5575 = vld [vmem:[%s5550 + $0x60] sm:$0xf]
      %v5576 = vld [vmem:[%s5550 + $0x64] sm:$0xf]
      %v5577 = vld [vmem:[%s5550 + $0x68] sm:$0xf]
      %v5578 = vld [vmem:[%s5550 + $0x6c] sm:$0xf]
      %v5579 = vld [vmem:[%s5550 + $0x70] sm:$0xf]
      %v5580 = vld [vmem:[%s5550 + $0x74] sm:$0xf]
      %v5581 = vld [vmem:[%s5550 + $0x78] sm:$0xf]
      %v5582 = vld [vmem:[%s5550 + $0x7c] sm:$0xf]
      %v5583 = vrot.slane %v675, 6
      %v5584 = vrot.slane %v676, 6
      %v5619 = vunpack.c.l.b16 %v5551
      %v5620 = vunpack.c.l.b16 %v5552
      %v5621 = vunpack.c.l.b16 %v5553
      %v5622 = vunpack.c.l.b16 %v5554
      %v5623 = vunpack.c.l.b16 %v5555
      %v5624 = vunpack.c.l.b16 %v5556
      %v5625 = vunpack.c.l.b16 %v5557
      %v5626 = vunpack.c.l.b16 %v5558
      %v5627 = vunpack.c.l.b16 %v5559
      %v5628 = vunpack.c.l.b16 %v5560
      %v5629 = vunpack.c.l.b16 %v5561
      %v5630 = vunpack.c.l.b16 %v5562
      %v5631 = vunpack.c.l.b16 %v5563
      %v5632 = vunpack.c.l.b16 %v5564
      %v5633 = vunpack.c.l.b16 %v5565
      %v5634 = vunpack.c.l.b16 %v5566
      %v5635 = vunpack.c.l.b16 %v5567
      %v5636 = vunpack.c.l.b16 %v5568
      %v5637 = vunpack.c.l.b16 %v5569
      %v5638 = vunpack.c.l.b16 %v5570
      %v5639 = vunpack.c.l.b16 %v5571
      %v5640 = vunpack.c.l.b16 %v5572
      %v5641 = vunpack.c.l.b16 %v5573
      %v5642 = vunpack.c.l.b16 %v5574
      %v5643 = vunpack.c.l.b16 %v5575
      %v5644 = vunpack.c.l.b16 %v5576
      %v5645 = vunpack.c.l.b16 %v5577
      %v5646 = vunpack.c.l.b16 %v5578
      %v5647 = vunpack.c.l.b16 %v5579
      %v5648 = vunpack.c.l.b16 %v5580
      %v5649 = vunpack.c.l.b16 %v5581
      %v5650 = vunpack.c.l.b16 %v5582
      %v5651 = vpack.c.b16 %v5620, %v5619
      %v5652 = vpack.c.b16 %v5622, %v5621
      %v5653 = vpack.c.b16 %v5624, %v5623
      %v5654 = vpack.c.b16 %v5626, %v5625
      %v5655 = vpack.c.b16 %v5628, %v5627
      %v5656 = vpack.c.b16 %v5630, %v5629
      %v5657 = vpack.c.b16 %v5632, %v5631
      %v5658 = vpack.c.b16 %v5634, %v5633
      %v5659 = vpack.c.b16 %v5636, %v5635
      %v5660 = vpack.c.b16 %v5638, %v5637
      %v5661 = vpack.c.b16 %v5640, %v5639
      %v5662 = vpack.c.b16 %v5642, %v5641
      %v5663 = vpack.c.b16 %v5644, %v5643
      %v5664 = vpack.c.b16 %v5646, %v5645
      %v5665 = vpack.c.b16 %v5648, %v5647
      %v5666 = vpack.c.b16 %v5650, %v5649
      %5683 = vmatprep.subr.bf16.mxu0 0
      %5684 = vmatpush1.bf16.msra.mxu0 %v5651
      %5685 = vmatprep.subr.bf16.mxu0 0
      %5686 = vmatpush1.bf16.msra.mxu0 %v5652
      %5687 = vmatprep.subr.bf16.mxu0 0
      %5688 = vmatpush1.bf16.msra.mxu0 %v5653
      %5689 = vmatprep.subr.bf16.mxu0 0
      %5690 = vmatpush1.bf16.msra.mxu0 %v5654
      %5691 = vmatprep.subr.bf16.mxu0 0
      %5692 = vmatpush1.bf16.msra.mxu0 %v5655
      %5693 = vmatprep.subr.bf16.mxu0 0
      %5694 = vmatpush1.bf16.msra.mxu0 %v5656
      %5695 = vmatprep.subr.bf16.mxu0 0
      %5696 = vmatpush1.bf16.msra.mxu0 %v5657
      %5697 = vmatprep.subr.bf16.mxu0 0
      %5698 = vmatpush1.bf16.msra.mxu0 %v5658
      %5699 = vmatprep.subr.bf16.mxu0 0
      %5700 = vmatpush1.bf16.msra.mxu0 %v5659
      %5701 = vmatprep.subr.bf16.mxu0 0
      %5702 = vmatpush1.bf16.msra.mxu0 %v5660
      %5703 = vmatprep.subr.bf16.mxu0 0
      %5704 = vmatpush1.bf16.msra.mxu0 %v5661
      %5705 = vmatprep.subr.bf16.mxu0 0
      %5706 = vmatpush1.bf16.msra.mxu0 %v5662
      %5707 = vmatprep.subr.bf16.mxu0 0
      %5708 = vmatpush1.bf16.msra.mxu0 %v5663
      %5709 = vmatprep.subr.bf16.mxu0 0
      %5710 = vmatpush1.bf16.msra.mxu0 %v5664
      %5711 = vmatprep.subr.bf16.mxu0 0
      %5712 = vmatpush1.bf16.msra.mxu0 %v5665
      %5713 = vmatprep.subr.bf16.mxu0 0
      %5714 = vmatpush1.bf16.msra.mxu0 %v5666
      %5715 = vmatprep.mubr.bf16.mxu0 %v5584
      %5716 = vmatmul.mubr.bf16.gmra.mrb[0].mxu0 %v5583
      %v5717 = vpop.f32.mrb[0].mxu0
      %v5718 = vadd.f32 0.0, %v5717
      %v5719 = vpop.f32.mrb[0].mxu0
      %v5720 = vpop.f32.mrb[0].mxu0
      %v5721 = vpop.f32.mrb[0].mxu0
      %5722 = vdwg.mxu0
      %v5723 = vadd.f32 %v5549, %v5718
      %s5724 = scalar_lea.vmem %s3, 3712
      %v5725 = vld [vmem:[%s5724] sm:$0xf]
      %v5726 = vld [vmem:[%s5724 + $0x4] sm:$0xf]
      %v5727 = vld [vmem:[%s5724 + $0x8] sm:$0xf]
      %v5728 = vld [vmem:[%s5724 + $0xc] sm:$0xf]
      %v5729 = vld [vmem:[%s5724 + $0x10] sm:$0xf]
      %v5730 = vld [vmem:[%s5724 + $0x14] sm:$0xf]
      %v5731 = vld [vmem:[%s5724 + $0x18] sm:$0xf]
      %v5732 = vld [vmem:[%s5724 + $0x1c] sm:$0xf]
      %v5733 = vld [vmem:[%s5724 + $0x20] sm:$0xf]
      %v5734 = vld [vmem:[%s5724 + $0x24] sm:$0xf]
      %v5735 = vld [vmem:[%s5724 + $0x28] sm:$0xf]
      %v5736 = vld [vmem:[%s5724 + $0x2c] sm:$0xf]
      %v5737 = vld [vmem:[%s5724 + $0x30] sm:$0xf]
      %v5738 = vld [vmem:[%s5724 + $0x34] sm:$0xf]
      %v5739 = vld [vmem:[%s5724 + $0x38] sm:$0xf]
      %v5740 = vld [vmem:[%s5724 + $0x3c] sm:$0xf]
      %v5741 = vld [vmem:[%s5724 + $0x40] sm:$0xf]
      %v5742 = vld [vmem:[%s5724 + $0x44] sm:$0xf]
      %v5743 = vld [vmem:[%s5724 + $0x48] sm:$0xf]
      %v5744 = vld [vmem:[%s5724 + $0x4c] sm:$0xf]
      %v5745 = vld [vmem:[%s5724 + $0x50] sm:$0xf]
      %v5746 = vld [vmem:[%s5724 + $0x54] sm:$0xf]
      %v5747 = vld [vmem:[%s5724 + $0x58] sm:$0xf]
      %v5748 = vld [vmem:[%s5724 + $0x5c] sm:$0xf]
      %v5749 = vld [vmem:[%s5724 + $0x60] sm:$0xf]
      %v5750 = vld [vmem:[%s5724 + $0x64] sm:$0xf]
      %v5751 = vld [vmem:[%s5724 + $0x68] sm:$0xf]
      %v5752 = vld [vmem:[%s5724 + $0x6c] sm:$0xf]
      %v5753 = vld [vmem:[%s5724 + $0x70] sm:$0xf]
      %v5754 = vld [vmem:[%s5724 + $0x74] sm:$0xf]
      %v5755 = vld [vmem:[%s5724 + $0x78] sm:$0xf]
      %v5756 = vld [vmem:[%s5724 + $0x7c] sm:$0xf]
      %v5757 = vrot.slane %v3664, 6
      %v5758 = vrot.slane %v3667, 6
      %v5793 = vunpack.c.l.b16 %v5725
      %v5794 = vunpack.c.l.b16 %v5726
      %v5795 = vunpack.c.l.b16 %v5727
      %v5796 = vunpack.c.l.b16 %v5728
      %v5797 = vunpack.c.l.b16 %v5729
      %v5798 = vunpack.c.l.b16 %v5730
      %v5799 = vunpack.c.l.b16 %v5731
      %v5800 = vunpack.c.l.b16 %v5732
      %v5801 = vunpack.c.l.b16 %v5733
      %v5802 = vunpack.c.l.b16 %v5734
      %v5803 = vunpack.c.l.b16 %v5735
      %v5804 = vunpack.c.l.b16 %v5736
      %v5805 = vunpack.c.l.b16 %v5737
      %v5806 = vunpack.c.l.b16 %v5738
      %v5807 = vunpack.c.l.b16 %v5739
      %v5808 = vunpack.c.l.b16 %v5740
      %v5809 = vunpack.c.l.b16 %v5741
      %v5810 = vunpack.c.l.b16 %v5742
      %v5811 = vunpack.c.l.b16 %v5743
      %v5812 = vunpack.c.l.b16 %v5744
      %v5813 = vunpack.c.l.b16 %v5745
      %v5814 = vunpack.c.l.b16 %v5746
      %v5815 = vunpack.c.l.b16 %v5747
      %v5816 = vunpack.c.l.b16 %v5748
      %v5817 = vunpack.c.l.b16 %v5749
      %v5818 = vunpack.c.l.b16 %v5750
      %v5819 = vunpack.c.l.b16 %v5751
      %v5820 = vunpack.c.l.b16 %v5752
      %v5821 = vunpack.c.l.b16 %v5753
      %v5822 = vunpack.c.l.b16 %v5754
      %v5823 = vunpack.c.l.b16 %v5755
      %v5824 = vunpack.c.l.b16 %v5756
      %v5825 = vpack.c.b16 %v5794, %v5793
      %v5826 = vpack.c.b16 %v5796, %v5795
      %v5827 = vpack.c.b16 %v5798, %v5797
      %v5828 = vpack.c.b16 %v5800, %v5799
      %v5829 = vpack.c.b16 %v5802, %v5801
      %v5830 = vpack.c.b16 %v5804, %v5803
      %v5831 = vpack.c.b16 %v5806, %v5805
      %v5832 = vpack.c.b16 %v5808, %v5807
      %v5833 = vpack.c.b16 %v5810, %v5809
      %v5834 = vpack.c.b16 %v5812, %v5811
      %v5835 = vpack.c.b16 %v5814, %v5813
      %v5836 = vpack.c.b16 %v5816, %v5815
      %v5837 = vpack.c.b16 %v5818, %v5817
      %v5838 = vpack.c.b16 %v5820, %v5819
      %v5839 = vpack.c.b16 %v5822, %v5821
      %v5840 = vpack.c.b16 %v5824, %v5823
      %5857 = vmatprep.subr.bf16.mxu0 0
      %5858 = vmatpush1.bf16.msra.mxu0 %v5825
      %5859 = vmatprep.subr.bf16.mxu0 0
      %5860 = vmatpush1.bf16.msra.mxu0 %v5826
      %5861 = vmatprep.subr.bf16.mxu0 0
      %5862 = vmatpush1.bf16.msra.mxu0 %v5827
      %5863 = vmatprep.subr.bf16.mxu0 0
      %5864 = vmatpush1.bf16.msra.mxu0 %v5828
      %5865 = vmatprep.subr.bf16.mxu0 0
      %5866 = vmatpush1.bf16.msra.mxu0 %v5829
      %5867 = vmatprep.subr.bf16.mxu0 0
      %5868 = vmatpush1.bf16.msra.mxu0 %v5830
      %5869 = vmatprep.subr.bf16.mxu0 0
      %5870 = vmatpush1.bf16.msra.mxu0 %v5831
      %5871 = vmatprep.subr.bf16.mxu0 0
      %5872 = vmatpush1.bf16.msra.mxu0 %v5832
      %5873 = vmatprep.subr.bf16.mxu0 0
      %5874 = vmatpush1.bf16.msra.mxu0 %v5833
      %5875 = vmatprep.subr.bf16.mxu0 0
      %5876 = vmatpush1.bf16.msra.mxu0 %v5834
      %5877 = vmatprep.subr.bf16.mxu0 0
      %5878 = vmatpush1.bf16.msra.mxu0 %v5835
      %5879 = vmatprep.subr.bf16.mxu0 0
      %5880 = vmatpush1.bf16.msra.mxu0 %v5836
      %5881 = vmatprep.subr.bf16.mxu0 0
      %5882 = vmatpush1.bf16.msra.mxu0 %v5837
      %5883 = vmatprep.subr.bf16.mxu0 0
      %5884 = vmatpush1.bf16.msra.mxu0 %v5838
      %5885 = vmatprep.subr.bf16.mxu0 0
      %5886 = vmatpush1.bf16.msra.mxu0 %v5839
      %5887 = vmatprep.subr.bf16.mxu0 0
      %5888 = vmatpush1.bf16.msra.mxu0 %v5840
      %5889 = vmatprep.mubr.bf16.mxu0 %v5758
      %5890 = vmatmul.mubr.bf16.gmra.mrb[0].mxu0 %v5757
      %v5891 = vpop.f32.mrb[0].mxu0
      %v5892 = vadd.f32 0.0, %v5891
      %v5893 = vpop.f32.mrb[0].mxu0
      %v5894 = vpop.f32.mrb[0].mxu0
      %v5895 = vpop.f32.mrb[0].mxu0
      %5896 = vdwg.mxu0
      %v5897 = vadd.f32 %v5723, %v5892
      %s5898 = scalar_lea.vmem %s3, 3840
      %v5899 = vld [vmem:[%s5898] sm:$0xf]
      %v5900 = vld [vmem:[%s5898 + $0x4] sm:$0xf]
      %v5901 = vld [vmem:[%s5898 + $0x8] sm:$0xf]
      %v5902 = vld [vmem:[%s5898 + $0xc] sm:$0xf]
      %v5903 = vld [vmem:[%s5898 + $0x10] sm:$0xf]
      %v5904 = vld [vmem:[%s5898 + $0x14] sm:$0xf]
      %v5905 = vld [vmem:[%s5898 + $0x18] sm:$0xf]
      %v5906 = vld [vmem:[%s5898 + $0x1c] sm:$0xf]
      %v5907 = vld [vmem:[%s5898 + $0x20] sm:$0xf]
      %v5908 = vld [vmem:[%s5898 + $0x24] sm:$0xf]
      %v5909 = vld [vmem:[%s5898 + $0x28] sm:$0xf]
      %v5910 = vld [vmem:[%s5898 + $0x2c] sm:$0xf]
      %v5911 = vld [vmem:[%s5898 + $0x30] sm:$0xf]
      %v5912 = vld [vmem:[%s5898 + $0x34] sm:$0xf]
      %v5913 = vld [vmem:[%s5898 + $0x38] sm:$0xf]
      %v5914 = vld [vmem:[%s5898 + $0x3c] sm:$0xf]
      %v5915 = vld [vmem:[%s5898 + $0x40] sm:$0xf]
      %v5916 = vld [vmem:[%s5898 + $0x44] sm:$0xf]
      %v5917 = vld [vmem:[%s5898 + $0x48] sm:$0xf]
      %v5918 = vld [vmem:[%s5898 + $0x4c] sm:$0xf]
      %v5919 = vld [vmem:[%s5898 + $0x50] sm:$0xf]
      %v5920 = vld [vmem:[%s5898 + $0x54] sm:$0xf]
      %v5921 = vld [vmem:[%s5898 + $0x58] sm:$0xf]
      %v5922 = vld [vmem:[%s5898 + $0x5c] sm:$0xf]
      %v5923 = vld [vmem:[%s5898 + $0x60] sm:$0xf]
      %v5924 = vld [vmem:[%s5898 + $0x64] sm:$0xf]
      %v5925 = vld [vmem:[%s5898 + $0x68] sm:$0xf]
      %v5926 = vld [vmem:[%s5898 + $0x6c] sm:$0xf]
      %v5927 = vld [vmem:[%s5898 + $0x70] sm:$0xf]
      %v5928 = vld [vmem:[%s5898 + $0x74] sm:$0xf]
      %v5929 = vld [vmem:[%s5898 + $0x78] sm:$0xf]
      %v5930 = vld [vmem:[%s5898 + $0x7c] sm:$0xf]
      %v5931 = vrot.slane %v675, 7
      %v5932 = vrot.slane %v676, 7
      %v5967 = vunpack.c.l.b16 %v5899
      %v5968 = vunpack.c.l.b16 %v5900
      %v5969 = vunpack.c.l.b16 %v5901
      %v5970 = vunpack.c.l.b16 %v5902
      %v5971 = vunpack.c.l.b16 %v5903
      %v5972 = vunpack.c.l.b16 %v5904
      %v5973 = vunpack.c.l.b16 %v5905
      %v5974 = vunpack.c.l.b16 %v5906
      %v5975 = vunpack.c.l.b16 %v5907
      %v5976 = vunpack.c.l.b16 %v5908
      %v5977 = vunpack.c.l.b16 %v5909
      %v5978 = vunpack.c.l.b16 %v5910
      %v5979 = vunpack.c.l.b16 %v5911
      %v5980 = vunpack.c.l.b16 %v5912
      %v5981 = vunpack.c.l.b16 %v5913
      %v5982 = vunpack.c.l.b16 %v5914
      %v5983 = vunpack.c.l.b16 %v5915
      %v5984 = vunpack.c.l.b16 %v5916
      %v5985 = vunpack.c.l.b16 %v5917
      %v5986 = vunpack.c.l.b16 %v5918
      %v5987 = vunpack.c.l.b16 %v5919
      %v5988 = vunpack.c.l.b16 %v5920
      %v5989 = vunpack.c.l.b16 %v5921
      %v5990 = vunpack.c.l.b16 %v5922
      %v5991 = vunpack.c.l.b16 %v5923
      %v5992 = vunpack.c.l.b16 %v5924
      %v5993 = vunpack.c.l.b16 %v5925
      %v5994 = vunpack.c.l.b16 %v5926
      %v5995 = vunpack.c.l.b16 %v5927
      %v5996 = vunpack.c.l.b16 %v5928
      %v5997 = vunpack.c.l.b16 %v5929
      %v5998 = vunpack.c.l.b16 %v5930
      %v5999 = vpack.c.b16 %v5968, %v5967
      %v6000 = vpack.c.b16 %v5970, %v5969
      %v6001 = vpack.c.b16 %v5972, %v5971
      %v6002 = vpack.c.b16 %v5974, %v5973
      %v6003 = vpack.c.b16 %v5976, %v5975
      %v6004 = vpack.c.b16 %v5978, %v5977
      %v6005 = vpack.c.b16 %v5980, %v5979
      %v6006 = vpack.c.b16 %v5982, %v5981
      %v6007 = vpack.c.b16 %v5984, %v5983
      %v6008 = vpack.c.b16 %v5986, %v5985
      %v6009 = vpack.c.b16 %v5988, %v5987
      %v6010 = vpack.c.b16 %v5990, %v5989
      %v6011 = vpack.c.b16 %v5992, %v5991
      %v6012 = vpack.c.b16 %v5994, %v5993
      %v6013 = vpack.c.b16 %v5996, %v5995
      %v6014 = vpack.c.b16 %v5998, %v5997
      %6031 = vmatprep.subr.bf16.mxu0 0
      %6032 = vmatpush1.bf16.msra.mxu0 %v5999
      %6033 = vmatprep.subr.bf16.mxu0 0
      %6034 = vmatpush1.bf16.msra.mxu0 %v6000
      %6035 = vmatprep.subr.bf16.mxu0 0
      %6036 = vmatpush1.bf16.msra.mxu0 %v6001
      %6037 = vmatprep.subr.bf16.mxu0 0
      %6038 = vmatpush1.bf16.msra.mxu0 %v6002
      %6039 = vmatprep.subr.bf16.mxu0 0
      %6040 = vmatpush1.bf16.msra.mxu0 %v6003
      %6041 = vmatprep.subr.bf16.mxu0 0
      %6042 = vmatpush1.bf16.msra.mxu0 %v6004
      %6043 = vmatprep.subr.bf16.mxu0 0
      %6044 = vmatpush1.bf16.msra.mxu0 %v6005
      %6045 = vmatprep.subr.bf16.mxu0 0
      %6046 = vmatpush1.bf16.msra.mxu0 %v6006
      %6047 = vmatprep.subr.bf16.mxu0 0
      %6048 = vmatpush1.bf16.msra.mxu0 %v6007
      %6049 = vmatprep.subr.bf16.mxu0 0
      %6050 = vmatpush1.bf16.msra.mxu0 %v6008
      %6051 = vmatprep.subr.bf16.mxu0 0
      %6052 = vmatpush1.bf16.msra.mxu0 %v6009
      %6053 = vmatprep.subr.bf16.mxu0 0
      %6054 = vmatpush1.bf16.msra.mxu0 %v6010
      %6055 = vmatprep.subr.bf16.mxu0 0
      %6056 = vmatpush1.bf16.msra.mxu0 %v6011
      %6057 = vmatprep.subr.bf16.mxu0 0
      %6058 = vmatpush1.bf16.msra.mxu0 %v6012
      %6059 = vmatprep.subr.bf16.mxu0 0
      %6060 = vmatpush1.bf16.msra.mxu0 %v6013
      %6061 = vmatprep.subr.bf16.mxu0 0
      %6062 = vmatpush1.bf16.msra.mxu0 %v6014
      %6063 = vmatprep.mubr.bf16.mxu0 %v5932
      %6064 = vmatmul.mubr.bf16.gmra.mrb[0].mxu0 %v5931
      %v6065 = vpop.f32.mrb[0].mxu0
      %v6066 = vadd.f32 0.0, %v6065
      %v6067 = vpop.f32.mrb[0].mxu0
      %v6068 = vpop.f32.mrb[0].mxu0
      %v6069 = vpop.f32.mrb[0].mxu0
      %6070 = vdwg.mxu0
      %v6071 = vadd.f32 %v5897, %v6066
      %s6072 = scalar_lea.vmem %s3, 3968
      %v6073 = vld [vmem:[%s6072] sm:$0xf]
      %v6074 = vld [vmem:[%s6072 + $0x4] sm:$0xf]
      %v6075 = vld [vmem:[%s6072 + $0x8] sm:$0xf]
      %v6076 = vld [vmem:[%s6072 + $0xc] sm:$0xf]
      %v6077 = vld [vmem:[%s6072 + $0x10] sm:$0xf]
      %v6078 = vld [vmem:[%s6072 + $0x14] sm:$0xf]
      %v6079 = vld [vmem:[%s6072 + $0x18] sm:$0xf]
      %v6080 = vld [vmem:[%s6072 + $0x1c] sm:$0xf]
      %v6081 = vld [vmem:[%s6072 + $0x20] sm:$0xf]
      %v6082 = vld [vmem:[%s6072 + $0x24] sm:$0xf]
      %v6083 = vld [vmem:[%s6072 + $0x28] sm:$0xf]
      %v6084 = vld [vmem:[%s6072 + $0x2c] sm:$0xf]
      %v6085 = vld [vmem:[%s6072 + $0x30] sm:$0xf]
      %v6086 = vld [vmem:[%s6072 + $0x34] sm:$0xf]
      %v6087 = vld [vmem:[%s6072 + $0x38] sm:$0xf]
      %v6088 = vld [vmem:[%s6072 + $0x3c] sm:$0xf]
      %v6089 = vld [vmem:[%s6072 + $0x40] sm:$0xf]
      %v6090 = vld [vmem:[%s6072 + $0x44] sm:$0xf]
      %v6091 = vld [vmem:[%s6072 + $0x48] sm:$0xf]
      %v6092 = vld [vmem:[%s6072 + $0x4c] sm:$0xf]
      %v6093 = vld [vmem:[%s6072 + $0x50] sm:$0xf]
      %v6094 = vld [vmem:[%s6072 + $0x54] sm:$0xf]
      %v6095 = vld [vmem:[%s6072 + $0x58] sm:$0xf]
      %v6096 = vld [vmem:[%s6072 + $0x5c] sm:$0xf]
      %v6097 = vld [vmem:[%s6072 + $0x60] sm:$0xf]
      %v6098 = vld [vmem:[%s6072 + $0x64] sm:$0xf]
      %v6099 = vld [vmem:[%s6072 + $0x68] sm:$0xf]
      %v6100 = vld [vmem:[%s6072 + $0x6c] sm:$0xf]
      %v6101 = vld [vmem:[%s6072 + $0x70] sm:$0xf]
      %v6102 = vld [vmem:[%s6072 + $0x74] sm:$0xf]
      %v6103 = vld [vmem:[%s6072 + $0x78] sm:$0xf]
      %v6104 = vld [vmem:[%s6072 + $0x7c] sm:$0xf]
      %v6105 = vrot.slane %v3664, 7
      %v6106 = vrot.slane %v3667, 7
      %v6141 = vunpack.c.l.b16 %v6073
      %v6142 = vunpack.c.l.b16 %v6074
      %v6143 = vunpack.c.l.b16 %v6075
      %v6144 = vunpack.c.l.b16 %v6076
      %v6145 = vunpack.c.l.b16 %v6077
      %v6146 = vunpack.c.l.b16 %v6078
      %v6147 = vunpack.c.l.b16 %v6079
      %v6148 = vunpack.c.l.b16 %v6080
      %v6149 = vunpack.c.l.b16 %v6081
      %v6150 = vunpack.c.l.b16 %v6082
      %v6151 = vunpack.c.l.b16 %v6083
      %v6152 = vunpack.c.l.b16 %v6084
      %v6153 = vunpack.c.l.b16 %v6085
      %v6154 = vunpack.c.l.b16 %v6086
      %v6155 = vunpack.c.l.b16 %v6087
      %v6156 = vunpack.c.l.b16 %v6088
      %v6157 = vunpack.c.l.b16 %v6089
      %v6158 = vunpack.c.l.b16 %v6090
      %v6159 = vunpack.c.l.b16 %v6091
      %v6160 = vunpack.c.l.b16 %v6092
      %v6161 = vunpack.c.l.b16 %v6093
      %v6162 = vunpack.c.l.b16 %v6094
      %v6163 = vunpack.c.l.b16 %v6095
      %v6164 = vunpack.c.l.b16 %v6096
      %v6165 = vunpack.c.l.b16 %v6097
      %v6166 = vunpack.c.l.b16 %v6098
      %v6167 = vunpack.c.l.b16 %v6099
      %v6168 = vunpack.c.l.b16 %v6100
      %v6169 = vunpack.c.l.b16 %v6101
      %v6170 = vunpack.c.l.b16 %v6102
      %v6171 = vunpack.c.l.b16 %v6103
      %v6172 = vunpack.c.l.b16 %v6104
      %v6173 = vpack.c.b16 %v6142, %v6141
      %v6174 = vpack.c.b16 %v6144, %v6143
      %v6175 = vpack.c.b16 %v6146, %v6145
      %v6176 = vpack.c.b16 %v6148, %v6147
      %v6177 = vpack.c.b16 %v6150, %v6149
      %v6178 = vpack.c.b16 %v6152, %v6151
      %v6179 = vpack.c.b16 %v6154, %v6153
      %v6180 = vpack.c.b16 %v6156, %v6155
      %v6181 = vpack.c.b16 %v6158, %v6157
      %v6182 = vpack.c.b16 %v6160, %v6159
      %v6183 = vpack.c.b16 %v6162, %v6161
      %v6184 = vpack.c.b16 %v6164, %v6163
      %v6185 = vpack.c.b16 %v6166, %v6165
      %v6186 = vpack.c.b16 %v6168, %v6167
      %v6187 = vpack.c.b16 %v6170, %v6169
      %v6188 = vpack.c.b16 %v6172, %v6171
      %6205 = vmatprep.subr.bf16.mxu0 0
      %6206 = vmatpush1.bf16.msra.mxu0 %v6173
      %6207 = vmatprep.subr.bf16.mxu0 0
      %6208 = vmatpush1.bf16.msra.mxu0 %v6174
      %6209 = vmatprep.subr.bf16.mxu0 0
      %6210 = vmatpush1.bf16.msra.mxu0 %v6175
      %6211 = vmatprep.subr.bf16.mxu0 0
      %6212 = vmatpush1.bf16.msra.mxu0 %v6176
      %6213 = vmatprep.subr.bf16.mxu0 0
      %6214 = vmatpush1.bf16.msra.mxu0 %v6177
      %6215 = vmatprep.subr.bf16.mxu0 0
      %6216 = vmatpush1.bf16.msra.mxu0 %v6178
      %6217 = vmatprep.subr.bf16.mxu0 0
      %6218 = vmatpush1.bf16.msra.mxu0 %v6179
      %6219 = vmatprep.subr.bf16.mxu0 0
      %6220 = vmatpush1.bf16.msra.mxu0 %v6180
      %6221 = vmatprep.subr.bf16.mxu0 0
      %6222 = vmatpush1.bf16.msra.mxu0 %v6181
      %6223 = vmatprep.subr.bf16.mxu0 0
      %6224 = vmatpush1.bf16.msra.mxu0 %v6182
      %6225 = vmatprep.subr.bf16.mxu0 0
      %6226 = vmatpush1.bf16.msra.mxu0 %v6183
      %6227 = vmatprep.subr.bf16.mxu0 0
      %6228 = vmatpush1.bf16.msra.mxu0 %v6184
      %6229 = vmatprep.subr.bf16.mxu0 0
      %6230 = vmatpush1.bf16.msra.mxu0 %v6185
      %6231 = vmatprep.subr.bf16.mxu0 0
      %6232 = vmatpush1.bf16.msra.mxu0 %v6186
      %6233 = vmatprep.subr.bf16.mxu0 0
      %6234 = vmatpush1.bf16.msra.mxu0 %v6187
      %6235 = vmatprep.subr.bf16.mxu0 0
      %6236 = vmatpush1.bf16.msra.mxu0 %v6188
      %6237 = vmatprep.mubr.bf16.mxu0 %v6106
      %6238 = vmatmul.mubr.bf16.gmra.mrb[0].mxu0 %v6105
      %v6239 = vpop.f32.mrb[0].mxu0
      %v6240 = vadd.f32 0.0, %v6239
      %v6241 = vpop.f32.mrb[0].mxu0
      %v6242 = vpop.f32.mrb[0].mxu0
      %v6243 = vpop.f32.mrb[0].mxu0
      %6244 = vdwg.mxu0
      %v6245 = vadd.f32 %v6071, %v6240
      %v6246 = vld [vmem:[%s4] sm:$0x1]
      %v6247 = vadd.f32 %v6245, %v6246
      %v6248 = vmax.f32 %v6247, 0.0
      %v6249 = vld [vmem:[%s5] sm:$0x1]
      %v6250 = vmul.f32 %v6248, %v6249
      %vm6251 = vcmask 1040384
      %v6252 = vsel %vm6251, %v6250, 0.0
      %6253 = vadd.xlane.f32.xlu0 %v6252
      %v6254 = vpop.xlane.xlu0 %6253
      %s6255 = sld [smem:[#allocation2]]
      %v6256 = vstv %s6255
      %v6257 = vadd.f32 %v6254, %v6256
      %v6258 = vsub.f32 0.0, %v6257
      %v6259 = vmul.f32 %v6258, 1.442695
      %v6260 = vpow.pop %v6259
      %v6261 = vadd.f32 %v6260, 1.0
      %v6262 = vrcp.pop %v6261
      %v6263 = vmul.f32 1.0, %v6262
      %vm6264 = vcmask 0
      %6265 = vst.msk [vmem:[%s275] sm:$0x1] %vm6264, %v6263
      %p6266 = scmp.lt.s32.totalorder %s19, 1
      %s6267 = scalar_select %p6266, %s19, 1
      %s6268 = scalar_lea.vmem %s7, %s6267
      // Predicated region
      $region49: #{net_forward.1} parent=47 // pred_check
        %p6269 = pneg %p189
      $region50: #{net_forward.1} parent=47 // pred_check_branch
        %6271 = sbr.rel (%p6269) target = $region52
      $region51: #{net_forward.1} parent=47 // pred_region
        _
      $region52: #{net_forward.1} parent=47 // pred_fallthru
        _
    $region48: #{net_forward.1} parent=5 // pred_fallthru
      _
    %p6272 = scmp.le.s32.totalorder 2, %s14
    // Predicated region
    $region53: #{net_forward.1} parent=5 // pred_check
      %p6273 = pneg %p6272
    $region54: #{net_forward.1} parent=5 // pred_check_branch
      %6275 = sbr.rel (%p6273) target = $region56
    $region55: #{net_forward.1} parent=5 // pred_region
      %s6276 = ssub.s32 %s14, 2
      // Predicated region
      $region57: #{net_forward.1} parent=55 // pred_check
        %p6277 = pneg %p195
      $region58: #{net_forward.1} parent=55 // pred_check_branch
        %6279 = sbr.rel (%p6277) target = $region60
      $region59: #{net_forward.1} parent=55 // pred_region
        %p6280 = scmp.lt.s32.totalorder %s20, 1
        %s6281 = scalar_select %p6280, %s20, 1
        %s6282 = scalar_lea.vmem %s7, %s6281
      $region60: #{net_forward.1} parent=55 // pred_fallthru
        _
    $region56: #{net_forward.1} parent=5 // pred_fallthru
      _
  $region6: #{net_forward.1} parent=0 // loop_footer
    %s18 = sadd.s32 1, %s14
  $region7: #{net_forward.1} parent=0 // loop_footer_branch
    %13 = sbr.rel target = $region3
  $region8: #{net_forward.1} parent=0 // loop_exit
    _

</llo_original>
